<compile_context>
chip_gen: v7x
topology: tpu7x:2x2x1
jax: 0.10.0
libtpu: 0.0.40
codegen_flags: <defaults>
</compile_context>

<pallas_src>
import jax
import jax.numpy as jnp
from jax import lax
from jax.experimental import pallas as pl
from jax.experimental.pallas import tpu as pltpu


# ----------------------------------------------------------------------------
# Fused Bottleneck kernel: one (batch, row-block) tile per grid step.
# ----------------------------------------------------------------------------
def _bottleneck_fused_kernel(x_ref, halo_ref, w1_ref, w2_ref, w3_ref,
                             s1_ref, b1_ref, s2_ref, b2_ref, s3_ref, b3_ref,
                             o_ref):
    f32 = jnp.float32
    TH = x_ref.shape[1]        # rows in this block
    W = x_ref.shape[2]
    Cin = x_ref.shape[3]
    P = w1_ref.shape[1]        # planes
    C4 = w3_ref.shape[1]       # planes * 4 == Cin

    r = pl.program_id(1)
    last_r = pl.num_programs(1) - 1

    s1 = s1_ref[...]
    b1 = b1_ref[...]

    # ---- stage 1: conv1 (1x1) + bn1 + relu on the TH block rows + 2 halo rows
    x_main = x_ref[...].reshape(TH * W, Cin)
    y1 = jnp.dot(x_main, w1_ref[...], preferred_element_type=f32)
    y1 = jnp.maximum(y1 * s1 + b1, 0.0).reshape(TH, W, P)

    x_halo = halo_ref[...].reshape(2 * W, Cin)
    yh = jnp.dot(x_halo, w1_ref[...], preferred_element_type=f32)
    yh = jnp.maximum(yh * s1 + b1, 0.0).reshape(2, W, P)

    # conv2 zero-pads the *conv1 output*: halo rows that fall outside the image
    # must be exactly zero (not conv1(zero-rows) = relu(b1)).
    top = yh[0:1] * jnp.where(r > 0, 1.0, 0.0)
    bot = yh[1:2] * jnp.where(r < last_r, 1.0, 0.0)

    out1 = jnp.concatenate([top, y1, bot], axis=0)            # (TH+2, W, P)

    # Zero-pad the width (conv2 padding=1); pad by a full sublane (8) on each
    # side so the concatenation stays layout-friendly.
    PADW = 8
    zcol = jnp.zeros((TH + 2, PADW, P), f32)
    out1p = jnp.concatenate([zcol, out1, zcol], axis=1)       # (TH+2, W+16, P)

    # ---- stage 2: conv2 (3x3, pad=1) + bn2 + relu  (sum of 9 shifted matmuls)
    acc = jnp.zeros((TH * W, P), f32)
    for ky in range(3):
        for kx in range(3):
            c0 = PADW - 1 + kx
            win = out1p[ky:ky + TH, c0:c0 + W, :].reshape(TH * W, P)
            acc = acc + jnp.dot(win, w2_ref[ky * 3 + kx],
                                preferred_element_type=f32)
    y2 = jnp.maximum(acc * s2_ref[...] + b2_ref[...], 0.0)    # (TH*W, P)

    # ---- stage 3: conv3 (1x1) + bn3 + residual add + relu
    y3 = jnp.dot(y2, w3_ref[...], preferred_element_type=f32)
    y3 = y3 * s3_ref[...] + b3_ref[...] + x_main.astype(f32)  # Cin == C4
    o_ref[...] = jnp.maximum(y3, 0.0).reshape(1, TH, W, C4).astype(o_ref.dtype)


# ----------------------------------------------------------------------------
# Wrapper: NCHW in / NCHW out, row-block tiling + halo side input.
# ----------------------------------------------------------------------------
def bottleneck_forward(x_nchw, params, row_block=8):
    x = jnp.transpose(x_nchw, (0, 2, 3, 1))  # -> NHWC
    N, H, W, Cin = x.shape
    P = params["w1"].shape[1]
    C4 = params["w3"].shape[1]
    assert Cin == C4, "default Bottleneck path requires inplanes == planes*4"

    # Row-block size (must divide H).  TODO(synk): partial last block.
    th = max(1, min(row_block, H))
    while H % th != 0:
        th -= 1
    num_rb = H // th

    # Per-row-block halo rows: row (r*th - 1) above and row (r*th + th) below
    # each block; zeros at the image border.  Only 2 rows per block, so this
    # avoids an XLA jnp.pad of the full activation.
    zero_row = jnp.zeros((N, 1, W, Cin), x.dtype)
    tops = jnp.concatenate([zero_row, x[:, th - 1::th][:, :num_rb - 1]], axis=1)
    bots = jnp.concatenate([x[:, th::th][:, :num_rb - 1], zero_row], axis=1)
    halo = jnp.stack([tops, bots], axis=2).reshape(N, num_rb * 2, W, Cin)

    w1 = params["w1"]                     # (Cin, P)
    w2 = params["w2"].reshape(9, P, P)    # (ky, kx, Cin, Cout) -> (tap, Cin, Cout)
    w3 = params["w3"]                     # (P, C4)
    s1 = params["s1"].reshape(1, P)
    b1 = params["b1"].reshape(1, P)
    s2 = params["s2"].reshape(1, P)
    b2 = params["b2"].reshape(1, P)
    s3 = params["s3"].reshape(1, C4)
    b3 = params["b3"].reshape(1, C4)

    const2 = lambda n, r: (0, 0)
    const3 = lambda n, r: (0, 0, 0)

    # NOTE: for production channel widths (Cin up to 2048), keep th modest
    # (8-32 rows) and, if needed, raise the scoped VMEM limit via
    # pltpu.CompilerParams(vmem_limit_bytes=...).  The defaults are ample here.
    out = pl.pallas_call(
        _bottleneck_fused_kernel,
        out_shape=jax.ShapeDtypeStruct((N, H, W, C4), x.dtype),
        grid=(N, num_rb),
        in_specs=[
            pl.BlockSpec((1, th, W, Cin), lambda n, r: (n, r, 0, 0)),   # x block
            pl.BlockSpec((1, 2, W, Cin), lambda n, r: (n, r, 0, 0)),    # halo rows
            pl.BlockSpec((Cin, P), const2),                             # w1
            pl.BlockSpec((9, P, P), const3),                            # w2 taps
            pl.BlockSpec((P, C4), const2),                              # w3
            pl.BlockSpec((1, P), const2), pl.BlockSpec((1, P), const2),   # s1, b1
            pl.BlockSpec((1, P), const2), pl.BlockSpec((1, P), const2),   # s2, b2
            pl.BlockSpec((1, C4), const2), pl.BlockSpec((1, C4), const2),  # s3, b3
        ],
        out_specs=pl.BlockSpec((1, th, W, C4), lambda n, r: (n, r, 0, 0)),
        compiler_params=pltpu.CompilerParams(
            dimension_semantics=("parallel", "parallel")),
    )(x, halo, w1, w2, w3, s1, b1, s2, b2, s3, b3)

    return jnp.transpose(out, (0, 3, 1, 2))  # -> NCHW


# ----------------------------------------------------------------------------
# Parameter construction (deterministic, synthetic)
# ----------------------------------------------------------------------------
def _fold_bn(gamma, beta, mean, var, eps=1e-5):
    scale = gamma / jnp.sqrt(var + eps)
    bias = beta - mean * scale
    return scale, bias


def make_params(key, inplanes, planes):
    c4 = planes * 4
    keys = jax.random.split(key, 15)

    def bn(k0, k1, k2, k3, c):
        gamma = 1.0 + 0.1 * jax.random.normal(k0, (c,), jnp.float32)
        beta = 0.1 * jax.random.normal(k1, (c,), jnp.float32)
        mean = 0.1 * jax.random.normal(k2, (c,), jnp.float32)
        var = 0.5 + jnp.abs(jax.random.normal(k3, (c,), jnp.float32))
        return _fold_bn(gamma, beta, mean, var)

    # conv weights (stored channels-last: (Cin, Cout) / (kh, kw, Cin, Cout))
    w1 = jax.random.normal(keys[0], (inplanes, planes), jnp.float32) * (1.0 / jnp.sqrt(inplanes))
    w2 = jax.random.normal(keys[1], (3, 3, planes, planes), jnp.float32) * (1.0 / jnp.sqrt(9 * planes))
    w3 = jax.random.normal(keys[2], (planes, c4), jnp.float32) * (1.0 / jnp.sqrt(planes))

    s1, b1 = bn(keys[3], keys[4], keys[5], keys[6], planes)
    s2, b2 = bn(keys[7], keys[8], keys[9], keys[10], planes)
    s3, b3 = bn(keys[11], keys[12], keys[13], keys[14], c4)

    return dict(w1=w1, w2=w2, w3=w3, s1=s1, b1=b1, s2=s2, b2=b2, s3=s3, b3=b3)


# ----------------------------------------------------------------------------
# Pure-JAX reference (for correctness check)
# ----------------------------------------------------------------------------
def bottleneck_ref(x_nchw, params):
    x = jnp.transpose(x_nchw, (0, 2, 3, 1))

    def conv1x1(a, w):
        return jnp.einsum("nhwc,cd->nhwd", a, w)

    out = conv1x1(x, params["w1"]) * params["s1"] + params["b1"]
    out = jnp.maximum(out, 0.0)
    out = lax.conv_general_dilated(
        out, params["w2"], window_strides=(1, 1),
        padding=((1, 1), (1, 1)),
        dimension_numbers=("NHWC", "HWIO", "NHWC"))
    out = out * params["s2"] + params["b2"]
    out = jnp.maximum(out, 0.0)
    out = conv1x1(out, params["w3"]) * params["s3"] + params["b3"]
    out = jnp.maximum(out + x, 0.0)
    return jnp.transpose(out, (0, 3, 1, 2))


if __name__ == "__main__":
    # Small shapes: batch=2, inplanes=16, planes=4 (planes*4 == inplanes,
    # downsample=None), spatial 16x16.
    N, inplanes, planes, H, W = 2, 16, 4, 16, 16

    key = jax.random.PRNGKey(0)
    kx, kp = jax.random.split(key)
    x = jax.random.normal(kx, (N, inplanes, H, W), jnp.float32)
    params = make_params(kp, inplanes, planes)

    out = jax.jit(bottleneck_forward)(x, params)
    out = jax.block_until_ready(out)

    ref = bottleneck_ref(x, params)
    assert out.shape == (N, planes * 4, H, W)
    assert jnp.allclose(out, ref, rtol=1e-4, atol=1e-4), "mismatch vs reference"

    print("KERNEL_OK")
</pallas_src>

<mosaic_0001>
module attributes {stable_mosaic.version = 11 : i64} {
  func.func @_bottleneck_fused_kernel(%arg0: i32, %arg1: i32, %arg2: memref<1x8x16x16xf32, #tpu.memory_space<vmem>>, %arg3: memref<1x2x16x16xf32, #tpu.memory_space<vmem>>, %arg4: memref<16x4xf32, #tpu.memory_space<vmem>>, %arg5: memref<9x4x4xf32, #tpu.memory_space<vmem>>, %arg6: memref<4x16xf32, #tpu.memory_space<vmem>>, %arg7: memref<1x4xf32, #tpu.memory_space<vmem>>, %arg8: memref<1x4xf32, #tpu.memory_space<vmem>>, %arg9: memref<1x4xf32, #tpu.memory_space<vmem>>, %arg10: memref<1x4xf32, #tpu.memory_space<vmem>>, %arg11: memref<1x16xf32, #tpu.memory_space<vmem>>, %arg12: memref<1x16xf32, #tpu.memory_space<vmem>>, %arg13: memref<1x8x16x16xf32, #tpu.memory_space<vmem>>) attributes {dimension_semantics = [#tpu.dimension_semantics<parallel>, #tpu.dimension_semantics<parallel>], iteration_bounds = array<i64: 2, 2>, scalar_prefetch = 0 : i64, scratch_operands = 0 : i64, tpu.core_type = #tpu.core_type<tc>, window_params = [{transform_indices = @transform_0, window_bounds = array<i64: 1, 8, 16, 16>}, {transform_indices = @transform_1, window_bounds = array<i64: 1, 2, 16, 16>}, {pipeline_mode = #tpu.pipeline_mode<synchronous>, transform_indices = @transform_2, window_bounds = array<i64: 16, 4>}, {pipeline_mode = #tpu.pipeline_mode<synchronous>, transform_indices = @transform_3, window_bounds = array<i64: 9, 4, 4>}, {pipeline_mode = #tpu.pipeline_mode<synchronous>, transform_indices = @transform_4, window_bounds = array<i64: 4, 16>}, {pipeline_mode = #tpu.pipeline_mode<synchronous>, transform_indices = @transform_5, window_bounds = array<i64: 1, 4>}, {pipeline_mode = #tpu.pipeline_mode<synchronous>, transform_indices = @transform_6, window_bounds = array<i64: 1, 4>}, {pipeline_mode = #tpu.pipeline_mode<synchronous>, transform_indices = @transform_7, window_bounds = array<i64: 1, 4>}, {pipeline_mode = #tpu.pipeline_mode<synchronous>, transform_indices = @transform_8, window_bounds = array<i64: 1, 4>}, {pipeline_mode = #tpu.pipeline_mode<synchronous>, transform_indices = @transform_9, window_bounds = array<i64: 1, 16>}, {pipeline_mode = #tpu.pipeline_mode<synchronous>, transform_indices = @transform_10, window_bounds = array<i64: 1, 16>}, {transform_indices = @transform_11, window_bounds = array<i64: 1, 8, 16, 16>}]} {
    %c0 = arith.constant 0 : index
    %c0_0 = arith.constant 0 : index
    %0 = vector.load %arg7[%c0, %c0_0] : memref<1x4xf32, #tpu.memory_space<vmem>>, vector<1x4xf32>
    %c0_1 = arith.constant 0 : index
    %c0_2 = arith.constant 0 : index
    %1 = vector.load %arg8[%c0_1, %c0_2] : memref<1x4xf32, #tpu.memory_space<vmem>>, vector<1x4xf32>
    %c0_3 = arith.constant 0 : index
    %c0_4 = arith.constant 0 : index
    %c0_5 = arith.constant 0 : index
    %c0_6 = arith.constant 0 : index
    %2 = vector.load %arg2[%c0_3, %c0_4, %c0_5, %c0_6] : memref<1x8x16x16xf32, #tpu.memory_space<vmem>>, vector<1x8x16x16xf32>
    %3 = vector.shape_cast %2 : vector<1x8x16x16xf32> to vector<128x16xf32>
    %c0_7 = arith.constant 0 : index
    %c0_8 = arith.constant 0 : index
    %4 = vector.load %arg4[%c0_7, %c0_8] : memref<16x4xf32, #tpu.memory_space<vmem>>, vector<16x4xf32>
    %cst = arith.constant dense<0.000000e+00> : vector<128x4xf32>
    %5 = tpu.matmul %3, %4, %cst {dimension_numbers = #tpu.dot_dimension_numbers<[1], [0], [0], [1], [0, 0, 1, 1], [], []>} : vector<128x16xf32>, vector<16x4xf32>, vector<128x4xf32> -> vector<128x4xf32>
    %6 = vector.broadcast %0 : vector<1x4xf32> to vector<128x4xf32>
    %7 = arith.mulf %5, %6 : vector<128x4xf32>
    %8 = vector.broadcast %1 : vector<1x4xf32> to vector<128x4xf32>
    %9 = arith.addf %7, %8 : vector<128x4xf32>
    %cst_9 = arith.constant 0.000000e+00 : f32
    %10 = vector.broadcast %cst_9 : f32 to vector<128x4xf32>
    %11 = arith.maximumf %9, %10 : vector<128x4xf32>
    %12 = vector.shape_cast %11 : vector<128x4xf32> to vector<8x16x4xf32>
    %c0_10 = arith.constant 0 : index
    %c0_11 = arith.constant 0 : index
    %c0_12 = arith.constant 0 : index
    %c0_13 = arith.constant 0 : index
    %13 = vector.load %arg3[%c0_10, %c0_11, %c0_12, %c0_13] : memref<1x2x16x16xf32, #tpu.memory_space<vmem>>, vector<1x2x16x16xf32>
    %14 = vector.shape_cast %13 : vector<1x2x16x16xf32> to vector<32x16xf32>
    %c0_14 = arith.constant 0 : index
    %c0_15 = arith.constant 0 : index
    %15 = vector.load %arg4[%c0_14, %c0_15] : memref<16x4xf32, #tpu.memory_space<vmem>>, vector<16x4xf32>
    %cst_16 = arith.constant dense<0.000000e+00> : vector<32x4xf32>
    %16 = tpu.matmul %14, %15, %cst_16 {dimension_numbers = #tpu.dot_dimension_numbers<[1], [0], [0], [1], [0, 0, 1, 1], [], []>} : vector<32x16xf32>, vector<16x4xf32>, vector<32x4xf32> -> vector<32x4xf32>
    %17 = vector.broadcast %0 : vector<1x4xf32> to vector<32x4xf32>
    %18 = arith.mulf %16, %17 : vector<32x4xf32>
    %19 = vector.broadcast %1 : vector<1x4xf32> to vector<32x4xf32>
    %20 = arith.addf %18, %19 : vector<32x4xf32>
    %cst_17 = arith.constant 0.000000e+00 : f32
    %21 = vector.broadcast %cst_17 : f32 to vector<32x4xf32>
    %22 = arith.maximumf %20, %21 : vector<32x4xf32>
    %23 = vector.shape_cast %22 : vector<32x4xf32> to vector<2x16x4xf32>
    %24 = vector.extract_strided_slice %23 {offsets = [0, 0, 0], sizes = [1, 16, 4], strides = [1, 1, 1]} : vector<2x16x4xf32> to vector<1x16x4xf32>
    %c0_i32 = arith.constant 0 : i32
    %25 = arith.cmpi sgt, %arg1, %c0_i32 : i32
    %cst_18 = arith.constant 1.000000e+00 : f32
    %cst_19 = arith.constant 0.000000e+00 : f32
    %26 = arith.select %25, %cst_18, %cst_19 : f32
    %27 = vector.broadcast %26 : f32 to vector<1x16x4xf32>
    %28 = arith.mulf %24, %27 : vector<1x16x4xf32>
    %29 = vector.extract_strided_slice %23 {offsets = [1, 0, 0], sizes = [1, 16, 4], strides = [1, 1, 1]} : vector<2x16x4xf32> to vector<1x16x4xf32>
    %c1_i32 = arith.constant 1 : i32
    %30 = arith.cmpi slt, %arg1, %c1_i32 : i32
    %cst_20 = arith.constant 1.000000e+00 : f32
    %cst_21 = arith.constant 0.000000e+00 : f32
    %31 = arith.select %30, %cst_20, %cst_21 : f32
    %32 = vector.broadcast %31 : f32 to vector<1x16x4xf32>
    %33 = arith.mulf %29, %32 : vector<1x16x4xf32>
    %34 = tpu.concatenate %28, %12, %33 in 0 : vector<1x16x4xf32>, vector<8x16x4xf32>, vector<1x16x4xf32> -> vector<10x16x4xf32>
    %cst_22 = arith.constant 0.000000e+00 : f32
    %35 = vector.broadcast %cst_22 : f32 to vector<10x8x4xf32>
    %36 = tpu.concatenate %35, %34, %35 in 1 : vector<10x8x4xf32>, vector<10x16x4xf32>, vector<10x8x4xf32> -> vector<10x32x4xf32>
    %cst_23 = arith.constant 0.000000e+00 : f32
    %37 = vector.broadcast %cst_23 : f32 to vector<128x4xf32>
    %38 = vector.extract_strided_slice %36 {offsets = [0, 7, 0], sizes = [8, 16, 4], strides = [1, 1, 1]} : vector<10x32x4xf32> to vector<8x16x4xf32>
    %39 = vector.shape_cast %38 : vector<8x16x4xf32> to vector<128x4xf32>
    %c0_24 = arith.constant 0 : index
    %c0_25 = arith.constant 0 : index
    %c0_26 = arith.constant 0 : index
    %40 = vector.load %arg5[%c0_24, %c0_25, %c0_26] : memref<9x4x4xf32, #tpu.memory_space<vmem>>, vector<1x4x4xf32>
    %41 = vector.shape_cast %40 : vector<1x4x4xf32> to vector<4x4xf32>
    %cst_27 = arith.constant dense<0.000000e+00> : vector<128x4xf32>
    %42 = tpu.matmul %39, %41, %cst_27 {dimension_numbers = #tpu.dot_dimension_numbers<[1], [0], [0], [1], [0, 0, 1, 1], [], []>} : vector<128x4xf32>, vector<4x4xf32>, vector<128x4xf32> -> vector<128x4xf32>
    %43 = arith.addf %37, %42 : vector<128x4xf32>
    %44 = vector.extract_strided_slice %36 {offsets = [0, 8, 0], sizes = [8, 16, 4], strides = [1, 1, 1]} : vector<10x32x4xf32> to vector<8x16x4xf32>
    %45 = vector.shape_cast %44 : vector<8x16x4xf32> to vector<128x4xf32>
    %c1 = arith.constant 1 : index
    %c0_28 = arith.constant 0 : index
    %c0_29 = arith.constant 0 : index
    %46 = vector.load %arg5[%c1, %c0_28, %c0_29] : memref<9x4x4xf32, #tpu.memory_space<vmem>>, vector<1x4x4xf32>
    %47 = vector.shape_cast %46 : vector<1x4x4xf32> to vector<4x4xf32>
    %cst_30 = arith.constant dense<0.000000e+00> : vector<128x4xf32>
    %48 = tpu.matmul %45, %47, %cst_30 {dimension_numbers = #tpu.dot_dimension_numbers<[1], [0], [0], [1], [0, 0, 1, 1], [], []>} : vector<128x4xf32>, vector<4x4xf32>, vector<128x4xf32> -> vector<128x4xf32>
    %49 = arith.addf %43, %48 : vector<128x4xf32>
    %50 = vector.extract_strided_slice %36 {offsets = [0, 9, 0], sizes = [8, 16, 4], strides = [1, 1, 1]} : vector<10x32x4xf32> to vector<8x16x4xf32>
    %51 = vector.shape_cast %50 : vector<8x16x4xf32> to vector<128x4xf32>
    %c2 = arith.constant 2 : index
    %c0_31 = arith.constant 0 : index
    %c0_32 = arith.constant 0 : index
    %52 = vector.load %arg5[%c2, %c0_31, %c0_32] : memref<9x4x4xf32, #tpu.memory_space<vmem>>, vector<1x4x4xf32>
    %53 = vector.shape_cast %52 : vector<1x4x4xf32> to vector<4x4xf32>
    %cst_33 = arith.constant dense<0.000000e+00> : vector<128x4xf32>
    %54 = tpu.matmul %51, %53, %cst_33 {dimension_numbers = #tpu.dot_dimension_numbers<[1], [0], [0], [1], [0, 0, 1, 1], [], []>} : vector<128x4xf32>, vector<4x4xf32>, vector<128x4xf32> -> vector<128x4xf32>
    %55 = arith.addf %49, %54 : vector<128x4xf32>
    %56 = vector.extract_strided_slice %36 {offsets = [1, 7, 0], sizes = [8, 16, 4], strides = [1, 1, 1]} : vector<10x32x4xf32> to vector<8x16x4xf32>
    %57 = vector.shape_cast %56 : vector<8x16x4xf32> to vector<128x4xf32>
    %c3 = arith.constant 3 : index
    %c0_34 = arith.constant 0 : index
    %c0_35 = arith.constant 0 : index
    %58 = vector.load %arg5[%c3, %c0_34, %c0_35] : memref<9x4x4xf32, #tpu.memory_space<vmem>>, vector<1x4x4xf32>
    %59 = vector.shape_cast %58 : vector<1x4x4xf32> to vector<4x4xf32>
    %cst_36 = arith.constant dense<0.000000e+00> : vector<128x4xf32>
    %60 = tpu.matmul %57, %59, %cst_36 {dimension_numbers = #tpu.dot_dimension_numbers<[1], [0], [0], [1], [0, 0, 1, 1], [], []>} : vector<128x4xf32>, vector<4x4xf32>, vector<128x4xf32> -> vector<128x4xf32>
    %61 = arith.addf %55, %60 : vector<128x4xf32>
    %62 = vector.extract_strided_slice %36 {offsets = [1, 8, 0], sizes = [8, 16, 4], strides = [1, 1, 1]} : vector<10x32x4xf32> to vector<8x16x4xf32>
    %63 = vector.shape_cast %62 : vector<8x16x4xf32> to vector<128x4xf32>
    %c4 = arith.constant 4 : index
    %c0_37 = arith.constant 0 : index
    %c0_38 = arith.constant 0 : index
    %64 = vector.load %arg5[%c4, %c0_37, %c0_38] : memref<9x4x4xf32, #tpu.memory_space<vmem>>, vector<1x4x4xf32>
    %65 = vector.shape_cast %64 : vector<1x4x4xf32> to vector<4x4xf32>
    %cst_39 = arith.constant dense<0.000000e+00> : vector<128x4xf32>
    %66 = tpu.matmul %63, %65, %cst_39 {dimension_numbers = #tpu.dot_dimension_numbers<[1], [0], [0], [1], [0, 0, 1, 1], [], []>} : vector<128x4xf32>, vector<4x4xf32>, vector<128x4xf32> -> vector<128x4xf32>
    %67 = arith.addf %61, %66 : vector<128x4xf32>
    %68 = vector.extract_strided_slice %36 {offsets = [1, 9, 0], sizes = [8, 16, 4], strides = [1, 1, 1]} : vector<10x32x4xf32> to vector<8x16x4xf32>
    %69 = vector.shape_cast %68 : vector<8x16x4xf32> to vector<128x4xf32>
    %c5 = arith.constant 5 : index
    %c0_40 = arith.constant 0 : index
    %c0_41 = arith.constant 0 : index
    %70 = vector.load %arg5[%c5, %c0_40, %c0_41] : memref<9x4x4xf32, #tpu.memory_space<vmem>>, vector<1x4x4xf32>
    %71 = vector.shape_cast %70 : vector<1x4x4xf32> to vector<4x4xf32>
    %cst_42 = arith.constant dense<0.000000e+00> : vector<128x4xf32>
    %72 = tpu.matmul %69, %71, %cst_42 {dimension_numbers = #tpu.dot_dimension_numbers<[1], [0], [0], [1], [0, 0, 1, 1], [], []>} : vector<128x4xf32>, vector<4x4xf32>, vector<128x4xf32> -> vector<128x4xf32>
    %73 = arith.addf %67, %72 : vector<128x4xf32>
    %74 = vector.extract_strided_slice %36 {offsets = [2, 7, 0], sizes = [8, 16, 4], strides = [1, 1, 1]} : vector<10x32x4xf32> to vector<8x16x4xf32>
    %75 = vector.shape_cast %74 : vector<8x16x4xf32> to vector<128x4xf32>
    %c6 = arith.constant 6 : index
    %c0_43 = arith.constant 0 : index
    %c0_44 = arith.constant 0 : index
    %76 = vector.load %arg5[%c6, %c0_43, %c0_44] : memref<9x4x4xf32, #tpu.memory_space<vmem>>, vector<1x4x4xf32>
    %77 = vector.shape_cast %76 : vector<1x4x4xf32> to vector<4x4xf32>
    %cst_45 = arith.constant dense<0.000000e+00> : vector<128x4xf32>
    %78 = tpu.matmul %75, %77, %cst_45 {dimension_numbers = #tpu.dot_dimension_numbers<[1], [0], [0], [1], [0, 0, 1, 1], [], []>} : vector<128x4xf32>, vector<4x4xf32>, vector<128x4xf32> -> vector<128x4xf32>
    %79 = arith.addf %73, %78 : vector<128x4xf32>
    %80 = vector.extract_strided_slice %36 {offsets = [2, 8, 0], sizes = [8, 16, 4], strides = [1, 1, 1]} : vector<10x32x4xf32> to vector<8x16x4xf32>
    %81 = vector.shape_cast %80 : vector<8x16x4xf32> to vector<128x4xf32>
    %c7 = arith.constant 7 : index
    %c0_46 = arith.constant 0 : index
    %c0_47 = arith.constant 0 : index
    %82 = vector.load %arg5[%c7, %c0_46, %c0_47] : memref<9x4x4xf32, #tpu.memory_space<vmem>>, vector<1x4x4xf32>
    %83 = vector.shape_cast %82 : vector<1x4x4xf32> to vector<4x4xf32>
    %cst_48 = arith.constant dense<0.000000e+00> : vector<128x4xf32>
    %84 = tpu.matmul %81, %83, %cst_48 {dimension_numbers = #tpu.dot_dimension_numbers<[1], [0], [0], [1], [0, 0, 1, 1], [], []>} : vector<128x4xf32>, vector<4x4xf32>, vector<128x4xf32> -> vector<128x4xf32>
    %85 = arith.addf %79, %84 : vector<128x4xf32>
    %86 = vector.extract_strided_slice %36 {offsets = [2, 9, 0], sizes = [8, 16, 4], strides = [1, 1, 1]} : vector<10x32x4xf32> to vector<8x16x4xf32>
    %87 = vector.shape_cast %86 : vector<8x16x4xf32> to vector<128x4xf32>
    %c8 = arith.constant 8 : index
    %c0_49 = arith.constant 0 : index
    %c0_50 = arith.constant 0 : index
    %88 = vector.load %arg5[%c8, %c0_49, %c0_50] : memref<9x4x4xf32, #tpu.memory_space<vmem>>, vector<1x4x4xf32>
    %89 = vector.shape_cast %88 : vector<1x4x4xf32> to vector<4x4xf32>
    %cst_51 = arith.constant dense<0.000000e+00> : vector<128x4xf32>
    %90 = tpu.matmul %87, %89, %cst_51 {dimension_numbers = #tpu.dot_dimension_numbers<[1], [0], [0], [1], [0, 0, 1, 1], [], []>} : vector<128x4xf32>, vector<4x4xf32>, vector<128x4xf32> -> vector<128x4xf32>
    %91 = arith.addf %85, %90 : vector<128x4xf32>
    %c0_52 = arith.constant 0 : index
    %c0_53 = arith.constant 0 : index
    %92 = vector.load %arg9[%c0_52, %c0_53] : memref<1x4xf32, #tpu.memory_space<vmem>>, vector<1x4xf32>
    %93 = vector.broadcast %92 : vector<1x4xf32> to vector<128x4xf32>
    %94 = arith.mulf %91, %93 : vector<128x4xf32>
    %c0_54 = arith.constant 0 : index
    %c0_55 = arith.constant 0 : index
    %95 = vector.load %arg10[%c0_54, %c0_55] : memref<1x4xf32, #tpu.memory_space<vmem>>, vector<1x4xf32>
    %96 = vector.broadcast %95 : vector<1x4xf32> to vector<128x4xf32>
    %97 = arith.addf %94, %96 : vector<128x4xf32>
    %cst_56 = arith.constant 0.000000e+00 : f32
    %98 = vector.broadcast %cst_56 : f32 to vector<128x4xf32>
    %99 = arith.maximumf %97, %98 : vector<128x4xf32>
    %c0_57 = arith.constant 0 : index
    %c0_58 = arith.constant 0 : index
    %100 = vector.load %arg6[%c0_57, %c0_58] : memref<4x16xf32, #tpu.memory_space<vmem>>, vector<4x16xf32>
    %cst_59 = arith.constant dense<0.000000e+00> : vector<128x16xf32>
    %101 = tpu.matmul %99, %100, %cst_59 {dimension_numbers = #tpu.dot_dimension_numbers<[1], [0], [0], [1], [0, 0, 1, 1], [], []>} : vector<128x4xf32>, vector<4x16xf32>, vector<128x16xf32> -> vector<128x16xf32>
    %c0_60 = arith.constant 0 : index
    %c0_61 = arith.constant 0 : index
    %102 = vector.load %arg11[%c0_60, %c0_61] : memref<1x16xf32, #tpu.memory_space<vmem>>, vector<1x16xf32>
    %103 = vector.broadcast %102 : vector<1x16xf32> to vector<128x16xf32>
    %104 = arith.mulf %101, %103 : vector<128x16xf32>
    %c0_62 = arith.constant 0 : index
    %c0_63 = arith.constant 0 : index
    %105 = vector.load %arg12[%c0_62, %c0_63] : memref<1x16xf32, #tpu.memory_space<vmem>>, vector<1x16xf32>
    %106 = vector.broadcast %105 : vector<1x16xf32> to vector<128x16xf32>
    %107 = arith.addf %104, %106 : vector<128x16xf32>
    %108 = arith.addf %107, %3 : vector<128x16xf32>
    %cst_64 = arith.constant 0.000000e+00 : f32
    %109 = vector.broadcast %cst_64 : f32 to vector<128x16xf32>
    %110 = arith.maximumf %108, %109 : vector<128x16xf32>
    %111 = vector.shape_cast %110 : vector<128x16xf32> to vector<1x8x16x16xf32>
    %c0_65 = arith.constant 0 : index
    %c0_66 = arith.constant 0 : index
    %c0_67 = arith.constant 0 : index
    %c0_68 = arith.constant 0 : index
    %112 = vector.load %arg13[%c0_65, %c0_66, %c0_67, %c0_68] : memref<1x8x16x16xf32, #tpu.memory_space<vmem>>, vector<1x8x16x16xf32>
    tpu.vector_store %arg13[%c0_65, %c0_66, %c0_67, %c0_68], %111 {strides = array<i32>} : memref<1x8x16x16xf32, #tpu.memory_space<vmem>>, vector<1x8x16x16xf32>,
    return
  }
  func.func @transform_0(%arg0: i32, %arg1: i32) -> (i32, i32, i32, i32) {
    %c0_i32 = arith.constant 0 : i32
    %c0_i32_0 = arith.constant 0 : i32
    %c0_i32_1 = arith.constant 0 : i32
    return %arg0, %arg1, %c0_i32, %c0_i32_0 : i32, i32, i32, i32
  }
  func.func @transform_1(%arg0: i32, %arg1: i32) -> (i32, i32, i32, i32) {
    %c0_i32 = arith.constant 0 : i32
    %c0_i32_0 = arith.constant 0 : i32
    %c0_i32_1 = arith.constant 0 : i32
    return %arg0, %arg1, %c0_i32, %c0_i32_0 : i32, i32, i32, i32
  }
  func.func @transform_2(%arg0: i32, %arg1: i32) -> (i32, i32) {
    %c0_i32 = arith.constant 0 : i32
    %c0_i32_0 = arith.constant 0 : i32
    %c0_i32_1 = arith.constant 0 : i32
    return %c0_i32, %c0_i32_0 : i32, i32
  }
  func.func @transform_3(%arg0: i32, %arg1: i32) -> (i32, i32, i32) {
    %c0_i32 = arith.constant 0 : i32
    %c0_i32_0 = arith.constant 0 : i32
    %c0_i32_1 = arith.constant 0 : i32
    %c0_i32_2 = arith.constant 0 : i32
    return %c0_i32, %c0_i32_0, %c0_i32_1 : i32, i32, i32
  }
  func.func @transform_4(%arg0: i32, %arg1: i32) -> (i32, i32) {
    %c0_i32 = arith.constant 0 : i32
    %c0_i32_0 = arith.constant 0 : i32
    %c0_i32_1 = arith.constant 0 : i32
    return %c0_i32, %c0_i32_0 : i32, i32
  }
  func.func @transform_5(%arg0: i32, %arg1: i32) -> (i32, i32) {
    %c0_i32 = arith.constant 0 : i32
    %c0_i32_0 = arith.constant 0 : i32
    %c0_i32_1 = arith.constant 0 : i32
    return %c0_i32, %c0_i32_0 : i32, i32
  }
  func.func @transform_6(%arg0: i32, %arg1: i32) -> (i32, i32) {
    %c0_i32 = arith.constant 0 : i32
    %c0_i32_0 = arith.constant 0 : i32
    %c0_i32_1 = arith.constant 0 : i32
    return %c0_i32, %c0_i32_0 : i32, i32
  }
  func.func @transform_7(%arg0: i32, %arg1: i32) -> (i32, i32) {
    %c0_i32 = arith.constant 0 : i32
    %c0_i32_0 = arith.constant 0 : i32
    %c0_i32_1 = arith.constant 0 : i32
    return %c0_i32, %c0_i32_0 : i32, i32
  }
  func.func @transform_8(%arg0: i32, %arg1: i32) -> (i32, i32) {
    %c0_i32 = arith.constant 0 : i32
    %c0_i32_0 = arith.constant 0 : i32
    %c0_i32_1 = arith.constant 0 : i32
    return %c0_i32, %c0_i32_0 : i32, i32
  }
  func.func @transform_9(%arg0: i32, %arg1: i32) -> (i32, i32) {
    %c0_i32 = arith.constant 0 : i32
    %c0_i32_0 = arith.constant 0 : i32
    %c0_i32_1 = arith.constant 0 : i32
    return %c0_i32, %c0_i32_0 : i32, i32
  }
  func.func @transform_10(%arg0: i32, %arg1: i32) -> (i32, i32) {
    %c0_i32 = arith.constant 0 : i32
    %c0_i32_0 = arith.constant 0 : i32
    %c0_i32_1 = arith.constant 0 : i32
    return %c0_i32, %c0_i32_0 : i32, i32
  }
  func.func @transform_11(%arg0: i32, %arg1: i32) -> (i32, i32, i32, i32) {
    %c0_i32 = arith.constant 0 : i32
    %c0_i32_0 = arith.constant 0 : i32
    %c0_i32_1 = arith.constant 0 : i32
    return %arg0, %arg1, %c0_i32, %c0_i32_0 : i32, i32, i32, i32
  }
}

</mosaic_0001>

<llo_original>
// kernel: bottleneck_forward.1
$region0: #{bottleneck_forward.1}
  #allocation0 [shape = 'u32[]', space=smem, size = 0x4, offset = 0x4, fixed_abs, tag = 'smem constant byte address 0x4 - core index']
  #allocation1 [shape = 'u32[144,128]{1,0:T(1,128)}', space=vmem, size = 0x12000, scoped, tag = 'internal scratch']
  %s0 = inlined_call_operand.vmem [shape: f32[2,16,16,16], index: 0, kind: input, shape index: {}]
  %s1 = inlined_call_operand.vmem [shape: f32[2,4,16,16], index: 1, kind: input, shape index: {}]
  %s2 = inlined_call_operand.vmem [shape: f32[16,4], index: 2, kind: input, shape index: {}]
  %s3 = inlined_call_operand.vmem [shape: f32[9,4,4], index: 3, kind: input, shape index: {}]
  %s4 = inlined_call_operand.vmem [shape: f32[4,16], index: 4, kind: input, shape index: {}]
  %s5 = inlined_call_operand.vmem [shape: f32[1,4], index: 5, kind: input, shape index: {}]
  %s6 = inlined_call_operand.vmem [shape: f32[1,4], index: 6, kind: input, shape index: {}]
  %s7 = inlined_call_operand.vmem [shape: f32[1,4], index: 7, kind: input, shape index: {}]
  %s8 = inlined_call_operand.vmem [shape: f32[1,4], index: 8, kind: input, shape index: {}]
  %s9 = inlined_call_operand.vmem [shape: f32[1,16], index: 9, kind: input, shape index: {}]
  %s10 = inlined_call_operand.vmem [shape: f32[1,16], index: 10, kind: input, shape index: {}]
  %s11 = inlined_call_operand.vmem [shape: f32[2,16,16,16], index: 11, kind: output, shape index: {}]
  %s12 = sld [smem:[#allocation0]]
  $region77: #{bottleneck_forward.1} parent=0
    _
  %s14 = ssub.s32 1, %s12
  %s15 = scalar_select 0, %s14, %s12
  loop: start=0, step=1, limit=6
  $region2: #{bottleneck_forward.1} parent=0 // loop_pre_header
    _
  $region3: #{bottleneck_forward.1} parent=0 // loop_header
    %s17 = sphi 0, %s21
    %p18 = scmp.ge.s32.totalorder %s17, 6
    %s24 = sphi 0, %s36
    %s25 = sphi 0, %s32
    %s26 = sphi 0, %s24
    %s27 = sphi 0, %s25
    %s28 = sphi 0, %s26
    %s29 = sphi 0, %s27
    %s41 = sphi 0, %s43
    %s44 = sphi 0, %s41
    %s45 = sphi 0, %s44
    %s61 = sphi 0, %s45
    %s69 = sphi 0, %s71
    %s72 = sphi 0, %s69
    %s73 = sphi 0, %s72
    %s89 = sphi 0, %s73
    %s93 = sphi 0, %s93
    %s95 = sphi 0, %s93
    %s96 = sphi 0, %s95
    %s110 = sphi 0, %s96
    %s114 = sphi 0, %s114
    %s116 = sphi 0, %s114
    %s117 = sphi 0, %s116
    %s131 = sphi 0, %s117
    %s135 = sphi 0, %s135
    %s137 = sphi 0, %s135
    %s138 = sphi 0, %s137
    %s152 = sphi 0, %s138
    %s156 = sphi 0, %s156
    %s158 = sphi 0, %s156
    %s159 = sphi 0, %s158
    %s173 = sphi 0, %s159
    %s177 = sphi 0, %s177
    %s179 = sphi 0, %s177
    %s180 = sphi 0, %s179
    %s194 = sphi 0, %s180
    %s198 = sphi 0, %s198
    %s200 = sphi 0, %s198
    %s201 = sphi 0, %s200
    %s215 = sphi 0, %s201
    %s219 = sphi 0, %s219
    %s221 = sphi 0, %s219
    %s222 = sphi 0, %s221
    %s236 = sphi 0, %s222
    %s240 = sphi 0, %s240
    %s242 = sphi 0, %s240
    %s243 = sphi 0, %s242
    %s257 = sphi 0, %s243
    %s261 = sphi 0, %s261
    %s263 = sphi 0, %s261
    %s264 = sphi 0, %s263
    %s278 = sphi 0, %s264
    %s286 = sphi 0, %s288
    %s289 = sphi 0, %s286
    %s290 = sphi 0, %s289
    %s306 = sphi 0, %s290
  $region4: #{bottleneck_forward.1} parent=0 // loop_header_branch
    %20 = sbr.rel (%p18) target = $region8
  $region5: #{bottleneck_forward.1} parent=0 // loop_body
    %s22 = ssub.s32 %s17, 1
    %s23 = ssub.s32 %s17, 2
    %s30 = sadd.s32 1, %s25
    %p31 = scmp.ge.s32.totalorder %s30, 2
    %s32 = scalar_select %p31, 0, %s30
    %s33 = sadd.s32 1, %s24
    %s34 = scalar_select %p31, %s33, %s24
    %p35 = scmp.ge.s32.totalorder %s34, 2
    %s36 = scalar_select %p35, 0, %s34
    %s37 = ssub.s32 %s24, %s36
    %s38 = ssub.s32 %s25, %s32
    %s39 = sor.u32 %s37, %s38
    %p40 = scmp.eq.s32.totalorder %s39, 0
    %s42 = sadd.s32 %s41, 1
    %s43 = scalar_select %p40, %s41, %s42
    %p46 = pneg %p40
    %p47 = scmp.eq.s32.totalorder %s17, 3
    %p48 = por %p46, %p47
    %p49 = scmp.ne.s32.totalorder %s41, %s44
    %p50 = scmp.eq.s32.totalorder %s17, 0
    %p51 = por %p49, %p50
    %p52 = scmp.ne.s32.totalorder %s41, %s44
    %p53 = scmp.eq.s32.totalorder %s22, 3
    %p54 = por %p52, %p53
    %p55 = scmp.ne.s32.totalorder %s44, %s45
    %p56 = scmp.eq.s32.totalorder %s22, 0
    %p57 = por %p55, %p56
    %p58 = scmp.ne.s32.totalorder %s44, %s45
    %p59 = scmp.eq.s32.totalorder %s23, 3
    %p60 = por %p58, %p59
    %p62 = scmp.ne.s32.totalorder %s45, %s61
    %p63 = scmp.eq.s32.totalorder %s23, 0
    %p64 = por %p62, %p63
    %s65 = ssub.s32 %s24, %s36
    %s66 = ssub.s32 %s25, %s32
    %s67 = sor.u32 %s65, %s66
    %p68 = scmp.eq.s32.totalorder %s67, 0
    %s70 = sadd.s32 %s69, 1
    %s71 = scalar_select %p68, %s69, %s70
    %p74 = pneg %p68
    %p75 = scmp.eq.s32.totalorder %s17, 3
    %p76 = por %p74, %p75
    %p77 = scmp.ne.s32.totalorder %s69, %s72
    %p78 = scmp.eq.s32.totalorder %s17, 0
    %p79 = por %p77, %p78
    %p80 = scmp.ne.s32.totalorder %s69, %s72
    %p81 = scmp.eq.s32.totalorder %s22, 3
    %p82 = por %p80, %p81
    %p83 = scmp.ne.s32.totalorder %s72, %s73
    %p84 = scmp.eq.s32.totalorder %s22, 0
    %p85 = por %p83, %p84
    %p86 = scmp.ne.s32.totalorder %s72, %s73
    %p87 = scmp.eq.s32.totalorder %s23, 3
    %p88 = por %p86, %p87
    %p90 = scmp.ne.s32.totalorder %s73, %s89
    %p91 = scmp.eq.s32.totalorder %s23, 0
    %p92 = por %p90, %p91
    %s94 = sadd.s32 %s93, 1
    %p97 = scmp.eq.s32.totalorder %s17, 3
    %p98 = scmp.ne.s32.totalorder %s93, %s95
    %p99 = scmp.eq.s32.totalorder %s17, 0
    %p100 = por %p98, %p99
    %p101 = scmp.ne.s32.totalorder %s93, %s95
    %p102 = scmp.eq.s32.totalorder %s22, 3
    %p103 = por %p101, %p102
    %p104 = scmp.ne.s32.totalorder %s95, %s96
    %p105 = scmp.eq.s32.totalorder %s22, 0
    %p106 = por %p104, %p105
    %p107 = scmp.ne.s32.totalorder %s95, %s96
    %p108 = scmp.eq.s32.totalorder %s23, 3
    %p109 = por %p107, %p108
    %p111 = scmp.ne.s32.totalorder %s96, %s110
    %p112 = scmp.eq.s32.totalorder %s23, 0
    %p113 = por %p111, %p112
    %s115 = sadd.s32 %s114, 1
    %p118 = scmp.eq.s32.totalorder %s17, 3
    %p119 = scmp.ne.s32.totalorder %s114, %s116
    %p120 = scmp.eq.s32.totalorder %s17, 0
    %p121 = por %p119, %p120
    %p122 = scmp.ne.s32.totalorder %s114, %s116
    %p123 = scmp.eq.s32.totalorder %s22, 3
    %p124 = por %p122, %p123
    %p125 = scmp.ne.s32.totalorder %s116, %s117
    %p126 = scmp.eq.s32.totalorder %s22, 0
    %p127 = por %p125, %p126
    %p128 = scmp.ne.s32.totalorder %s116, %s117
    %p129 = scmp.eq.s32.totalorder %s23, 3
    %p130 = por %p128, %p129
    %p132 = scmp.ne.s32.totalorder %s117, %s131
    %p133 = scmp.eq.s32.totalorder %s23, 0
    %p134 = por %p132, %p133
    %s136 = sadd.s32 %s135, 1
    %p139 = scmp.eq.s32.totalorder %s17, 3
    %p140 = scmp.ne.s32.totalorder %s135, %s137
    %p141 = scmp.eq.s32.totalorder %s17, 0
    %p142 = por %p140, %p141
    %p143 = scmp.ne.s32.totalorder %s135, %s137
    %p144 = scmp.eq.s32.totalorder %s22, 3
    %p145 = por %p143, %p144
    %p146 = scmp.ne.s32.totalorder %s137, %s138
    %p147 = scmp.eq.s32.totalorder %s22, 0
    %p148 = por %p146, %p147
    %p149 = scmp.ne.s32.totalorder %s137, %s138
    %p150 = scmp.eq.s32.totalorder %s23, 3
    %p151 = por %p149, %p150
    %p153 = scmp.ne.s32.totalorder %s138, %s152
    %p154 = scmp.eq.s32.totalorder %s23, 0
    %p155 = por %p153, %p154
    %s157 = sadd.s32 %s156, 1
    %p160 = scmp.eq.s32.totalorder %s17, 3
    %p161 = scmp.ne.s32.totalorder %s156, %s158
    %p162 = scmp.eq.s32.totalorder %s17, 0
    %p163 = por %p161, %p162
    %p164 = scmp.ne.s32.totalorder %s156, %s158
    %p165 = scmp.eq.s32.totalorder %s22, 3
    %p166 = por %p164, %p165
    %p167 = scmp.ne.s32.totalorder %s158, %s159
    %p168 = scmp.eq.s32.totalorder %s22, 0
    %p169 = por %p167, %p168
    %p170 = scmp.ne.s32.totalorder %s158, %s159
    %p171 = scmp.eq.s32.totalorder %s23, 3
    %p172 = por %p170, %p171
    %p174 = scmp.ne.s32.totalorder %s159, %s173
    %p175 = scmp.eq.s32.totalorder %s23, 0
    %p176 = por %p174, %p175
    %s178 = sadd.s32 %s177, 1
    %p181 = scmp.eq.s32.totalorder %s17, 3
    %p182 = scmp.ne.s32.totalorder %s177, %s179
    %p183 = scmp.eq.s32.totalorder %s17, 0
    %p184 = por %p182, %p183
    %p185 = scmp.ne.s32.totalorder %s177, %s179
    %p186 = scmp.eq.s32.totalorder %s22, 3
    %p187 = por %p185, %p186
    %p188 = scmp.ne.s32.totalorder %s179, %s180
    %p189 = scmp.eq.s32.totalorder %s22, 0
    %p190 = por %p188, %p189
    %p191 = scmp.ne.s32.totalorder %s179, %s180
    %p192 = scmp.eq.s32.totalorder %s23, 3
    %p193 = por %p191, %p192
    %p195 = scmp.ne.s32.totalorder %s180, %s194
    %p196 = scmp.eq.s32.totalorder %s23, 0
    %p197 = por %p195, %p196
    %s199 = sadd.s32 %s198, 1
    %p202 = scmp.eq.s32.totalorder %s17, 3
    %p203 = scmp.ne.s32.totalorder %s198, %s200
    %p204 = scmp.eq.s32.totalorder %s17, 0
    %p205 = por %p203, %p204
    %p206 = scmp.ne.s32.totalorder %s198, %s200
    %p207 = scmp.eq.s32.totalorder %s22, 3
    %p208 = por %p206, %p207
    %p209 = scmp.ne.s32.totalorder %s200, %s201
    %p210 = scmp.eq.s32.totalorder %s22, 0
    %p211 = por %p209, %p210
    %p212 = scmp.ne.s32.totalorder %s200, %s201
    %p213 = scmp.eq.s32.totalorder %s23, 3
    %p214 = por %p212, %p213
    %p216 = scmp.ne.s32.totalorder %s201, %s215
    %p217 = scmp.eq.s32.totalorder %s23, 0
    %p218 = por %p216, %p217
    %s220 = sadd.s32 %s219, 1
    %p223 = scmp.eq.s32.totalorder %s17, 3
    %p224 = scmp.ne.s32.totalorder %s219, %s221
    %p225 = scmp.eq.s32.totalorder %s17, 0
    %p226 = por %p224, %p225
    %p227 = scmp.ne.s32.totalorder %s219, %s221
    %p228 = scmp.eq.s32.totalorder %s22, 3
    %p229 = por %p227, %p228
    %p230 = scmp.ne.s32.totalorder %s221, %s222
    %p231 = scmp.eq.s32.totalorder %s22, 0
    %p232 = por %p230, %p231
    %p233 = scmp.ne.s32.totalorder %s221, %s222
    %p234 = scmp.eq.s32.totalorder %s23, 3
    %p235 = por %p233, %p234
    %p237 = scmp.ne.s32.totalorder %s222, %s236
    %p238 = scmp.eq.s32.totalorder %s23, 0
    %p239 = por %p237, %p238
    %s241 = sadd.s32 %s240, 1
    %p244 = scmp.eq.s32.totalorder %s17, 3
    %p245 = scmp.ne.s32.totalorder %s240, %s242
    %p246 = scmp.eq.s32.totalorder %s17, 0
    %p247 = por %p245, %p246
    %p248 = scmp.ne.s32.totalorder %s240, %s242
    %p249 = scmp.eq.s32.totalorder %s22, 3
    %p250 = por %p248, %p249
    %p251 = scmp.ne.s32.totalorder %s242, %s243
    %p252 = scmp.eq.s32.totalorder %s22, 0
    %p253 = por %p251, %p252
    %p254 = scmp.ne.s32.totalorder %s242, %s243
    %p255 = scmp.eq.s32.totalorder %s23, 3
    %p256 = por %p254, %p255
    %p258 = scmp.ne.s32.totalorder %s243, %s257
    %p259 = scmp.eq.s32.totalorder %s23, 0
    %p260 = por %p258, %p259
    %s262 = sadd.s32 %s261, 1
    %p265 = scmp.eq.s32.totalorder %s17, 3
    %p266 = scmp.ne.s32.totalorder %s261, %s263
    %p267 = scmp.eq.s32.totalorder %s17, 0
    %p268 = por %p266, %p267
    %p269 = scmp.ne.s32.totalorder %s261, %s263
    %p270 = scmp.eq.s32.totalorder %s22, 3
    %p271 = por %p269, %p270
    %p272 = scmp.ne.s32.totalorder %s263, %s264
    %p273 = scmp.eq.s32.totalorder %s22, 0
    %p274 = por %p272, %p273
    %p275 = scmp.ne.s32.totalorder %s263, %s264
    %p276 = scmp.eq.s32.totalorder %s23, 3
    %p277 = por %p275, %p276
    %p279 = scmp.ne.s32.totalorder %s264, %s278
    %p280 = scmp.eq.s32.totalorder %s23, 0
    %p281 = por %p279, %p280
    %s282 = ssub.s32 %s24, %s36
    %s283 = ssub.s32 %s25, %s32
    %s284 = sor.u32 %s282, %s283
    %p285 = scmp.eq.s32.totalorder %s284, 0
    %s287 = sadd.s32 %s286, 1
    %s288 = scalar_select %p285, %s286, %s287
    %p291 = pneg %p285
    %p292 = scmp.eq.s32.totalorder %s17, 3
    %p293 = por %p291, %p292
    %p294 = scmp.ne.s32.totalorder %s286, %s289
    %p295 = scmp.eq.s32.totalorder %s17, 0
    %p296 = por %p294, %p295
    %p297 = scmp.ne.s32.totalorder %s286, %s289
    %p298 = scmp.eq.s32.totalorder %s22, 3
    %p299 = por %p297, %p298
    %p300 = scmp.ne.s32.totalorder %s289, %s290
    %p301 = scmp.eq.s32.totalorder %s22, 0
    %p302 = por %p300, %p301
    %p303 = scmp.ne.s32.totalorder %s289, %s290
    %p304 = scmp.eq.s32.totalorder %s23, 3
    %p305 = por %p303, %p304
    %p307 = scmp.ne.s32.totalorder %s290, %s306
    %p308 = scmp.eq.s32.totalorder %s23, 0
    %p309 = por %p307, %p308
    %p310 = scmp.le.s32.totalorder 1, %s17
    %p311 = scmp.lt.s32.totalorder %s17, 5
    %p312 = pnand %p310, %p311
    %p313 = pneg %p312
    // Predicated region
    $region9: #{bottleneck_forward.1} parent=5 // pred_check
      _
    $region10: #{bottleneck_forward.1} parent=5 // pred_check_branch
      %315 = sbr.rel (%p312) target = $region12
    $region11: #{bottleneck_forward.1} parent=5 // pred_region
      %s316 = ssub.s32 %s17, 1
      // Predicated region
      $region13: #{bottleneck_forward.1} parent=11 // pred_check
        %p317 = pneg %p106
      $region14: #{bottleneck_forward.1} parent=11 // pred_check_branch
        %319 = sbr.rel (%p317) target = $region16
      $region15: #{bottleneck_forward.1} parent=11 // pred_region
        _
      $region16: #{bottleneck_forward.1} parent=11 // pred_fallthru
        _
      // Predicated region
      $region17: #{bottleneck_forward.1} parent=11 // pred_check
        %p320 = pneg %p127
      $region18: #{bottleneck_forward.1} parent=11 // pred_check_branch
        %322 = sbr.rel (%p320) target = $region20
      $region19: #{bottleneck_forward.1} parent=11 // pred_region
        _
      $region20: #{bottleneck_forward.1} parent=11 // pred_fallthru
        _
      // Predicated region
      $region21: #{bottleneck_forward.1} parent=11 // pred_check
        %p323 = pneg %p148
      $region22: #{bottleneck_forward.1} parent=11 // pred_check_branch
        %325 = sbr.rel (%p323) target = $region24
      $region23: #{bottleneck_forward.1} parent=11 // pred_region
        _
      $region24: #{bottleneck_forward.1} parent=11 // pred_fallthru
        _
      // Predicated region
      $region25: #{bottleneck_forward.1} parent=11 // pred_check
        %p326 = pneg %p169
      $region26: #{bottleneck_forward.1} parent=11 // pred_check_branch
        %328 = sbr.rel (%p326) target = $region28
      $region27: #{bottleneck_forward.1} parent=11 // pred_region
        _
      $region28: #{bottleneck_forward.1} parent=11 // pred_fallthru
        _
      // Predicated region
      $region29: #{bottleneck_forward.1} parent=11 // pred_check
        %p329 = pneg %p190
      $region30: #{bottleneck_forward.1} parent=11 // pred_check_branch
        %331 = sbr.rel (%p329) target = $region32
      $region31: #{bottleneck_forward.1} parent=11 // pred_region
        _
      $region32: #{bottleneck_forward.1} parent=11 // pred_fallthru
        _
      // Predicated region
      $region33: #{bottleneck_forward.1} parent=11 // pred_check
        %p332 = pneg %p211
      $region34: #{bottleneck_forward.1} parent=11 // pred_check_branch
        %334 = sbr.rel (%p332) target = $region36
      $region35: #{bottleneck_forward.1} parent=11 // pred_region
        _
      $region36: #{bottleneck_forward.1} parent=11 // pred_fallthru
        _
      // Predicated region
      $region37: #{bottleneck_forward.1} parent=11 // pred_check
        %p335 = pneg %p232
      $region38: #{bottleneck_forward.1} parent=11 // pred_check_branch
        %337 = sbr.rel (%p335) target = $region40
      $region39: #{bottleneck_forward.1} parent=11 // pred_region
        _
      $region40: #{bottleneck_forward.1} parent=11 // pred_fallthru
        _
      // Predicated region
      $region41: #{bottleneck_forward.1} parent=11 // pred_check
        %p338 = pneg %p253
      $region42: #{bottleneck_forward.1} parent=11 // pred_check_branch
        %340 = sbr.rel (%p338) target = $region44
      $region43: #{bottleneck_forward.1} parent=11 // pred_region
        _
      $region44: #{bottleneck_forward.1} parent=11 // pred_fallthru
        _
      // Predicated region
      $region45: #{bottleneck_forward.1} parent=11 // pred_check
        %p341 = pneg %p274
      $region46: #{bottleneck_forward.1} parent=11 // pred_check_branch
        %343 = sbr.rel (%p341) target = $region48
      $region47: #{bottleneck_forward.1} parent=11 // pred_region
        _
      $region48: #{bottleneck_forward.1} parent=11 // pred_fallthru
        _
    $region12: #{bottleneck_forward.1} parent=5 // pred_fallthru
      _
    %p344 = scmp.lt.s32.totalorder %s17, 4
    // Predicated region
    $region49: #{bottleneck_forward.1} parent=5 // pred_check
      %p345 = pneg %p344
    $region50: #{bottleneck_forward.1} parent=5 // pred_check_branch
      %347 = sbr.rel (%p345) target = $region52
    $region51: #{bottleneck_forward.1} parent=5 // pred_region
      // Predicated region
      $region53: #{bottleneck_forward.1} parent=51 // pred_check
        %p348 = pneg %p51
      $region54: #{bottleneck_forward.1} parent=51 // pred_check_branch
        %350 = sbr.rel (%p348) target = $region56
      $region55: #{bottleneck_forward.1} parent=51 // pred_region
        %s351 = smul.u32 8, %s25
        %p352 = scmp.lt.s32.totalorder %s24, 1
        %s353 = scalar_select %p352, %s24, 1
        %p354 = scmp.lt.s32.totalorder %s351, 15
        %s355 = scalar_select %p354, %s351, 15
        %s356 = smul.addr %s355, 2
        %s357 = smul.addr %s353, 32
        %s358 = sadd.s32 %s356, %s357
        %s359 = smul.addr %s358, 8
        %s360 = scalar_lea.vmem %s0, %s359
        %s361 = smul.u32 8, %s25
      $region56: #{bottleneck_forward.1} parent=51 // pred_fallthru
        _
      // Predicated region
      $region57: #{bottleneck_forward.1} parent=51 // pred_check
        %p362 = pneg %p79
      $region58: #{bottleneck_forward.1} parent=51 // pred_check_branch
        %364 = sbr.rel (%p362) target = $region60
      $region59: #{bottleneck_forward.1} parent=51 // pred_region
        %s365 = smul.u32 2, %s25
        %p366 = scmp.lt.s32.totalorder %s24, 1
        %s367 = scalar_select %p366, %s24, 1
        %p368 = scmp.lt.s32.totalorder %s365, 3
        %s369 = scalar_select %p368, %s365, 3
        %s370 = smul.addr %s369, 2
        %s371 = smul.addr %s367, 8
        %s372 = sadd.s32 %s370, %s371
        %s373 = smul.addr %s372, 8
        %s374 = scalar_lea.vmem %s1, %s373
        %s375 = smul.u32 2, %s25
      $region60: #{bottleneck_forward.1} parent=51 // pred_fallthru
        _
    $region52: #{bottleneck_forward.1} parent=5 // pred_fallthru
      _
    %p376 = scmp.le.s32.totalorder 1, %s17
    %p377 = scmp.lt.s32.totalorder %s17, 5
    %p378 = pnand %p376, %p377
    %p379 = pneg %p378
    // Predicated region
    $region61: #{bottleneck_forward.1} parent=5 // pred_check
      _
    $region62: #{bottleneck_forward.1} parent=5 // pred_check_branch
      %381 = sbr.rel (%p378) target = $region64
    $region63: #{bottleneck_forward.1} parent=5 // pred_region
      %s382 = ssub.s32 %s17, 1
      %s383 = smul.u32 8, %s27
      %p384 = scmp.lt.s32.totalorder %s26, 1
      %s385 = scalar_select %p384, %s26, 1
      %p386 = scmp.lt.s32.totalorder %s383, 15
      %s387 = scalar_select %p386, %s383, 15
      %s388 = smul.addr %s387, 2
      %s389 = smul.addr %s385, 32
      %s390 = sadd.s32 %s388, %s389
      %s391 = smul.addr %s390, 8
      %s392 = scalar_lea.vmem %s0, %s391
      %p393 = pneg %p57
      %p394 = pneg %p54
      %s395 = smul.u32 2, %s27
      %p396 = scmp.lt.s32.totalorder %s26, 1
      %s397 = scalar_select %p396, %s26, 1
      %p398 = scmp.lt.s32.totalorder %s395, 3
      %s399 = scalar_select %p398, %s395, 3
      %s400 = smul.addr %s399, 2
      %s401 = smul.addr %s397, 8
      %s402 = sadd.s32 %s400, %s401
      %s403 = smul.addr %s402, 8
      %s404 = scalar_lea.vmem %s1, %s403
      %p405 = pneg %p85
      %p406 = pneg %p82
      %p407 = pneg %p106
      %p408 = pneg %p103
      %p409 = pneg %p127
      %p410 = pneg %p124
      %p411 = pneg %p148
      %p412 = pneg %p145
      %p413 = pneg %p169
      %p414 = pneg %p166
      %p415 = pneg %p190
      %p416 = pneg %p187
      %p417 = pneg %p211
      %p418 = pneg %p208
      %p419 = pneg %p232
      %p420 = pneg %p229
      %p421 = pneg %p253
      %p422 = pneg %p250
      %p423 = pneg %p274
      %p424 = pneg %p271
      %p425 = pneg %p302
      %p426 = pneg %p299
      %s427 = smul.u32 8, %s27
      %p428 = scmp.lt.s32.totalorder %s26, 1
      %s429 = scalar_select %p428, %s26, 1
      %p430 = scmp.lt.s32.totalorder %s427, 15
      %s431 = scalar_select %p430, %s427, 15
      %s432 = smul.addr %s431, 2
      %s433 = smul.addr %s429, 32
      %s434 = sadd.s32 %s432, %s433
      %s435 = smul.addr %s434, 8
      %s436 = scalar_lea.vmem %s11, %s435
      %s437 = smul.u32 8, %s27
      %p438 = scmp.lt.s32.totalorder %s26, 1
      %s439 = scalar_select %p438, %s26, 1
      %p440 = scmp.lt.s32.totalorder %s437, 15
      %s441 = scalar_select %p440, %s437, 15
      %s442 = smul.addr %s441, 2
      %s443 = smul.addr %s439, 32
      %s444 = sadd.s32 %s442, %s443
      %s445 = smul.addr %s444, 8
      %s446 = scalar_lea.vmem %s0, %s445
      %s447 = smul.u32 8, %s27
      %s448 = smul.u32 2, %s27
      %p449 = scmp.lt.s32.totalorder %s26, 1
      %s450 = scalar_select %p449, %s26, 1
      %p451 = scmp.lt.s32.totalorder %s448, 3
      %s452 = scalar_select %p451, %s448, 3
      %s453 = smul.addr %s452, 2
      %s454 = smul.addr %s450, 8
      %s455 = sadd.s32 %s453, %s454
      %s456 = smul.addr %s455, 8
      %s457 = scalar_lea.vmem %s1, %s456
      %s458 = smul.u32 2, %s27
      %s459 = smul.u32 8, %s27
      %p460 = scmp.lt.s32.totalorder %s26, 1
      %s461 = scalar_select %p460, %s26, 1
      %p462 = scmp.lt.s32.totalorder %s459, 15
      %s463 = scalar_select %p462, %s459, 15
      %s464 = smul.addr %s463, 2
      %s465 = smul.addr %s461, 32
      %s466 = sadd.s32 %s464, %s465
      %s467 = smul.addr %s466, 8
      %s468 = scalar_lea.vmem %s11, %s467
      %s469 = smul.u32 8, %s27
      %v470 = vld [vmem:[%s5] sm:$0x1]
      %v471 = vld [vmem:[%s6] sm:$0x1]
      %v472 = vld [vmem:[%s446] sm:$0xff]
      %v473 = vld [vmem:[%s446 + $0x8] sm:$0xff]
      %v474 = vld [vmem:[%s446 + $0x10] sm:$0xff]
      %v475 = vld [vmem:[%s446 + $0x18] sm:$0xff]
      %v476 = vld [vmem:[%s446 + $0x20] sm:$0xff]
      %v477 = vld [vmem:[%s446 + $0x28] sm:$0xff]
      %v478 = vld [vmem:[%s446 + $0x30] sm:$0xff]
      %v479 = vld [vmem:[%s446 + $0x38] sm:$0xff]
      %v480 = vld [vmem:[%s446 + $0x40] sm:$0xff]
      %v481 = vld [vmem:[%s446 + $0x48] sm:$0xff]
      %v482 = vld [vmem:[%s446 + $0x50] sm:$0xff]
      %v483 = vld [vmem:[%s446 + $0x58] sm:$0xff]
      %v484 = vld [vmem:[%s446 + $0x60] sm:$0xff]
      %v485 = vld [vmem:[%s446 + $0x68] sm:$0xff]
      %v486 = vld [vmem:[%s446 + $0x70] sm:$0xff]
      %v487 = vld [vmem:[%s446 + $0x78] sm:$0xff]
      %v488 = vld [vmem:[%s2] sm:$0xff]
      %v489 = vld [vmem:[%s2 + $0x8] sm:$0xff]
      %vm490 = vcmask 130048
      %v492 = vsel %vm490, %v472, 0
      %v495 = vsel %vm490, %v473, 0
      %v498 = vsel %vm490, %v474, 0
      %v501 = vsel %vm490, %v475, 0
      %v504 = vsel %vm490, %v476, 0
      %v507 = vsel %vm490, %v477, 0
      %v510 = vsel %vm490, %v478, 0
      %v513 = vsel %vm490, %v479, 0
      %v516 = vsel %vm490, %v480, 0
      %v519 = vsel %vm490, %v481, 0
      %v522 = vsel %vm490, %v482, 0
      %v525 = vsel %vm490, %v483, 0
      %v528 = vsel %vm490, %v484, 0
      %v531 = vsel %vm490, %v485, 0
      %v534 = vsel %vm490, %v486, 0
      %v537 = vsel %vm490, %v487, 0
      %539 = vmatprep.subr.mxu0 0.0
      %540 = vmatpush1.msra.mxu0 %v488
      %541 = vmatprep.subr.mxu0 0.0
      %542 = vmatpush1.msra.mxu0 %v489
      %543 = vmatprep.subr.mxu0 0.0
      %544 = vmatpush1.msra.mxu0 0.0
      %545 = vmatprep.subr.mxu0 0.0
      %546 = vmatpush1.msra.mxu0 0.0
      %547 = vmatprep.subr.mxu0 0.0
      %548 = vmatpush1.msra.mxu0 0.0
      %549 = vmatprep.subr.mxu0 0.0
      %550 = vmatpush1.msra.mxu0 0.0
      %551 = vmatprep.subr.mxu0 0.0
      %552 = vmatpush1.msra.mxu0 0.0
      %553 = vmatprep.subr.mxu0 0.0
      %554 = vmatpush1.msra.mxu0 0.0
      %555 = vmatprep.subr.mxu0 0.0
      %556 = vmatpush1.msra.mxu0 0.0
      %557 = vmatprep.subr.mxu0 0.0
      %558 = vmatpush1.msra.mxu0 0.0
      %559 = vmatprep.subr.mxu0 0.0
      %560 = vmatpush1.msra.mxu0 0.0
      %561 = vmatprep.subr.mxu0 0.0
      %562 = vmatpush1.msra.mxu0 0.0
      %563 = vmatprep.subr.mxu0 0.0
      %564 = vmatpush1.msra.mxu0 0.0
      %565 = vmatprep.subr.mxu0 0.0
      %566 = vmatpush1.msra.mxu0 0.0
      %567 = vmatprep.subr.mxu0 0.0
      %568 = vmatpush1.msra.mxu0 0.0
      %569 = vmatprep.subr.mxu0 0.0
      %570 = vmatpush1.msra.mxu0 0.0
      %571 = vmatprep.subr.mxu0 0.0
      %572 = vmatpush1.msra.mxu0 0.0
      %573 = vmatprep.subr.mxu0 0.0
      %574 = vmatpush1.msra.mxu0 0.0
      %575 = vmatprep.subr.mxu0 0.0
      %576 = vmatpush1.msra.mxu0 0.0
      %577 = vmatprep.subr.mxu0 0.0
      %578 = vmatpush1.msra.mxu0 0.0
      %579 = vmatprep.subr.mxu0 0.0
      %580 = vmatpush1.msra.mxu0 0.0
      %581 = vmatprep.subr.mxu0 0.0
      %582 = vmatpush1.msra.mxu0 0.0
      %583 = vmatprep.subr.mxu0 0.0
      %584 = vmatpush1.msra.mxu0 0.0
      %585 = vmatprep.subr.mxu0 0.0
      %586 = vmatpush1.msra.mxu0 0.0
      %587 = vmatprep.subr.mxu0 0.0
      %588 = vmatpush1.msra.mxu0 0.0
      %589 = vmatprep.subr.mxu0 0.0
      %590 = vmatpush1.msra.mxu0 0.0
      %591 = vmatprep.subr.mxu0 0.0
      %592 = vmatpush1.msra.mxu0 0.0
      %593 = vmatprep.subr.mxu0 0.0
      %594 = vmatpush1.msra.mxu0 0.0
      %595 = vmatprep.subr.mxu0 0.0
      %596 = vmatpush1.msra.mxu0 0.0
      %597 = vmatprep.subr.mxu0 0.0
      %598 = vmatpush1.msra.mxu0 0.0
      %599 = vmatprep.subr.mxu0 0.0
      %600 = vmatpush1.msra.mxu0 0.0
      %601 = vmatprep.subr.mxu0 0.0
      %602 = vmatpush1.msra.mxu0 0.0
      %603 = vmatprep.mubr.f32.mxu0 0.0
      %604 = vmatmul.mubr.f32.gmra.mrb[0].mxu0 %v492
      %v605 = vpop.f32.mrb[0].mxu0
      %v606 = vadd.f32 0.0, %v605
      %v607 = vpop.f32.mrb[0].mxu0
      %608 = vmatprep.mubr.f32.mxu0 0.0
      %609 = vmatmul.mubr.f32.gmra.mrb[0].mxu0 %v495
      %v610 = vpop.f32.mrb[0].mxu0
      %v611 = vadd.f32 0.0, %v610
      %v612 = vpop.f32.mrb[0].mxu0
      %613 = vmatprep.mubr.f32.mxu0 0.0
      %614 = vmatmul.mubr.f32.gmra.mrb[0].mxu0 %v498
      %v615 = vpop.f32.mrb[0].mxu0
      %v616 = vadd.f32 0.0, %v615
      %v617 = vpop.f32.mrb[0].mxu0
      %618 = vmatprep.mubr.f32.mxu0 0.0
      %619 = vmatmul.mubr.f32.gmra.mrb[0].mxu0 %v501
      %v620 = vpop.f32.mrb[0].mxu0
      %v621 = vadd.f32 0.0, %v620
      %v622 = vpop.f32.mrb[0].mxu0
      %623 = vmatprep.mubr.f32.mxu0 0.0
      %624 = vmatmul.mubr.f32.gmra.mrb[0].mxu0 %v504
      %v625 = vpop.f32.mrb[0].mxu0
      %v626 = vadd.f32 0.0, %v625
      %v627 = vpop.f32.mrb[0].mxu0
      %628 = vmatprep.mubr.f32.mxu0 0.0
      %629 = vmatmul.mubr.f32.gmra.mrb[0].mxu0 %v507
      %v630 = vpop.f32.mrb[0].mxu0
      %v631 = vadd.f32 0.0, %v630
      %v632 = vpop.f32.mrb[0].mxu0
      %633 = vmatprep.mubr.f32.mxu0 0.0
      %634 = vmatmul.mubr.f32.gmra.mrb[0].mxu0 %v510
      %v635 = vpop.f32.mrb[0].mxu0
      %v636 = vadd.f32 0.0, %v635
      %v637 = vpop.f32.mrb[0].mxu0
      %638 = vmatprep.mubr.f32.mxu0 0.0
      %639 = vmatmul.mubr.f32.gmra.mrb[0].mxu0 %v513
      %v640 = vpop.f32.mrb[0].mxu0
      %v641 = vadd.f32 0.0, %v640
      %v642 = vpop.f32.mrb[0].mxu0
      %643 = vmatprep.mubr.f32.mxu0 0.0
      %644 = vmatmul.mubr.f32.gmra.mrb[0].mxu0 %v516
      %v645 = vpop.f32.mrb[0].mxu0
      %v646 = vadd.f32 0.0, %v645
      %v647 = vpop.f32.mrb[0].mxu0
      %648 = vmatprep.mubr.f32.mxu0 0.0
      %649 = vmatmul.mubr.f32.gmra.mrb[0].mxu0 %v519
      %v650 = vpop.f32.mrb[0].mxu0
      %v651 = vadd.f32 0.0, %v650
      %v652 = vpop.f32.mrb[0].mxu0
      %653 = vmatprep.mubr.f32.mxu0 0.0
      %654 = vmatmul.mubr.f32.gmra.mrb[0].mxu0 %v522
      %v655 = vpop.f32.mrb[0].mxu0
      %v656 = vadd.f32 0.0, %v655
      %v657 = vpop.f32.mrb[0].mxu0
      %658 = vmatprep.mubr.f32.mxu0 0.0
      %659 = vmatmul.mubr.f32.gmra.mrb[0].mxu0 %v525
      %v660 = vpop.f32.mrb[0].mxu0
      %v661 = vadd.f32 0.0, %v660
      %v662 = vpop.f32.mrb[0].mxu0
      %663 = vmatprep.mubr.f32.mxu0 0.0
      %664 = vmatmul.mubr.f32.gmra.mrb[0].mxu0 %v528
      %v665 = vpop.f32.mrb[0].mxu0
      %v666 = vadd.f32 0.0, %v665
      %v667 = vpop.f32.mrb[0].mxu0
      %668 = vmatprep.mubr.f32.mxu0 0.0
      %669 = vmatmul.mubr.f32.gmra.mrb[0].mxu0 %v531
      %v670 = vpop.f32.mrb[0].mxu0
      %v671 = vadd.f32 0.0, %v670
      %v672 = vpop.f32.mrb[0].mxu0
      %673 = vmatprep.mubr.f32.mxu0 0.0
      %674 = vmatmul.mubr.f32.gmra.mrb[0].mxu0 %v534
      %v675 = vpop.f32.mrb[0].mxu0
      %v676 = vadd.f32 0.0, %v675
      %v677 = vpop.f32.mrb[0].mxu0
      %678 = vmatprep.mubr.f32.mxu0 0.0
      %679 = vmatmul.mubr.f32.gmra.mrb[0].mxu0 %v537
      %v680 = vpop.f32.mrb[0].mxu0
      %v681 = vadd.f32 0.0, %v680
      %v682 = vpop.f32.mrb[0].mxu0
      %683 = vdwg.mxu0
      %v685 = vlaneseq
      %v686 = vshrl.u32 %v685, 7
      %v687 = vsub.s32 0, %v686
      %v688 = vrot.slane %v470, %v687
      %v690 = vmul.f32 %v606, %v688
      %v691 = vmul.f32 %v611, %v688
      %v692 = vmul.f32 %v616, %v688
      %v693 = vmul.f32 %v621, %v688
      %v694 = vmul.f32 %v626, %v688
      %v695 = vmul.f32 %v631, %v688
      %v696 = vmul.f32 %v636, %v688
      %v697 = vmul.f32 %v641, %v688
      %v698 = vmul.f32 %v646, %v688
      %v699 = vmul.f32 %v651, %v688
      %v700 = vmul.f32 %v656, %v688
      %v701 = vmul.f32 %v661, %v688
      %v702 = vmul.f32 %v666, %v688
      %v703 = vmul.f32 %v671, %v688
      %v704 = vmul.f32 %v676, %v688
      %v705 = vmul.f32 %v681, %v688
      %v707 = vlaneseq
      %v708 = vshrl.u32 %v707, 7
      %v709 = vsub.s32 0, %v708
      %v710 = vrot.slane %v471, %v709
      %v712 = vadd.f32 %v690, %v710
      %v713 = vadd.f32 %v691, %v710
      %v714 = vadd.f32 %v692, %v710
      %v715 = vadd.f32 %v693, %v710
      %v716 = vadd.f32 %v694, %v710
      %v717 = vadd.f32 %v695, %v710
      %v718 = vadd.f32 %v696, %v710
      %v719 = vadd.f32 %v697, %v710
      %v720 = vadd.f32 %v698, %v710
      %v721 = vadd.f32 %v699, %v710
      %v722 = vadd.f32 %v700, %v710
      %v723 = vadd.f32 %v701, %v710
      %v724 = vadd.f32 %v702, %v710
      %v725 = vadd.f32 %v703, %v710
      %v726 = vadd.f32 %v704, %v710
      %v727 = vadd.f32 %v705, %v710
      %v728 = vmax.f32 %v712, 0.0
      %v729 = vmax.f32 %v713, 0.0
      %v730 = vmax.f32 %v714, 0.0
      %v731 = vmax.f32 %v715, 0.0
      %v732 = vmax.f32 %v716, 0.0
      %v733 = vmax.f32 %v717, 0.0
      %v734 = vmax.f32 %v718, 0.0
      %v735 = vmax.f32 %v719, 0.0
      %v736 = vmax.f32 %v720, 0.0
      %v737 = vmax.f32 %v721, 0.0
      %v738 = vmax.f32 %v722, 0.0
      %v739 = vmax.f32 %v723, 0.0
      %v740 = vmax.f32 %v724, 0.0
      %v741 = vmax.f32 %v725, 0.0
      %v742 = vmax.f32 %v726, 0.0
      %v743 = vmax.f32 %v727, 0.0
      %v744 = vld [vmem:[%s457] sm:$0xff]
      %v745 = vld [vmem:[%s457 + $0x8] sm:$0xff]
      %v746 = vld [vmem:[%s457 + $0x10] sm:$0xff]
      %v747 = vld [vmem:[%s457 + $0x18] sm:$0xff]
      %v749 = vsel %vm490, %v744, 0
      %v752 = vsel %vm490, %v745, 0
      %v755 = vsel %vm490, %v746, 0
      %v758 = vsel %vm490, %v747, 0
      %760 = vmatprep.subr.mxu0 0.0
      %761 = vmatpush1.msra.mxu0 %v488
      %762 = vmatprep.subr.mxu0 0.0
      %763 = vmatpush1.msra.mxu0 %v489
      %764 = vmatprep.subr.mxu0 0.0
      %765 = vmatpush1.msra.mxu0 0.0
      %766 = vmatprep.subr.mxu0 0.0
      %767 = vmatpush1.msra.mxu0 0.0
      %768 = vmatprep.subr.mxu0 0.0
      %769 = vmatpush1.msra.mxu0 0.0
      %770 = vmatprep.subr.mxu0 0.0
      %771 = vmatpush1.msra.mxu0 0.0
      %772 = vmatprep.subr.mxu0 0.0
      %773 = vmatpush1.msra.mxu0 0.0
      %774 = vmatprep.subr.mxu0 0.0
      %775 = vmatpush1.msra.mxu0 0.0
      %776 = vmatprep.subr.mxu0 0.0
      %777 = vmatpush1.msra.mxu0 0.0
      %778 = vmatprep.subr.mxu0 0.0
      %779 = vmatpush1.msra.mxu0 0.0
      %780 = vmatprep.subr.mxu0 0.0
      %781 = vmatpush1.msra.mxu0 0.0
      %782 = vmatprep.subr.mxu0 0.0
      %783 = vmatpush1.msra.mxu0 0.0
      %784 = vmatprep.subr.mxu0 0.0
      %785 = vmatpush1.msra.mxu0 0.0
      %786 = vmatprep.subr.mxu0 0.0
      %787 = vmatpush1.msra.mxu0 0.0
      %788 = vmatprep.subr.mxu0 0.0
      %789 = vmatpush1.msra.mxu0 0.0
      %790 = vmatprep.subr.mxu0 0.0
      %791 = vmatpush1.msra.mxu0 0.0
      %792 = vmatprep.subr.mxu0 0.0
      %793 = vmatpush1.msra.mxu0 0.0
      %794 = vmatprep.subr.mxu0 0.0
      %795 = vmatpush1.msra.mxu0 0.0
      %796 = vmatprep.subr.mxu0 0.0
      %797 = vmatpush1.msra.mxu0 0.0
      %798 = vmatprep.subr.mxu0 0.0
      %799 = vmatpush1.msra.mxu0 0.0
      %800 = vmatprep.subr.mxu0 0.0
      %801 = vmatpush1.msra.mxu0 0.0
      %802 = vmatprep.subr.mxu0 0.0
      %803 = vmatpush1.msra.mxu0 0.0
      %804 = vmatprep.subr.mxu0 0.0
      %805 = vmatpush1.msra.mxu0 0.0
      %806 = vmatprep.subr.mxu0 0.0
      %807 = vmatpush1.msra.mxu0 0.0
      %808 = vmatprep.subr.mxu0 0.0
      %809 = vmatpush1.msra.mxu0 0.0
      %810 = vmatprep.subr.mxu0 0.0
      %811 = vmatpush1.msra.mxu0 0.0
      %812 = vmatprep.subr.mxu0 0.0
      %813 = vmatpush1.msra.mxu0 0.0
      %814 = vmatprep.subr.mxu0 0.0
      %815 = vmatpush1.msra.mxu0 0.0
      %816 = vmatprep.subr.mxu0 0.0
      %817 = vmatpush1.msra.mxu0 0.0
      %818 = vmatprep.subr.mxu0 0.0
      %819 = vmatpush1.msra.mxu0 0.0
      %820 = vmatprep.subr.mxu0 0.0
      %821 = vmatpush1.msra.mxu0 0.0
      %822 = vmatprep.subr.mxu0 0.0
      %823 = vmatpush1.msra.mxu0 0.0
      %824 = vmatprep.mubr.f32.mxu0 0.0
      %825 = vmatmul.mubr.f32.gmra.mrb[0].mxu0 %v749
      %v826 = vpop.f32.mrb[0].mxu0
      %v827 = vadd.f32 0.0, %v826
      %v828 = vpop.f32.mrb[0].mxu0
      %829 = vmatprep.mubr.f32.mxu0 0.0
      %830 = vmatmul.mubr.f32.gmra.mrb[0].mxu0 %v752
      %v831 = vpop.f32.mrb[0].mxu0
      %v832 = vadd.f32 0.0, %v831
      %v833 = vpop.f32.mrb[0].mxu0
      %834 = vmatprep.mubr.f32.mxu0 0.0
      %835 = vmatmul.mubr.f32.gmra.mrb[0].mxu0 %v755
      %v836 = vpop.f32.mrb[0].mxu0
      %v837 = vadd.f32 0.0, %v836
      %v838 = vpop.f32.mrb[0].mxu0
      %839 = vmatprep.mubr.f32.mxu0 0.0
      %840 = vmatmul.mubr.f32.gmra.mrb[0].mxu0 %v758
      %v841 = vpop.f32.mrb[0].mxu0
      %v842 = vadd.f32 0.0, %v841
      %v843 = vpop.f32.mrb[0].mxu0
      %844 = vdwg.mxu0
      %v845 = vmul.f32 %v827, %v688
      %v846 = vmul.f32 %v832, %v688
      %v847 = vmul.f32 %v837, %v688
      %v848 = vmul.f32 %v842, %v688
      %v849 = vadd.f32 %v845, %v710
      %v850 = vadd.f32 %v846, %v710
      %v851 = vadd.f32 %v847, %v710
      %v852 = vadd.f32 %v848, %v710
      %v853 = vmax.f32 %v849, 0.0
      %v854 = vmax.f32 %v850, 0.0
      %v855 = vmax.f32 %v851, 0.0
      %v856 = vmax.f32 %v852, 0.0
      %p857 = scmp.gt.s32.totalorder %s27, 0
      %s858 = scalar_select %p857, 1.0, 0.0
      %v859 = vstv %s858
      %v860 = vmul.f32 %v853, %v859
      %v861 = vmul.f32 %v854, %v859
      %p862 = scmp.lt.s32.totalorder %s27, 1
      %s863 = scalar_select %p862, 1.0, 0.0
      %v864 = vstv %s863
      %v865 = vmul.f32 %v855, %v864
      %v866 = vmul.f32 %v856, %v864
      %vm884 = vcmask 1040384
      %v885 = vrot.slane 0.0, 7
      %v886 = vrot.slane %v860, 7
      %v887 = vsel %vm884, %v885, %v886
      %v888 = vrot.slane %v861, 7
      %v889 = vsel %vm884, %v886, %v888
      %v890 = vrot.slane %v728, 7
      %v891 = vsel %vm884, %v885, %v890
      %v892 = vrot.slane %v729, 7
      %v893 = vsel %vm884, %v890, %v892
      %v894 = vrot.slane %v730, 7
      %v895 = vsel %vm884, %v885, %v894
      %v896 = vrot.slane %v731, 7
      %v897 = vsel %vm884, %v894, %v896
      %v898 = vrot.slane %v732, 7
      %v899 = vsel %vm884, %v885, %v898
      %v900 = vrot.slane %v733, 7
      %v901 = vsel %vm884, %v898, %v900
      %v902 = vrot.slane %v734, 7
      %v903 = vsel %vm884, %v885, %v902
      %v904 = vrot.slane %v735, 7
      %v905 = vsel %vm884, %v902, %v904
      %v906 = vrot.slane %v736, 7
      %v907 = vsel %vm884, %v885, %v906
      %v908 = vrot.slane %v737, 7
      %v909 = vsel %vm884, %v906, %v908
      %v910 = vrot.slane %v738, 7
      %v911 = vsel %vm884, %v885, %v910
      %v912 = vrot.slane %v739, 7
      %v913 = vsel %vm884, %v910, %v912
      %v914 = vrot.slane %v740, 7
      %v915 = vsel %vm884, %v885, %v914
      %v916 = vrot.slane %v741, 7
      %v917 = vsel %vm884, %v914, %v916
      %v918 = vld [vmem:[%s3] sm:$0xf]
      %s919 = scalar_lea.vmem %s3, 4
      %v920 = vld [vmem:[%s919] sm:$0xf]
      %vm921 = vcmask 31744
      %v922 = vsel %vm921, %v860, 0
      %v924 = vsel %vm921, %v861, 0
      %v926 = vsel %vm921, %v728, 0
      %v928 = vsel %vm921, %v729, 0
      %v930 = vsel %vm921, %v730, 0
      %v932 = vsel %vm921, %v731, 0
      %v934 = vsel %vm921, %v732, 0
      %v936 = vsel %vm921, %v733, 0
      %v938 = vsel %vm921, %v734, 0
      %v940 = vsel %vm921, %v735, 0
      %v942 = vsel %vm921, %v736, 0
      %v944 = vsel %vm921, %v737, 0
      %v946 = vsel %vm921, %v738, 0
      %v948 = vsel %vm921, %v739, 0
      %v950 = vsel %vm921, %v740, 0
      %v952 = vsel %vm921, %v741, 0
      %vm954 = vcmask 1043456
      %v956 = vsel %vm954, %v920, 0
      %958 = vmatprep.subr.mxu0 0.0
      %959 = vmatpush1.msra.mxu0 %v956
      %960 = vmatprep.subr.mxu0 0.0
      %961 = vmatpush1.msra.mxu0 0.0
      %962 = vmatprep.subr.mxu0 0.0
      %963 = vmatpush1.msra.mxu0 0.0
      %964 = vmatprep.subr.mxu0 0.0
      %965 = vmatpush1.msra.mxu0 0.0
      %966 = vmatprep.subr.mxu0 0.0
      %967 = vmatpush1.msra.mxu0 0.0
      %968 = vmatprep.subr.mxu0 0.0
      %969 = vmatpush1.msra.mxu0 0.0
      %970 = vmatprep.subr.mxu0 0.0
      %971 = vmatpush1.msra.mxu0 0.0
      %972 = vmatprep.subr.mxu0 0.0
      %973 = vmatpush1.msra.mxu0 0.0
      %974 = vmatprep.subr.mxu0 0.0
      %975 = vmatpush1.msra.mxu0 0.0
      %976 = vmatprep.subr.mxu0 0.0
      %977 = vmatpush1.msra.mxu0 0.0
      %978 = vmatprep.subr.mxu0 0.0
      %979 = vmatpush1.msra.mxu0 0.0
      %980 = vmatprep.subr.mxu0 0.0
      %981 = vmatpush1.msra.mxu0 0.0
      %982 = vmatprep.subr.mxu0 0.0
      %983 = vmatpush1.msra.mxu0 0.0
      %984 = vmatprep.subr.mxu0 0.0
      %985 = vmatpush1.msra.mxu0 0.0
      %986 = vmatprep.subr.mxu0 0.0
      %987 = vmatpush1.msra.mxu0 0.0
      %988 = vmatprep.subr.mxu0 0.0
      %989 = vmatpush1.msra.mxu0 0.0
      %990 = vmatprep.subr.mxu0 0.0
      %991 = vmatpush1.msra.mxu0 0.0
      %992 = vmatprep.subr.mxu0 0.0
      %993 = vmatpush1.msra.mxu0 0.0
      %994 = vmatprep.subr.mxu0 0.0
      %995 = vmatpush1.msra.mxu0 0.0
      %996 = vmatprep.subr.mxu0 0.0
      %997 = vmatpush1.msra.mxu0 0.0
      %998 = vmatprep.subr.mxu0 0.0
      %999 = vmatpush1.msra.mxu0 0.0
      %1000 = vmatprep.subr.mxu0 0.0
      %1001 = vmatpush1.msra.mxu0 0.0
      %1002 = vmatprep.subr.mxu0 0.0
      %1003 = vmatpush1.msra.mxu0 0.0
      %1004 = vmatprep.subr.mxu0 0.0
      %1005 = vmatpush1.msra.mxu0 0.0
      %1006 = vmatprep.subr.mxu0 0.0
      %1007 = vmatpush1.msra.mxu0 0.0
      %1008 = vmatprep.subr.mxu0 0.0
      %1009 = vmatpush1.msra.mxu0 0.0
      %1010 = vmatprep.subr.mxu0 0.0
      %1011 = vmatpush1.msra.mxu0 0.0
      %1012 = vmatprep.subr.mxu0 0.0
      %1013 = vmatpush1.msra.mxu0 0.0
      %1014 = vmatprep.subr.mxu0 0.0
      %1015 = vmatpush1.msra.mxu0 0.0
      %1016 = vmatprep.subr.mxu0 0.0
      %1017 = vmatpush1.msra.mxu0 0.0
      %1018 = vmatprep.subr.mxu0 0.0
      %1019 = vmatpush1.msra.mxu0 0.0
      %1020 = vmatprep.subr.mxu0 0.0
      %1021 = vmatpush1.msra.mxu0 0.0
      %1022 = vmatprep.mubr.f32.mxu0 0.0
      %1023 = vmatmul.mubr.f32.gmra.mrb[0].mxu0 %v922
      %v1024 = vpop.f32.mrb[0].mxu0
      %v1025 = vadd.f32 0.0, %v1024
      %v1026 = vpop.f32.mrb[0].mxu0
      %1027 = vmatprep.mubr.f32.mxu0 0.0
      %1028 = vmatmul.mubr.f32.gmra.mrb[0].mxu0 %v924
      %v1029 = vpop.f32.mrb[0].mxu0
      %v1030 = vadd.f32 0.0, %v1029
      %v1031 = vpop.f32.mrb[0].mxu0
      %1032 = vmatprep.mubr.f32.mxu0 0.0
      %1033 = vmatmul.mubr.f32.gmra.mrb[0].mxu0 %v926
      %v1034 = vpop.f32.mrb[0].mxu0
      %v1035 = vadd.f32 0.0, %v1034
      %v1036 = vpop.f32.mrb[0].mxu0
      %1037 = vmatprep.mubr.f32.mxu0 0.0
      %1038 = vmatmul.mubr.f32.gmra.mrb[0].mxu0 %v928
      %v1039 = vpop.f32.mrb[0].mxu0
      %v1040 = vadd.f32 0.0, %v1039
      %v1041 = vpop.f32.mrb[0].mxu0
      %1042 = vmatprep.mubr.f32.mxu0 0.0
      %1043 = vmatmul.mubr.f32.gmra.mrb[0].mxu0 %v930
      %v1044 = vpop.f32.mrb[0].mxu0
      %v1045 = vadd.f32 0.0, %v1044
      %v1046 = vpop.f32.mrb[0].mxu0
      %1047 = vmatprep.mubr.f32.mxu0 0.0
      %1048 = vmatmul.mubr.f32.gmra.mrb[0].mxu0 %v932
      %v1049 = vpop.f32.mrb[0].mxu0
      %v1050 = vadd.f32 0.0, %v1049
      %v1051 = vpop.f32.mrb[0].mxu0
      %1052 = vmatprep.mubr.f32.mxu0 0.0
      %1053 = vmatmul.mubr.f32.gmra.mrb[0].mxu0 %v934
      %v1054 = vpop.f32.mrb[0].mxu0
      %v1055 = vadd.f32 0.0, %v1054
      %v1056 = vpop.f32.mrb[0].mxu0
      %1057 = vmatprep.mubr.f32.mxu0 0.0
      %1058 = vmatmul.mubr.f32.gmra.mrb[0].mxu0 %v936
      %v1059 = vpop.f32.mrb[0].mxu0
      %v1060 = vadd.f32 0.0, %v1059
      %v1061 = vpop.f32.mrb[0].mxu0
      %1062 = vmatprep.mubr.f32.mxu0 0.0
      %1063 = vmatmul.mubr.f32.gmra.mrb[0].mxu0 %v938
      %v1064 = vpop.f32.mrb[0].mxu0
      %v1065 = vadd.f32 0.0, %v1064
      %v1066 = vpop.f32.mrb[0].mxu0
      %1067 = vmatprep.mubr.f32.mxu0 0.0
      %1068 = vmatmul.mubr.f32.gmra.mrb[0].mxu0 %v940
      %v1069 = vpop.f32.mrb[0].mxu0
      %v1070 = vadd.f32 0.0, %v1069
      %v1071 = vpop.f32.mrb[0].mxu0
      %1072 = vmatprep.mubr.f32.mxu0 0.0
      %1073 = vmatmul.mubr.f32.gmra.mrb[0].mxu0 %v942
      %v1074 = vpop.f32.mrb[0].mxu0
      %v1075 = vadd.f32 0.0, %v1074
      %v1076 = vpop.f32.mrb[0].mxu0
      %1077 = vmatprep.mubr.f32.mxu0 0.0
      %1078 = vmatmul.mubr.f32.gmra.mrb[0].mxu0 %v944
      %v1079 = vpop.f32.mrb[0].mxu0
      %v1080 = vadd.f32 0.0, %v1079
      %v1081 = vpop.f32.mrb[0].mxu0
      %1082 = vmatprep.mubr.f32.mxu0 0.0
      %1083 = vmatmul.mubr.f32.gmra.mrb[0].mxu0 %v946
      %v1084 = vpop.f32.mrb[0].mxu0
      %v1085 = vadd.f32 0.0, %v1084
      %v1086 = vpop.f32.mrb[0].mxu0
      %1087 = vmatprep.mubr.f32.mxu0 0.0
      %1088 = vmatmul.mubr.f32.gmra.mrb[0].mxu0 %v948
      %v1089 = vpop.f32.mrb[0].mxu0
      %v1090 = vadd.f32 0.0, %v1089
      %v1091 = vpop.f32.mrb[0].mxu0
      %1092 = vmatprep.mubr.f32.mxu0 0.0
      %1093 = vmatmul.mubr.f32.gmra.mrb[0].mxu0 %v950
      %v1094 = vpop.f32.mrb[0].mxu0
      %v1095 = vadd.f32 0.0, %v1094
      %v1096 = vpop.f32.mrb[0].mxu0
      %1097 = vmatprep.mubr.f32.mxu0 0.0
      %1098 = vmatmul.mubr.f32.gmra.mrb[0].mxu0 %v952
      %v1099 = vpop.f32.mrb[0].mxu0
      %v1100 = vadd.f32 0.0, %v1099
      %v1101 = vpop.f32.mrb[0].mxu0
      %1102 = vdwg.mxu0
      %v1103 = vsel %vm921, %v887, 0
      %v1105 = vsel %vm921, %v889, 0
      %v1107 = vsel %vm921, %v891, 0
      %v1109 = vsel %vm921, %v893, 0
      %v1111 = vsel %vm921, %v895, 0
      %v1113 = vsel %vm921, %v897, 0
      %v1115 = vsel %vm921, %v899, 0
      %v1117 = vsel %vm921, %v901, 0
      %v1119 = vsel %vm921, %v903, 0
      %v1121 = vsel %vm921, %v905, 0
      %v1123 = vsel %vm921, %v907, 0
      %v1125 = vsel %vm921, %v909, 0
      %v1127 = vsel %vm921, %v911, 0
      %v1129 = vsel %vm921, %v913, 0
      %v1131 = vsel %vm921, %v915, 0
      %v1133 = vsel %vm921, %v917, 0
      %v1136 = vsel %vm954, %v918, 0
      %1138 = vmatprep.subr.mxu0 0.0
      %1139 = vmatpush1.msra.mxu0 %v1136
      %1140 = vmatprep.subr.mxu0 0.0
      %1141 = vmatpush1.msra.mxu0 0.0
      %1142 = vmatprep.subr.mxu0 0.0
      %1143 = vmatpush1.msra.mxu0 0.0
      %1144 = vmatprep.subr.mxu0 0.0
      %1145 = vmatpush1.msra.mxu0 0.0
      %1146 = vmatprep.subr.mxu0 0.0
      %1147 = vmatpush1.msra.mxu0 0.0
      %1148 = vmatprep.subr.mxu0 0.0
      %1149 = vmatpush1.msra.mxu0 0.0
      %1150 = vmatprep.subr.mxu0 0.0
      %1151 = vmatpush1.msra.mxu0 0.0
      %1152 = vmatprep.subr.mxu0 0.0
      %1153 = vmatpush1.msra.mxu0 0.0
      %1154 = vmatprep.subr.mxu0 0.0
      %1155 = vmatpush1.msra.mxu0 0.0
      %1156 = vmatprep.subr.mxu0 0.0
      %1157 = vmatpush1.msra.mxu0 0.0
      %1158 = vmatprep.subr.mxu0 0.0
      %1159 = vmatpush1.msra.mxu0 0.0
      %1160 = vmatprep.subr.mxu0 0.0
      %1161 = vmatpush1.msra.mxu0 0.0
      %1162 = vmatprep.subr.mxu0 0.0
      %1163 = vmatpush1.msra.mxu0 0.0
      %1164 = vmatprep.subr.mxu0 0.0
      %1165 = vmatpush1.msra.mxu0 0.0
      %1166 = vmatprep.subr.mxu0 0.0
      %1167 = vmatpush1.msra.mxu0 0.0
      %1168 = vmatprep.subr.mxu0 0.0
      %1169 = vmatpush1.msra.mxu0 0.0
      %1170 = vmatprep.subr.mxu0 0.0
      %1171 = vmatpush1.msra.mxu0 0.0
      %1172 = vmatprep.subr.mxu0 0.0
      %1173 = vmatpush1.msra.mxu0 0.0
      %1174 = vmatprep.subr.mxu0 0.0
      %1175 = vmatpush1.msra.mxu0 0.0
      %1176 = vmatprep.subr.mxu0 0.0
      %1177 = vmatpush1.msra.mxu0 0.0
      %1178 = vmatprep.subr.mxu0 0.0
      %1179 = vmatpush1.msra.mxu0 0.0
      %1180 = vmatprep.subr.mxu0 0.0
      %1181 = vmatpush1.msra.mxu0 0.0
      %1182 = vmatprep.subr.mxu0 0.0
      %1183 = vmatpush1.msra.mxu0 0.0
      %1184 = vmatprep.subr.mxu0 0.0
      %1185 = vmatpush1.msra.mxu0 0.0
      %1186 = vmatprep.subr.mxu0 0.0
      %1187 = vmatpush1.msra.mxu0 0.0
      %1188 = vmatprep.subr.mxu0 0.0
      %1189 = vmatpush1.msra.mxu0 0.0
      %1190 = vmatprep.subr.mxu0 0.0
      %1191 = vmatpush1.msra.mxu0 0.0
      %1192 = vmatprep.subr.mxu0 0.0
      %1193 = vmatpush1.msra.mxu0 0.0
      %1194 = vmatprep.subr.mxu0 0.0
      %1195 = vmatpush1.msra.mxu0 0.0
      %1196 = vmatprep.subr.mxu0 0.0
      %1197 = vmatpush1.msra.mxu0 0.0
      %1198 = vmatprep.subr.mxu0 0.0
      %1199 = vmatpush1.msra.mxu0 0.0
      %1200 = vmatprep.subr.mxu0 0.0
      %1201 = vmatpush1.msra.mxu0 0.0
      %1202 = vmatprep.mubr.f32.mxu0 0.0
      %1203 = vmatmul.mubr.f32.gmra.mrb[0].mxu0 %v1103
      %v1204 = vpop.f32.mrb[0].mxu0
      %v1205 = vadd.f32 %v1025, %v1204
      %v1206 = vpop.f32.mrb[0].mxu0
      %1207 = vmatprep.mubr.f32.mxu0 0.0
      %1208 = vmatmul.mubr.f32.gmra.mrb[0].mxu0 %v1105
      %v1209 = vpop.f32.mrb[0].mxu0
      %v1210 = vadd.f32 %v1030, %v1209
      %v1211 = vpop.f32.mrb[0].mxu0
      %1212 = vmatprep.mubr.f32.mxu0 0.0
      %1213 = vmatmul.mubr.f32.gmra.mrb[0].mxu0 %v1107
      %v1214 = vpop.f32.mrb[0].mxu0
      %v1215 = vadd.f32 %v1035, %v1214
      %v1216 = vpop.f32.mrb[0].mxu0
      %1217 = vmatprep.mubr.f32.mxu0 0.0
      %1218 = vmatmul.mubr.f32.gmra.mrb[0].mxu0 %v1109
      %v1219 = vpop.f32.mrb[0].mxu0
      %v1220 = vadd.f32 %v1040, %v1219
      %v1221 = vpop.f32.mrb[0].mxu0
      %1222 = vmatprep.mubr.f32.mxu0 0.0
      %1223 = vmatmul.mubr.f32.gmra.mrb[0].mxu0 %v1111
      %v1224 = vpop.f32.mrb[0].mxu0
      %v1225 = vadd.f32 %v1045, %v1224
      %v1226 = vpop.f32.mrb[0].mxu0
      %1227 = vmatprep.mubr.f32.mxu0 0.0
      %1228 = vmatmul.mubr.f32.gmra.mrb[0].mxu0 %v1113
      %v1229 = vpop.f32.mrb[0].mxu0
      %v1230 = vadd.f32 %v1050, %v1229
      %v1231 = vpop.f32.mrb[0].mxu0
      %1232 = vmatprep.mubr.f32.mxu0 0.0
      %1233 = vmatmul.mubr.f32.gmra.mrb[0].mxu0 %v1115
      %v1234 = vpop.f32.mrb[0].mxu0
      %v1235 = vadd.f32 %v1055, %v1234
      %v1236 = vpop.f32.mrb[0].mxu0
      %1237 = vmatprep.mubr.f32.mxu0 0.0
      %1238 = vmatmul.mubr.f32.gmra.mrb[0].mxu0 %v1117
      %v1239 = vpop.f32.mrb[0].mxu0
      %v1240 = vadd.f32 %v1060, %v1239
      %v1241 = vpop.f32.mrb[0].mxu0
      %1242 = vmatprep.mubr.f32.mxu0 0.0
      %1243 = vmatmul.mubr.f32.gmra.mrb[0].mxu0 %v1119
      %v1244 = vpop.f32.mrb[0].mxu0
      %v1245 = vadd.f32 %v1065, %v1244
      %v1246 = vpop.f32.mrb[0].mxu0
      %1247 = vmatprep.mubr.f32.mxu0 0.0
      %1248 = vmatmul.mubr.f32.gmra.mrb[0].mxu0 %v1121
      %v1249 = vpop.f32.mrb[0].mxu0
      %v1250 = vadd.f32 %v1070, %v1249
      %v1251 = vpop.f32.mrb[0].mxu0
      %1252 = vmatprep.mubr.f32.mxu0 0.0
      %1253 = vmatmul.mubr.f32.gmra.mrb[0].mxu0 %v1123
      %v1254 = vpop.f32.mrb[0].mxu0
      %v1255 = vadd.f32 %v1075, %v1254
      %v1256 = vpop.f32.mrb[0].mxu0
      %1257 = vmatprep.mubr.f32.mxu0 0.0
      %1258 = vmatmul.mubr.f32.gmra.mrb[0].mxu0 %v1125
      %v1259 = vpop.f32.mrb[0].mxu0
      %v1260 = vadd.f32 %v1080, %v1259
      %v1261 = vpop.f32.mrb[0].mxu0
      %1262 = vmatprep.mubr.f32.mxu0 0.0
      %1263 = vmatmul.mubr.f32.gmra.mrb[0].mxu0 %v1127
      %v1264 = vpop.f32.mrb[0].mxu0
      %v1265 = vadd.f32 %v1085, %v1264
      %v1266 = vpop.f32.mrb[0].mxu0
      %1267 = vmatprep.mubr.f32.mxu0 0.0
      %1268 = vmatmul.mubr.f32.gmra.mrb[0].mxu0 %v1129
      %v1269 = vpop.f32.mrb[0].mxu0
      %v1270 = vadd.f32 %v1090, %v1269
      %v1271 = vpop.f32.mrb[0].mxu0
      %1272 = vmatprep.mubr.f32.mxu0 0.0
      %1273 = vmatmul.mubr.f32.gmra.mrb[0].mxu0 %v1131
      %v1274 = vpop.f32.mrb[0].mxu0
      %v1275 = vadd.f32 %v1095, %v1274
      %v1276 = vpop.f32.mrb[0].mxu0
      %1277 = vmatprep.mubr.f32.mxu0 0.0
      %1278 = vmatmul.mubr.f32.gmra.mrb[0].mxu0 %v1133
      %v1279 = vpop.f32.mrb[0].mxu0
      %v1280 = vadd.f32 %v1100, %v1279
      %v1281 = vpop.f32.mrb[0].mxu0
      %1282 = vdwg.mxu0
      %vm1283 = vcmask 1046528
      %v1284 = vrot.slane %v860, 1
      %v1285 = vrot.slane %v861, 1
      %v1286 = vsel %vm1283, %v1284, %v1285
      %v1287 = vrot.slane 0.0, 1
      %v1288 = vsel %vm1283, %v1285, %v1287
      %v1289 = vrot.slane %v728, 1
      %v1290 = vrot.slane %v729, 1
      %v1291 = vsel %vm1283, %v1289, %v1290
      %v1292 = vsel %vm1283, %v1290, %v1287
      %v1293 = vrot.slane %v730, 1
      %v1294 = vrot.slane %v731, 1
      %v1295 = vsel %vm1283, %v1293, %v1294
      %v1296 = vsel %vm1283, %v1294, %v1287
      %v1297 = vrot.slane %v732, 1
      %v1298 = vrot.slane %v733, 1
      %v1299 = vsel %vm1283, %v1297, %v1298
      %v1300 = vsel %vm1283, %v1298, %v1287
      %v1301 = vrot.slane %v734, 1
      %v1302 = vrot.slane %v735, 1
      %v1303 = vsel %vm1283, %v1301, %v1302
      %v1304 = vsel %vm1283, %v1302, %v1287
      %v1305 = vrot.slane %v736, 1
      %v1306 = vrot.slane %v737, 1
      %v1307 = vsel %vm1283, %v1305, %v1306
      %v1308 = vsel %vm1283, %v1306, %v1287
      %v1309 = vrot.slane %v738, 1
      %v1310 = vrot.slane %v739, 1
      %v1311 = vsel %vm1283, %v1309, %v1310
      %v1312 = vsel %vm1283, %v1310, %v1287
      %v1313 = vrot.slane %v740, 1
      %v1314 = vrot.slane %v741, 1
      %v1315 = vsel %vm1283, %v1313, %v1314
      %v1316 = vsel %vm1283, %v1314, %v1287
      %s1317 = scalar_lea.vmem %s3, 8
      %v1318 = vld [vmem:[%s1317] sm:$0xf]
      %v1319 = vsel %vm921, %v1286, 0
      %v1321 = vsel %vm921, %v1288, 0
      %v1323 = vsel %vm921, %v1291, 0
      %v1325 = vsel %vm921, %v1292, 0
      %v1327 = vsel %vm921, %v1295, 0
      %v1329 = vsel %vm921, %v1296, 0
      %v1331 = vsel %vm921, %v1299, 0
      %v1333 = vsel %vm921, %v1300, 0
      %v1335 = vsel %vm921, %v1303, 0
      %v1337 = vsel %vm921, %v1304, 0
      %v1339 = vsel %vm921, %v1307, 0
      %v1341 = vsel %vm921, %v1308, 0
      %v1343 = vsel %vm921, %v1311, 0
      %v1345 = vsel %vm921, %v1312, 0
      %v1347 = vsel %vm921, %v1315, 0
      %v1349 = vsel %vm921, %v1316, 0
      %v1352 = vsel %vm954, %v1318, 0
      %1354 = vmatprep.subr.mxu0 0.0
      %1355 = vmatpush1.msra.mxu0 %v1352
      %1356 = vmatprep.subr.mxu0 0.0
      %1357 = vmatpush1.msra.mxu0 0.0
      %1358 = vmatprep.subr.mxu0 0.0
      %1359 = vmatpush1.msra.mxu0 0.0
      %1360 = vmatprep.subr.mxu0 0.0
      %1361 = vmatpush1.msra.mxu0 0.0
      %1362 = vmatprep.subr.mxu0 0.0
      %1363 = vmatpush1.msra.mxu0 0.0
      %1364 = vmatprep.subr.mxu0 0.0
      %1365 = vmatpush1.msra.mxu0 0.0
      %1366 = vmatprep.subr.mxu0 0.0
      %1367 = vmatpush1.msra.mxu0 0.0
      %1368 = vmatprep.subr.mxu0 0.0
      %1369 = vmatpush1.msra.mxu0 0.0
      %1370 = vmatprep.subr.mxu0 0.0
      %1371 = vmatpush1.msra.mxu0 0.0
      %1372 = vmatprep.subr.mxu0 0.0
      %1373 = vmatpush1.msra.mxu0 0.0
      %1374 = vmatprep.subr.mxu0 0.0
      %1375 = vmatpush1.msra.mxu0 0.0
      %1376 = vmatprep.subr.mxu0 0.0
      %1377 = vmatpush1.msra.mxu0 0.0
      %1378 = vmatprep.subr.mxu0 0.0
      %1379 = vmatpush1.msra.mxu0 0.0
      %1380 = vmatprep.subr.mxu0 0.0
      %1381 = vmatpush1.msra.mxu0 0.0
      %1382 = vmatprep.subr.mxu0 0.0
      %1383 = vmatpush1.msra.mxu0 0.0
      %1384 = vmatprep.subr.mxu0 0.0
      %1385 = vmatpush1.msra.mxu0 0.0
      %1386 = vmatprep.subr.mxu0 0.0
      %1387 = vmatpush1.msra.mxu0 0.0
      %1388 = vmatprep.subr.mxu0 0.0
      %1389 = vmatpush1.msra.mxu0 0.0
      %1390 = vmatprep.subr.mxu0 0.0
      %1391 = vmatpush1.msra.mxu0 0.0
      %1392 = vmatprep.subr.mxu0 0.0
      %1393 = vmatpush1.msra.mxu0 0.0
      %1394 = vmatprep.subr.mxu0 0.0
      %1395 = vmatpush1.msra.mxu0 0.0
      %1396 = vmatprep.subr.mxu0 0.0
      %1397 = vmatpush1.msra.mxu0 0.0
      %1398 = vmatprep.subr.mxu0 0.0
      %1399 = vmatpush1.msra.mxu0 0.0
      %1400 = vmatprep.subr.mxu0 0.0
      %1401 = vmatpush1.msra.mxu0 0.0
      %1402 = vmatprep.subr.mxu0 0.0
      %1403 = vmatpush1.msra.mxu0 0.0
      %1404 = vmatprep.subr.mxu0 0.0
      %1405 = vmatpush1.msra.mxu0 0.0
      %1406 = vmatprep.subr.mxu0 0.0
      %1407 = vmatpush1.msra.mxu0 0.0
      %1408 = vmatprep.subr.mxu0 0.0
      %1409 = vmatpush1.msra.mxu0 0.0
      %1410 = vmatprep.subr.mxu0 0.0
      %1411 = vmatpush1.msra.mxu0 0.0
      %1412 = vmatprep.subr.mxu0 0.0
      %1413 = vmatpush1.msra.mxu0 0.0
      %1414 = vmatprep.subr.mxu0 0.0
      %1415 = vmatpush1.msra.mxu0 0.0
      %1416 = vmatprep.subr.mxu0 0.0
      %1417 = vmatpush1.msra.mxu0 0.0
      %1418 = vmatprep.mubr.f32.mxu0 0.0
      %1419 = vmatmul.mubr.f32.gmra.mrb[0].mxu0 %v1319
      %v1420 = vpop.f32.mrb[0].mxu0
      %v1421 = vadd.f32 0.0, %v1420
      %v1422 = vpop.f32.mrb[0].mxu0
      %1423 = vmatprep.mubr.f32.mxu0 0.0
      %1424 = vmatmul.mubr.f32.gmra.mrb[0].mxu0 %v1321
      %v1425 = vpop.f32.mrb[0].mxu0
      %v1426 = vadd.f32 0.0, %v1425
      %v1427 = vpop.f32.mrb[0].mxu0
      %1428 = vmatprep.mubr.f32.mxu0 0.0
      %1429 = vmatmul.mubr.f32.gmra.mrb[0].mxu0 %v1323
      %v1430 = vpop.f32.mrb[0].mxu0
      %v1431 = vadd.f32 0.0, %v1430
      %v1432 = vpop.f32.mrb[0].mxu0
      %1433 = vmatprep.mubr.f32.mxu0 0.0
      %1434 = vmatmul.mubr.f32.gmra.mrb[0].mxu0 %v1325
      %v1435 = vpop.f32.mrb[0].mxu0
      %v1436 = vadd.f32 0.0, %v1435
      %v1437 = vpop.f32.mrb[0].mxu0
      %1438 = vmatprep.mubr.f32.mxu0 0.0
      %1439 = vmatmul.mubr.f32.gmra.mrb[0].mxu0 %v1327
      %v1440 = vpop.f32.mrb[0].mxu0
      %v1441 = vadd.f32 0.0, %v1440
      %v1442 = vpop.f32.mrb[0].mxu0
      %1443 = vmatprep.mubr.f32.mxu0 0.0
      %1444 = vmatmul.mubr.f32.gmra.mrb[0].mxu0 %v1329
      %v1445 = vpop.f32.mrb[0].mxu0
      %v1446 = vadd.f32 0.0, %v1445
      %v1447 = vpop.f32.mrb[0].mxu0
      %1448 = vmatprep.mubr.f32.mxu0 0.0
      %1449 = vmatmul.mubr.f32.gmra.mrb[0].mxu0 %v1331
      %v1450 = vpop.f32.mrb[0].mxu0
      %v1451 = vadd.f32 0.0, %v1450
      %v1452 = vpop.f32.mrb[0].mxu0
      %1453 = vmatprep.mubr.f32.mxu0 0.0
      %1454 = vmatmul.mubr.f32.gmra.mrb[0].mxu0 %v1333
      %v1455 = vpop.f32.mrb[0].mxu0
      %v1456 = vadd.f32 0.0, %v1455
      %v1457 = vpop.f32.mrb[0].mxu0
      %1458 = vmatprep.mubr.f32.mxu0 0.0
      %1459 = vmatmul.mubr.f32.gmra.mrb[0].mxu0 %v1335
      %v1460 = vpop.f32.mrb[0].mxu0
      %v1461 = vadd.f32 0.0, %v1460
      %v1462 = vpop.f32.mrb[0].mxu0
      %1463 = vmatprep.mubr.f32.mxu0 0.0
      %1464 = vmatmul.mubr.f32.gmra.mrb[0].mxu0 %v1337
      %v1465 = vpop.f32.mrb[0].mxu0
      %v1466 = vadd.f32 0.0, %v1465
      %v1467 = vpop.f32.mrb[0].mxu0
      %1468 = vmatprep.mubr.f32.mxu0 0.0
      %1469 = vmatmul.mubr.f32.gmra.mrb[0].mxu0 %v1339
      %v1470 = vpop.f32.mrb[0].mxu0
      %v1471 = vadd.f32 0.0, %v1470
      %v1472 = vpop.f32.mrb[0].mxu0
      %1473 = vmatprep.mubr.f32.mxu0 0.0
      %1474 = vmatmul.mubr.f32.gmra.mrb[0].mxu0 %v1341
      %v1475 = vpop.f32.mrb[0].mxu0
      %v1476 = vadd.f32 0.0, %v1475
      %v1477 = vpop.f32.mrb[0].mxu0
      %1478 = vmatprep.mubr.f32.mxu0 0.0
      %1479 = vmatmul.mubr.f32.gmra.mrb[0].mxu0 %v1343
      %v1480 = vpop.f32.mrb[0].mxu0
      %v1481 = vadd.f32 0.0, %v1480
      %v1482 = vpop.f32.mrb[0].mxu0
      %1483 = vmatprep.mubr.f32.mxu0 0.0
      %1484 = vmatmul.mubr.f32.gmra.mrb[0].mxu0 %v1345
      %v1485 = vpop.f32.mrb[0].mxu0
      %v1486 = vadd.f32 0.0, %v1485
      %v1487 = vpop.f32.mrb[0].mxu0
      %1488 = vmatprep.mubr.f32.mxu0 0.0
      %1489 = vmatmul.mubr.f32.gmra.mrb[0].mxu0 %v1347
      %v1490 = vpop.f32.mrb[0].mxu0
      %v1491 = vadd.f32 0.0, %v1490
      %v1492 = vpop.f32.mrb[0].mxu0
      %1493 = vmatprep.mubr.f32.mxu0 0.0
      %1494 = vmatmul.mubr.f32.gmra.mrb[0].mxu0 %v1349
      %v1495 = vpop.f32.mrb[0].mxu0
      %v1496 = vadd.f32 0.0, %v1495
      %v1497 = vpop.f32.mrb[0].mxu0
      %1498 = vdwg.mxu0
      %v1499 = vadd.f32 %v1205, %v1421
      %v1500 = vadd.f32 %v1210, %v1426
      %v1501 = vadd.f32 %v1215, %v1431
      %v1502 = vadd.f32 %v1220, %v1436
      %v1503 = vadd.f32 %v1225, %v1441
      %v1504 = vadd.f32 %v1230, %v1446
      %v1505 = vadd.f32 %v1235, %v1451
      %v1506 = vadd.f32 %v1240, %v1456
      %v1507 = vadd.f32 %v1245, %v1461
      %v1508 = vadd.f32 %v1250, %v1466
      %v1509 = vadd.f32 %v1255, %v1471
      %v1510 = vadd.f32 %v1260, %v1476
      %v1511 = vadd.f32 %v1265, %v1481
      %v1512 = vadd.f32 %v1270, %v1486
      %v1513 = vadd.f32 %v1275, %v1491
      %v1514 = vadd.f32 %v1280, %v1496
      %v1517 = vrot.slane %v742, 7
      %v1518 = vsel %vm884, %v885, %v1517
      %v1519 = vrot.slane %v743, 7
      %v1520 = vsel %vm884, %v1517, %v1519
      %s1521 = scalar_lea.vmem %s3, 12
      %v1522 = vld [vmem:[%s1521] sm:$0xf]
      %v1523 = vsel %vm921, %v1518, 0
      %v1525 = vsel %vm921, %v1520, 0
      %v1528 = vsel %vm954, %v1522, 0
      %1530 = vmatprep.subr.mxu0 0.0
      %1531 = vmatpush1.msra.mxu0 %v1528
      %1532 = vmatprep.subr.mxu0 0.0
      %1533 = vmatpush1.msra.mxu0 0.0
      %1534 = vmatprep.subr.mxu0 0.0
      %1535 = vmatpush1.msra.mxu0 0.0
      %1536 = vmatprep.subr.mxu0 0.0
      %1537 = vmatpush1.msra.mxu0 0.0
      %1538 = vmatprep.subr.mxu0 0.0
      %1539 = vmatpush1.msra.mxu0 0.0
      %1540 = vmatprep.subr.mxu0 0.0
      %1541 = vmatpush1.msra.mxu0 0.0
      %1542 = vmatprep.subr.mxu0 0.0
      %1543 = vmatpush1.msra.mxu0 0.0
      %1544 = vmatprep.subr.mxu0 0.0
      %1545 = vmatpush1.msra.mxu0 0.0
      %1546 = vmatprep.subr.mxu0 0.0
      %1547 = vmatpush1.msra.mxu0 0.0
      %1548 = vmatprep.subr.mxu0 0.0
      %1549 = vmatpush1.msra.mxu0 0.0
      %1550 = vmatprep.subr.mxu0 0.0
      %1551 = vmatpush1.msra.mxu0 0.0
      %1552 = vmatprep.subr.mxu0 0.0
      %1553 = vmatpush1.msra.mxu0 0.0
      %1554 = vmatprep.subr.mxu0 0.0
      %1555 = vmatpush1.msra.mxu0 0.0
      %1556 = vmatprep.subr.mxu0 0.0
      %1557 = vmatpush1.msra.mxu0 0.0
      %1558 = vmatprep.subr.mxu0 0.0
      %1559 = vmatpush1.msra.mxu0 0.0
      %1560 = vmatprep.subr.mxu0 0.0
      %1561 = vmatpush1.msra.mxu0 0.0
      %1562 = vmatprep.subr.mxu0 0.0
      %1563 = vmatpush1.msra.mxu0 0.0
      %1564 = vmatprep.subr.mxu0 0.0
      %1565 = vmatpush1.msra.mxu0 0.0
      %1566 = vmatprep.subr.mxu0 0.0
      %1567 = vmatpush1.msra.mxu0 0.0
      %1568 = vmatprep.subr.mxu0 0.0
      %1569 = vmatpush1.msra.mxu0 0.0
      %1570 = vmatprep.subr.mxu0 0.0
      %1571 = vmatpush1.msra.mxu0 0.0
      %1572 = vmatprep.subr.mxu0 0.0
      %1573 = vmatpush1.msra.mxu0 0.0
      %1574 = vmatprep.subr.mxu0 0.0
      %1575 = vmatpush1.msra.mxu0 0.0
      %1576 = vmatprep.subr.mxu0 0.0
      %1577 = vmatpush1.msra.mxu0 0.0
      %1578 = vmatprep.subr.mxu0 0.0
      %1579 = vmatpush1.msra.mxu0 0.0
      %1580 = vmatprep.subr.mxu0 0.0
      %1581 = vmatpush1.msra.mxu0 0.0
      %1582 = vmatprep.subr.mxu0 0.0
      %1583 = vmatpush1.msra.mxu0 0.0
      %1584 = vmatprep.subr.mxu0 0.0
      %1585 = vmatpush1.msra.mxu0 0.0
      %1586 = vmatprep.subr.mxu0 0.0
      %1587 = vmatpush1.msra.mxu0 0.0
      %1588 = vmatprep.subr.mxu0 0.0
      %1589 = vmatpush1.msra.mxu0 0.0
      %1590 = vmatprep.subr.mxu0 0.0
      %1591 = vmatpush1.msra.mxu0 0.0
      %1592 = vmatprep.subr.mxu0 0.0
      %1593 = vmatpush1.msra.mxu0 0.0
      %1594 = vmatprep.mubr.f32.mxu0 0.0
      %1595 = vmatmul.mubr.f32.gmra.mrb[0].mxu0 %v1107
      %v1596 = vpop.f32.mrb[0].mxu0
      %v1597 = vadd.f32 0.0, %v1596
      %v1598 = vpop.f32.mrb[0].mxu0
      %1599 = vmatprep.mubr.f32.mxu0 0.0
      %1600 = vmatmul.mubr.f32.gmra.mrb[0].mxu0 %v1109
      %v1601 = vpop.f32.mrb[0].mxu0
      %v1602 = vadd.f32 0.0, %v1601
      %v1603 = vpop.f32.mrb[0].mxu0
      %1604 = vmatprep.mubr.f32.mxu0 0.0
      %1605 = vmatmul.mubr.f32.gmra.mrb[0].mxu0 %v1111
      %v1606 = vpop.f32.mrb[0].mxu0
      %v1607 = vadd.f32 0.0, %v1606
      %v1608 = vpop.f32.mrb[0].mxu0
      %1609 = vmatprep.mubr.f32.mxu0 0.0
      %1610 = vmatmul.mubr.f32.gmra.mrb[0].mxu0 %v1113
      %v1611 = vpop.f32.mrb[0].mxu0
      %v1612 = vadd.f32 0.0, %v1611
      %v1613 = vpop.f32.mrb[0].mxu0
      %1614 = vmatprep.mubr.f32.mxu0 0.0
      %1615 = vmatmul.mubr.f32.gmra.mrb[0].mxu0 %v1115
      %v1616 = vpop.f32.mrb[0].mxu0
      %v1617 = vadd.f32 0.0, %v1616
      %v1618 = vpop.f32.mrb[0].mxu0
      %1619 = vmatprep.mubr.f32.mxu0 0.0
      %1620 = vmatmul.mubr.f32.gmra.mrb[0].mxu0 %v1117
      %v1621 = vpop.f32.mrb[0].mxu0
      %v1622 = vadd.f32 0.0, %v1621
      %v1623 = vpop.f32.mrb[0].mxu0
      %1624 = vmatprep.mubr.f32.mxu0 0.0
      %1625 = vmatmul.mubr.f32.gmra.mrb[0].mxu0 %v1119
      %v1626 = vpop.f32.mrb[0].mxu0
      %v1627 = vadd.f32 0.0, %v1626
      %v1628 = vpop.f32.mrb[0].mxu0
      %1629 = vmatprep.mubr.f32.mxu0 0.0
      %1630 = vmatmul.mubr.f32.gmra.mrb[0].mxu0 %v1121
      %v1631 = vpop.f32.mrb[0].mxu0
      %v1632 = vadd.f32 0.0, %v1631
      %v1633 = vpop.f32.mrb[0].mxu0
      %1634 = vmatprep.mubr.f32.mxu0 0.0
      %1635 = vmatmul.mubr.f32.gmra.mrb[0].mxu0 %v1123
      %v1636 = vpop.f32.mrb[0].mxu0
      %v1637 = vadd.f32 0.0, %v1636
      %v1638 = vpop.f32.mrb[0].mxu0
      %1639 = vmatprep.mubr.f32.mxu0 0.0
      %1640 = vmatmul.mubr.f32.gmra.mrb[0].mxu0 %v1125
      %v1641 = vpop.f32.mrb[0].mxu0
      %v1642 = vadd.f32 0.0, %v1641
      %v1643 = vpop.f32.mrb[0].mxu0
      %1644 = vmatprep.mubr.f32.mxu0 0.0
      %1645 = vmatmul.mubr.f32.gmra.mrb[0].mxu0 %v1127
      %v1646 = vpop.f32.mrb[0].mxu0
      %v1647 = vadd.f32 0.0, %v1646
      %v1648 = vpop.f32.mrb[0].mxu0
      %1649 = vmatprep.mubr.f32.mxu0 0.0
      %1650 = vmatmul.mubr.f32.gmra.mrb[0].mxu0 %v1129
      %v1651 = vpop.f32.mrb[0].mxu0
      %v1652 = vadd.f32 0.0, %v1651
      %v1653 = vpop.f32.mrb[0].mxu0
      %1654 = vmatprep.mubr.f32.mxu0 0.0
      %1655 = vmatmul.mubr.f32.gmra.mrb[0].mxu0 %v1131
      %v1656 = vpop.f32.mrb[0].mxu0
      %v1657 = vadd.f32 0.0, %v1656
      %v1658 = vpop.f32.mrb[0].mxu0
      %1659 = vmatprep.mubr.f32.mxu0 0.0
      %1660 = vmatmul.mubr.f32.gmra.mrb[0].mxu0 %v1133
      %v1661 = vpop.f32.mrb[0].mxu0
      %v1662 = vadd.f32 0.0, %v1661
      %v1663 = vpop.f32.mrb[0].mxu0
      %1664 = vmatprep.mubr.f32.mxu0 0.0
      %1665 = vmatmul.mubr.f32.gmra.mrb[0].mxu0 %v1523
      %v1666 = vpop.f32.mrb[0].mxu0
      %v1667 = vadd.f32 0.0, %v1666
      %v1668 = vpop.f32.mrb[0].mxu0
      %1669 = vmatprep.mubr.f32.mxu0 0.0
      %1670 = vmatmul.mubr.f32.gmra.mrb[0].mxu0 %v1525
      %v1671 = vpop.f32.mrb[0].mxu0
      %v1672 = vadd.f32 0.0, %v1671
      %v1673 = vpop.f32.mrb[0].mxu0
      %1674 = vdwg.mxu0
      %v1675 = vadd.f32 %v1499, %v1597
      %v1676 = vadd.f32 %v1500, %v1602
      %v1677 = vadd.f32 %v1501, %v1607
      %v1678 = vadd.f32 %v1502, %v1612
      %v1679 = vadd.f32 %v1503, %v1617
      %v1680 = vadd.f32 %v1504, %v1622
      %v1681 = vadd.f32 %v1505, %v1627
      %v1682 = vadd.f32 %v1506, %v1632
      %v1683 = vadd.f32 %v1507, %v1637
      %v1684 = vadd.f32 %v1508, %v1642
      %v1685 = vadd.f32 %v1509, %v1647
      %v1686 = vadd.f32 %v1510, %v1652
      %v1687 = vadd.f32 %v1511, %v1657
      %v1688 = vadd.f32 %v1512, %v1662
      %v1689 = vadd.f32 %v1513, %v1667
      %v1690 = vadd.f32 %v1514, %v1672
      %s1691 = scalar_lea.vmem %s3, 16
      %v1692 = vld [vmem:[%s1691] sm:$0xf]
      %v1693 = vsel %vm921, %v742, 0
      %v1695 = vsel %vm921, %v743, 0
      %v1698 = vsel %vm954, %v1692, 0
      %1700 = vmatprep.subr.mxu0 0.0
      %1701 = vmatpush1.msra.mxu0 %v1698
      %1702 = vmatprep.subr.mxu0 0.0
      %1703 = vmatpush1.msra.mxu0 0.0
      %1704 = vmatprep.subr.mxu0 0.0
      %1705 = vmatpush1.msra.mxu0 0.0
      %1706 = vmatprep.subr.mxu0 0.0
      %1707 = vmatpush1.msra.mxu0 0.0
      %1708 = vmatprep.subr.mxu0 0.0
      %1709 = vmatpush1.msra.mxu0 0.0
      %1710 = vmatprep.subr.mxu0 0.0
      %1711 = vmatpush1.msra.mxu0 0.0
      %1712 = vmatprep.subr.mxu0 0.0
      %1713 = vmatpush1.msra.mxu0 0.0
      %1714 = vmatprep.subr.mxu0 0.0
      %1715 = vmatpush1.msra.mxu0 0.0
      %1716 = vmatprep.subr.mxu0 0.0
      %1717 = vmatpush1.msra.mxu0 0.0
      %1718 = vmatprep.subr.mxu0 0.0
      %1719 = vmatpush1.msra.mxu0 0.0
      %1720 = vmatprep.subr.mxu0 0.0
      %1721 = vmatpush1.msra.mxu0 0.0
      %1722 = vmatprep.subr.mxu0 0.0
      %1723 = vmatpush1.msra.mxu0 0.0
      %1724 = vmatprep.subr.mxu0 0.0
      %1725 = vmatpush1.msra.mxu0 0.0
      %1726 = vmatprep.subr.mxu0 0.0
      %1727 = vmatpush1.msra.mxu0 0.0
      %1728 = vmatprep.subr.mxu0 0.0
      %1729 = vmatpush1.msra.mxu0 0.0
      %1730 = vmatprep.subr.mxu0 0.0
      %1731 = vmatpush1.msra.mxu0 0.0
      %1732 = vmatprep.subr.mxu0 0.0
      %1733 = vmatpush1.msra.mxu0 0.0
      %1734 = vmatprep.subr.mxu0 0.0
      %1735 = vmatpush1.msra.mxu0 0.0
      %1736 = vmatprep.subr.mxu0 0.0
      %1737 = vmatpush1.msra.mxu0 0.0
      %1738 = vmatprep.subr.mxu0 0.0
      %1739 = vmatpush1.msra.mxu0 0.0
      %1740 = vmatprep.subr.mxu0 0.0
      %1741 = vmatpush1.msra.mxu0 0.0
      %1742 = vmatprep.subr.mxu0 0.0
      %1743 = vmatpush1.msra.mxu0 0.0
      %1744 = vmatprep.subr.mxu0 0.0
      %1745 = vmatpush1.msra.mxu0 0.0
      %1746 = vmatprep.subr.mxu0 0.0
      %1747 = vmatpush1.msra.mxu0 0.0
      %1748 = vmatprep.subr.mxu0 0.0
      %1749 = vmatpush1.msra.mxu0 0.0
      %1750 = vmatprep.subr.mxu0 0.0
      %1751 = vmatpush1.msra.mxu0 0.0
      %1752 = vmatprep.subr.mxu0 0.0
      %1753 = vmatpush1.msra.mxu0 0.0
      %1754 = vmatprep.subr.mxu0 0.0
      %1755 = vmatpush1.msra.mxu0 0.0
      %1756 = vmatprep.subr.mxu0 0.0
      %1757 = vmatpush1.msra.mxu0 0.0
      %1758 = vmatprep.subr.mxu0 0.0
      %1759 = vmatpush1.msra.mxu0 0.0
      %1760 = vmatprep.subr.mxu0 0.0
      %1761 = vmatpush1.msra.mxu0 0.0
      %1762 = vmatprep.subr.mxu0 0.0
      %1763 = vmatpush1.msra.mxu0 0.0
      %1764 = vmatprep.mubr.f32.mxu0 0.0
      %1765 = vmatmul.mubr.f32.gmra.mrb[0].mxu0 %v926
      %v1766 = vpop.f32.mrb[0].mxu0
      %v1767 = vadd.f32 0.0, %v1766
      %v1768 = vpop.f32.mrb[0].mxu0
      %1769 = vmatprep.mubr.f32.mxu0 0.0
      %1770 = vmatmul.mubr.f32.gmra.mrb[0].mxu0 %v928
      %v1771 = vpop.f32.mrb[0].mxu0
      %v1772 = vadd.f32 0.0, %v1771
      %v1773 = vpop.f32.mrb[0].mxu0
      %1774 = vmatprep.mubr.f32.mxu0 0.0
      %1775 = vmatmul.mubr.f32.gmra.mrb[0].mxu0 %v930
      %v1776 = vpop.f32.mrb[0].mxu0
      %v1777 = vadd.f32 0.0, %v1776
      %v1778 = vpop.f32.mrb[0].mxu0
      %1779 = vmatprep.mubr.f32.mxu0 0.0
      %1780 = vmatmul.mubr.f32.gmra.mrb[0].mxu0 %v932
      %v1781 = vpop.f32.mrb[0].mxu0
      %v1782 = vadd.f32 0.0, %v1781
      %v1783 = vpop.f32.mrb[0].mxu0
      %1784 = vmatprep.mubr.f32.mxu0 0.0
      %1785 = vmatmul.mubr.f32.gmra.mrb[0].mxu0 %v934
      %v1786 = vpop.f32.mrb[0].mxu0
      %v1787 = vadd.f32 0.0, %v1786
      %v1788 = vpop.f32.mrb[0].mxu0
      %1789 = vmatprep.mubr.f32.mxu0 0.0
      %1790 = vmatmul.mubr.f32.gmra.mrb[0].mxu0 %v936
      %v1791 = vpop.f32.mrb[0].mxu0
      %v1792 = vadd.f32 0.0, %v1791
      %v1793 = vpop.f32.mrb[0].mxu0
      %1794 = vmatprep.mubr.f32.mxu0 0.0
      %1795 = vmatmul.mubr.f32.gmra.mrb[0].mxu0 %v938
      %v1796 = vpop.f32.mrb[0].mxu0
      %v1797 = vadd.f32 0.0, %v1796
      %v1798 = vpop.f32.mrb[0].mxu0
      %1799 = vmatprep.mubr.f32.mxu0 0.0
      %1800 = vmatmul.mubr.f32.gmra.mrb[0].mxu0 %v940
      %v1801 = vpop.f32.mrb[0].mxu0
      %v1802 = vadd.f32 0.0, %v1801
      %v1803 = vpop.f32.mrb[0].mxu0
      %1804 = vmatprep.mubr.f32.mxu0 0.0
      %1805 = vmatmul.mubr.f32.gmra.mrb[0].mxu0 %v942
      %v1806 = vpop.f32.mrb[0].mxu0
      %v1807 = vadd.f32 0.0, %v1806
      %v1808 = vpop.f32.mrb[0].mxu0
      %1809 = vmatprep.mubr.f32.mxu0 0.0
      %1810 = vmatmul.mubr.f32.gmra.mrb[0].mxu0 %v944
      %v1811 = vpop.f32.mrb[0].mxu0
      %v1812 = vadd.f32 0.0, %v1811
      %v1813 = vpop.f32.mrb[0].mxu0
      %1814 = vmatprep.mubr.f32.mxu0 0.0
      %1815 = vmatmul.mubr.f32.gmra.mrb[0].mxu0 %v946
      %v1816 = vpop.f32.mrb[0].mxu0
      %v1817 = vadd.f32 0.0, %v1816
      %v1818 = vpop.f32.mrb[0].mxu0
      %1819 = vmatprep.mubr.f32.mxu0 0.0
      %1820 = vmatmul.mubr.f32.gmra.mrb[0].mxu0 %v948
      %v1821 = vpop.f32.mrb[0].mxu0
      %v1822 = vadd.f32 0.0, %v1821
      %v1823 = vpop.f32.mrb[0].mxu0
      %1824 = vmatprep.mubr.f32.mxu0 0.0
      %1825 = vmatmul.mubr.f32.gmra.mrb[0].mxu0 %v950
      %v1826 = vpop.f32.mrb[0].mxu0
      %v1827 = vadd.f32 0.0, %v1826
      %v1828 = vpop.f32.mrb[0].mxu0
      %1829 = vmatprep.mubr.f32.mxu0 0.0
      %1830 = vmatmul.mubr.f32.gmra.mrb[0].mxu0 %v952
      %v1831 = vpop.f32.mrb[0].mxu0
      %v1832 = vadd.f32 0.0, %v1831
      %v1833 = vpop.f32.mrb[0].mxu0
      %1834 = vmatprep.mubr.f32.mxu0 0.0
      %1835 = vmatmul.mubr.f32.gmra.mrb[0].mxu0 %v1693
      %v1836 = vpop.f32.mrb[0].mxu0
      %v1837 = vadd.f32 0.0, %v1836
      %v1838 = vpop.f32.mrb[0].mxu0
      %1839 = vmatprep.mubr.f32.mxu0 0.0
      %1840 = vmatmul.mubr.f32.gmra.mrb[0].mxu0 %v1695
      %v1841 = vpop.f32.mrb[0].mxu0
      %v1842 = vadd.f32 0.0, %v1841
      %v1843 = vpop.f32.mrb[0].mxu0
      %1844 = vdwg.mxu0
      %v1845 = vadd.f32 %v1675, %v1767
      %v1846 = vadd.f32 %v1676, %v1772
      %v1847 = vadd.f32 %v1677, %v1777
      %v1848 = vadd.f32 %v1678, %v1782
      %v1849 = vadd.f32 %v1679, %v1787
      %v1850 = vadd.f32 %v1680, %v1792
      %v1851 = vadd.f32 %v1681, %v1797
      %v1852 = vadd.f32 %v1682, %v1802
      %v1853 = vadd.f32 %v1683, %v1807
      %v1854 = vadd.f32 %v1684, %v1812
      %v1855 = vadd.f32 %v1685, %v1817
      %v1856 = vadd.f32 %v1686, %v1822
      %v1857 = vadd.f32 %v1687, %v1827
      %v1858 = vadd.f32 %v1688, %v1832
      %v1859 = vadd.f32 %v1689, %v1837
      %v1860 = vadd.f32 %v1690, %v1842
      %v1861 = vrot.slane %v742, 1
      %v1862 = vrot.slane %v743, 1
      %v1863 = vsel %vm1283, %v1861, %v1862
      %v1864 = vsel %vm1283, %v1862, %v1287
      %s1865 = scalar_lea.vmem %s3, 20
      %v1866 = vld [vmem:[%s1865] sm:$0xf]
      %v1867 = vsel %vm921, %v1863, 0
      %v1869 = vsel %vm921, %v1864, 0
      %v1872 = vsel %vm954, %v1866, 0
      %1874 = vmatprep.subr.mxu0 0.0
      %1875 = vmatpush1.msra.mxu0 %v1872
      %1876 = vmatprep.subr.mxu0 0.0
      %1877 = vmatpush1.msra.mxu0 0.0
      %1878 = vmatprep.subr.mxu0 0.0
      %1879 = vmatpush1.msra.mxu0 0.0
      %1880 = vmatprep.subr.mxu0 0.0
      %1881 = vmatpush1.msra.mxu0 0.0
      %1882 = vmatprep.subr.mxu0 0.0
      %1883 = vmatpush1.msra.mxu0 0.0
      %1884 = vmatprep.subr.mxu0 0.0
      %1885 = vmatpush1.msra.mxu0 0.0
      %1886 = vmatprep.subr.mxu0 0.0
      %1887 = vmatpush1.msra.mxu0 0.0
      %1888 = vmatprep.subr.mxu0 0.0
      %1889 = vmatpush1.msra.mxu0 0.0
      %1890 = vmatprep.subr.mxu0 0.0
      %1891 = vmatpush1.msra.mxu0 0.0
      %1892 = vmatprep.subr.mxu0 0.0
      %1893 = vmatpush1.msra.mxu0 0.0
      %1894 = vmatprep.subr.mxu0 0.0
      %1895 = vmatpush1.msra.mxu0 0.0
      %1896 = vmatprep.subr.mxu0 0.0
      %1897 = vmatpush1.msra.mxu0 0.0
      %1898 = vmatprep.subr.mxu0 0.0
      %1899 = vmatpush1.msra.mxu0 0.0
      %1900 = vmatprep.subr.mxu0 0.0
      %1901 = vmatpush1.msra.mxu0 0.0
      %1902 = vmatprep.subr.mxu0 0.0
      %1903 = vmatpush1.msra.mxu0 0.0
      %1904 = vmatprep.subr.mxu0 0.0
      %1905 = vmatpush1.msra.mxu0 0.0
      %1906 = vmatprep.subr.mxu0 0.0
      %1907 = vmatpush1.msra.mxu0 0.0
      %1908 = vmatprep.subr.mxu0 0.0
      %1909 = vmatpush1.msra.mxu0 0.0
      %1910 = vmatprep.subr.mxu0 0.0
      %1911 = vmatpush1.msra.mxu0 0.0
      %1912 = vmatprep.subr.mxu0 0.0
      %1913 = vmatpush1.msra.mxu0 0.0
      %1914 = vmatprep.subr.mxu0 0.0
      %1915 = vmatpush1.msra.mxu0 0.0
      %1916 = vmatprep.subr.mxu0 0.0
      %1917 = vmatpush1.msra.mxu0 0.0
      %1918 = vmatprep.subr.mxu0 0.0
      %1919 = vmatpush1.msra.mxu0 0.0
      %1920 = vmatprep.subr.mxu0 0.0
      %1921 = vmatpush1.msra.mxu0 0.0
      %1922 = vmatprep.subr.mxu0 0.0
      %1923 = vmatpush1.msra.mxu0 0.0
      %1924 = vmatprep.subr.mxu0 0.0
      %1925 = vmatpush1.msra.mxu0 0.0
      %1926 = vmatprep.subr.mxu0 0.0
      %1927 = vmatpush1.msra.mxu0 0.0
      %1928 = vmatprep.subr.mxu0 0.0
      %1929 = vmatpush1.msra.mxu0 0.0
      %1930 = vmatprep.subr.mxu0 0.0
      %1931 = vmatpush1.msra.mxu0 0.0
      %1932 = vmatprep.subr.mxu0 0.0
      %1933 = vmatpush1.msra.mxu0 0.0
      %1934 = vmatprep.subr.mxu0 0.0
      %1935 = vmatpush1.msra.mxu0 0.0
      %1936 = vmatprep.subr.mxu0 0.0
      %1937 = vmatpush1.msra.mxu0 0.0
      %1938 = vmatprep.mubr.f32.mxu0 0.0
      %1939 = vmatmul.mubr.f32.gmra.mrb[0].mxu0 %v1323
      %v1940 = vpop.f32.mrb[0].mxu0
      %v1941 = vadd.f32 0.0, %v1940
      %v1942 = vpop.f32.mrb[0].mxu0
      %1943 = vmatprep.mubr.f32.mxu0 0.0
      %1944 = vmatmul.mubr.f32.gmra.mrb[0].mxu0 %v1325
      %v1945 = vpop.f32.mrb[0].mxu0
      %v1946 = vadd.f32 0.0, %v1945
      %v1947 = vpop.f32.mrb[0].mxu0
      %1948 = vmatprep.mubr.f32.mxu0 0.0
      %1949 = vmatmul.mubr.f32.gmra.mrb[0].mxu0 %v1327
      %v1950 = vpop.f32.mrb[0].mxu0
      %v1951 = vadd.f32 0.0, %v1950
      %v1952 = vpop.f32.mrb[0].mxu0
      %1953 = vmatprep.mubr.f32.mxu0 0.0
      %1954 = vmatmul.mubr.f32.gmra.mrb[0].mxu0 %v1329
      %v1955 = vpop.f32.mrb[0].mxu0
      %v1956 = vadd.f32 0.0, %v1955
      %v1957 = vpop.f32.mrb[0].mxu0
      %1958 = vmatprep.mubr.f32.mxu0 0.0
      %1959 = vmatmul.mubr.f32.gmra.mrb[0].mxu0 %v1331
      %v1960 = vpop.f32.mrb[0].mxu0
      %v1961 = vadd.f32 0.0, %v1960
      %v1962 = vpop.f32.mrb[0].mxu0
      %1963 = vmatprep.mubr.f32.mxu0 0.0
      %1964 = vmatmul.mubr.f32.gmra.mrb[0].mxu0 %v1333
      %v1965 = vpop.f32.mrb[0].mxu0
      %v1966 = vadd.f32 0.0, %v1965
      %v1967 = vpop.f32.mrb[0].mxu0
      %1968 = vmatprep.mubr.f32.mxu0 0.0
      %1969 = vmatmul.mubr.f32.gmra.mrb[0].mxu0 %v1335
      %v1970 = vpop.f32.mrb[0].mxu0
      %v1971 = vadd.f32 0.0, %v1970
      %v1972 = vpop.f32.mrb[0].mxu0
      %1973 = vmatprep.mubr.f32.mxu0 0.0
      %1974 = vmatmul.mubr.f32.gmra.mrb[0].mxu0 %v1337
      %v1975 = vpop.f32.mrb[0].mxu0
      %v1976 = vadd.f32 0.0, %v1975
      %v1977 = vpop.f32.mrb[0].mxu0
      %1978 = vmatprep.mubr.f32.mxu0 0.0
      %1979 = vmatmul.mubr.f32.gmra.mrb[0].mxu0 %v1339
      %v1980 = vpop.f32.mrb[0].mxu0
      %v1981 = vadd.f32 0.0, %v1980
      %v1982 = vpop.f32.mrb[0].mxu0
      %1983 = vmatprep.mubr.f32.mxu0 0.0
      %1984 = vmatmul.mubr.f32.gmra.mrb[0].mxu0 %v1341
      %v1985 = vpop.f32.mrb[0].mxu0
      %v1986 = vadd.f32 0.0, %v1985
      %v1987 = vpop.f32.mrb[0].mxu0
      %1988 = vmatprep.mubr.f32.mxu0 0.0
      %1989 = vmatmul.mubr.f32.gmra.mrb[0].mxu0 %v1343
      %v1990 = vpop.f32.mrb[0].mxu0
      %v1991 = vadd.f32 0.0, %v1990
      %v1992 = vpop.f32.mrb[0].mxu0
      %1993 = vmatprep.mubr.f32.mxu0 0.0
      %1994 = vmatmul.mubr.f32.gmra.mrb[0].mxu0 %v1345
      %v1995 = vpop.f32.mrb[0].mxu0
      %v1996 = vadd.f32 0.0, %v1995
      %v1997 = vpop.f32.mrb[0].mxu0
      %1998 = vmatprep.mubr.f32.mxu0 0.0
      %1999 = vmatmul.mubr.f32.gmra.mrb[0].mxu0 %v1347
      %v2000 = vpop.f32.mrb[0].mxu0
      %v2001 = vadd.f32 0.0, %v2000
      %v2002 = vpop.f32.mrb[0].mxu0
      %2003 = vmatprep.mubr.f32.mxu0 0.0
      %2004 = vmatmul.mubr.f32.gmra.mrb[0].mxu0 %v1349
      %v2005 = vpop.f32.mrb[0].mxu0
      %v2006 = vadd.f32 0.0, %v2005
      %v2007 = vpop.f32.mrb[0].mxu0
      %2008 = vmatprep.mubr.f32.mxu0 0.0
      %2009 = vmatmul.mubr.f32.gmra.mrb[0].mxu0 %v1867
      %v2010 = vpop.f32.mrb[0].mxu0
      %v2011 = vadd.f32 0.0, %v2010
      %v2012 = vpop.f32.mrb[0].mxu0
      %2013 = vmatprep.mubr.f32.mxu0 0.0
      %2014 = vmatmul.mubr.f32.gmra.mrb[0].mxu0 %v1869
      %v2015 = vpop.f32.mrb[0].mxu0
      %v2016 = vadd.f32 0.0, %v2015
      %v2017 = vpop.f32.mrb[0].mxu0
      %2018 = vdwg.mxu0
      %v2019 = vadd.f32 %v1845, %v1941
      %v2020 = vadd.f32 %v1846, %v1946
      %v2021 = vadd.f32 %v1847, %v1951
      %v2022 = vadd.f32 %v1848, %v1956
      %v2023 = vadd.f32 %v1849, %v1961
      %v2024 = vadd.f32 %v1850, %v1966
      %v2025 = vadd.f32 %v1851, %v1971
      %v2026 = vadd.f32 %v1852, %v1976
      %v2027 = vadd.f32 %v1853, %v1981
      %v2028 = vadd.f32 %v1854, %v1986
      %v2029 = vadd.f32 %v1855, %v1991
      %v2030 = vadd.f32 %v1856, %v1996
      %v2031 = vadd.f32 %v1857, %v2001
      %v2032 = vadd.f32 %v1858, %v2006
      %v2033 = vadd.f32 %v1859, %v2011
      %v2034 = vadd.f32 %v1860, %v2016
      %v2037 = vrot.slane %v865, 7
      %v2038 = vsel %vm884, %v885, %v2037
      %v2039 = vrot.slane %v866, 7
      %v2040 = vsel %vm884, %v2037, %v2039
      %s2041 = scalar_lea.vmem %s3, 24
      %v2042 = vld [vmem:[%s2041] sm:$0xf]
      %v2043 = vsel %vm921, %v2038, 0
      %v2045 = vsel %vm921, %v2040, 0
      %v2048 = vsel %vm954, %v2042, 0
      %2050 = vmatprep.subr.mxu0 0.0
      %2051 = vmatpush1.msra.mxu0 %v2048
      %2052 = vmatprep.subr.mxu0 0.0
      %2053 = vmatpush1.msra.mxu0 0.0
      %2054 = vmatprep.subr.mxu0 0.0
      %2055 = vmatpush1.msra.mxu0 0.0
      %2056 = vmatprep.subr.mxu0 0.0
      %2057 = vmatpush1.msra.mxu0 0.0
      %2058 = vmatprep.subr.mxu0 0.0
      %2059 = vmatpush1.msra.mxu0 0.0
      %2060 = vmatprep.subr.mxu0 0.0
      %2061 = vmatpush1.msra.mxu0 0.0
      %2062 = vmatprep.subr.mxu0 0.0
      %2063 = vmatpush1.msra.mxu0 0.0
      %2064 = vmatprep.subr.mxu0 0.0
      %2065 = vmatpush1.msra.mxu0 0.0
      %2066 = vmatprep.subr.mxu0 0.0
      %2067 = vmatpush1.msra.mxu0 0.0
      %2068 = vmatprep.subr.mxu0 0.0
      %2069 = vmatpush1.msra.mxu0 0.0
      %2070 = vmatprep.subr.mxu0 0.0
      %2071 = vmatpush1.msra.mxu0 0.0
      %2072 = vmatprep.subr.mxu0 0.0
      %2073 = vmatpush1.msra.mxu0 0.0
      %2074 = vmatprep.subr.mxu0 0.0
      %2075 = vmatpush1.msra.mxu0 0.0
      %2076 = vmatprep.subr.mxu0 0.0
      %2077 = vmatpush1.msra.mxu0 0.0
      %2078 = vmatprep.subr.mxu0 0.0
      %2079 = vmatpush1.msra.mxu0 0.0
      %2080 = vmatprep.subr.mxu0 0.0
      %2081 = vmatpush1.msra.mxu0 0.0
      %2082 = vmatprep.subr.mxu0 0.0
      %2083 = vmatpush1.msra.mxu0 0.0
      %2084 = vmatprep.subr.mxu0 0.0
      %2085 = vmatpush1.msra.mxu0 0.0
      %2086 = vmatprep.subr.mxu0 0.0
      %2087 = vmatpush1.msra.mxu0 0.0
      %2088 = vmatprep.subr.mxu0 0.0
      %2089 = vmatpush1.msra.mxu0 0.0
      %2090 = vmatprep.subr.mxu0 0.0
      %2091 = vmatpush1.msra.mxu0 0.0
      %2092 = vmatprep.subr.mxu0 0.0
      %2093 = vmatpush1.msra.mxu0 0.0
      %2094 = vmatprep.subr.mxu0 0.0
      %2095 = vmatpush1.msra.mxu0 0.0
      %2096 = vmatprep.subr.mxu0 0.0
      %2097 = vmatpush1.msra.mxu0 0.0
      %2098 = vmatprep.subr.mxu0 0.0
      %2099 = vmatpush1.msra.mxu0 0.0
      %2100 = vmatprep.subr.mxu0 0.0
      %2101 = vmatpush1.msra.mxu0 0.0
      %2102 = vmatprep.subr.mxu0 0.0
      %2103 = vmatpush1.msra.mxu0 0.0
      %2104 = vmatprep.subr.mxu0 0.0
      %2105 = vmatpush1.msra.mxu0 0.0
      %2106 = vmatprep.subr.mxu0 0.0
      %2107 = vmatpush1.msra.mxu0 0.0
      %2108 = vmatprep.subr.mxu0 0.0
      %2109 = vmatpush1.msra.mxu0 0.0
      %2110 = vmatprep.subr.mxu0 0.0
      %2111 = vmatpush1.msra.mxu0 0.0
      %2112 = vmatprep.subr.mxu0 0.0
      %2113 = vmatpush1.msra.mxu0 0.0
      %2114 = vmatprep.mubr.f32.mxu0 0.0
      %2115 = vmatmul.mubr.f32.gmra.mrb[0].mxu0 %v1111
      %v2116 = vpop.f32.mrb[0].mxu0
      %v2117 = vadd.f32 0.0, %v2116
      %v2118 = vpop.f32.mrb[0].mxu0
      %2119 = vmatprep.mubr.f32.mxu0 0.0
      %2120 = vmatmul.mubr.f32.gmra.mrb[0].mxu0 %v1113
      %v2121 = vpop.f32.mrb[0].mxu0
      %v2122 = vadd.f32 0.0, %v2121
      %v2123 = vpop.f32.mrb[0].mxu0
      %2124 = vmatprep.mubr.f32.mxu0 0.0
      %2125 = vmatmul.mubr.f32.gmra.mrb[0].mxu0 %v1115
      %v2126 = vpop.f32.mrb[0].mxu0
      %v2127 = vadd.f32 0.0, %v2126
      %v2128 = vpop.f32.mrb[0].mxu0
      %2129 = vmatprep.mubr.f32.mxu0 0.0
      %2130 = vmatmul.mubr.f32.gmra.mrb[0].mxu0 %v1117
      %v2131 = vpop.f32.mrb[0].mxu0
      %v2132 = vadd.f32 0.0, %v2131
      %v2133 = vpop.f32.mrb[0].mxu0
      %2134 = vmatprep.mubr.f32.mxu0 0.0
      %2135 = vmatmul.mubr.f32.gmra.mrb[0].mxu0 %v1119
      %v2136 = vpop.f32.mrb[0].mxu0
      %v2137 = vadd.f32 0.0, %v2136
      %v2138 = vpop.f32.mrb[0].mxu0
      %2139 = vmatprep.mubr.f32.mxu0 0.0
      %2140 = vmatmul.mubr.f32.gmra.mrb[0].mxu0 %v1121
      %v2141 = vpop.f32.mrb[0].mxu0
      %v2142 = vadd.f32 0.0, %v2141
      %v2143 = vpop.f32.mrb[0].mxu0
      %2144 = vmatprep.mubr.f32.mxu0 0.0
      %2145 = vmatmul.mubr.f32.gmra.mrb[0].mxu0 %v1123
      %v2146 = vpop.f32.mrb[0].mxu0
      %v2147 = vadd.f32 0.0, %v2146
      %v2148 = vpop.f32.mrb[0].mxu0
      %2149 = vmatprep.mubr.f32.mxu0 0.0
      %2150 = vmatmul.mubr.f32.gmra.mrb[0].mxu0 %v1125
      %v2151 = vpop.f32.mrb[0].mxu0
      %v2152 = vadd.f32 0.0, %v2151
      %v2153 = vpop.f32.mrb[0].mxu0
      %2154 = vmatprep.mubr.f32.mxu0 0.0
      %2155 = vmatmul.mubr.f32.gmra.mrb[0].mxu0 %v1127
      %v2156 = vpop.f32.mrb[0].mxu0
      %v2157 = vadd.f32 0.0, %v2156
      %v2158 = vpop.f32.mrb[0].mxu0
      %2159 = vmatprep.mubr.f32.mxu0 0.0
      %2160 = vmatmul.mubr.f32.gmra.mrb[0].mxu0 %v1129
      %v2161 = vpop.f32.mrb[0].mxu0
      %v2162 = vadd.f32 0.0, %v2161
      %v2163 = vpop.f32.mrb[0].mxu0
      %2164 = vmatprep.mubr.f32.mxu0 0.0
      %2165 = vmatmul.mubr.f32.gmra.mrb[0].mxu0 %v1131
      %v2166 = vpop.f32.mrb[0].mxu0
      %v2167 = vadd.f32 0.0, %v2166
      %v2168 = vpop.f32.mrb[0].mxu0
      %2169 = vmatprep.mubr.f32.mxu0 0.0
      %2170 = vmatmul.mubr.f32.gmra.mrb[0].mxu0 %v1133
      %v2171 = vpop.f32.mrb[0].mxu0
      %v2172 = vadd.f32 0.0, %v2171
      %v2173 = vpop.f32.mrb[0].mxu0
      %2174 = vmatprep.mubr.f32.mxu0 0.0
      %2175 = vmatmul.mubr.f32.gmra.mrb[0].mxu0 %v1523
      %v2176 = vpop.f32.mrb[0].mxu0
      %v2177 = vadd.f32 0.0, %v2176
      %v2178 = vpop.f32.mrb[0].mxu0
      %2179 = vmatprep.mubr.f32.mxu0 0.0
      %2180 = vmatmul.mubr.f32.gmra.mrb[0].mxu0 %v1525
      %v2181 = vpop.f32.mrb[0].mxu0
      %v2182 = vadd.f32 0.0, %v2181
      %v2183 = vpop.f32.mrb[0].mxu0
      %2184 = vmatprep.mubr.f32.mxu0 0.0
      %2185 = vmatmul.mubr.f32.gmra.mrb[0].mxu0 %v2043
      %v2186 = vpop.f32.mrb[0].mxu0
      %v2187 = vadd.f32 0.0, %v2186
      %v2188 = vpop.f32.mrb[0].mxu0
      %2189 = vmatprep.mubr.f32.mxu0 0.0
      %2190 = vmatmul.mubr.f32.gmra.mrb[0].mxu0 %v2045
      %v2191 = vpop.f32.mrb[0].mxu0
      %v2192 = vadd.f32 0.0, %v2191
      %v2193 = vpop.f32.mrb[0].mxu0
      %2194 = vdwg.mxu0
      %v2195 = vadd.f32 %v2019, %v2117
      %v2196 = vadd.f32 %v2020, %v2122
      %v2197 = vadd.f32 %v2021, %v2127
      %v2198 = vadd.f32 %v2022, %v2132
      %v2199 = vadd.f32 %v2023, %v2137
      %v2200 = vadd.f32 %v2024, %v2142
      %v2201 = vadd.f32 %v2025, %v2147
      %v2202 = vadd.f32 %v2026, %v2152
      %v2203 = vadd.f32 %v2027, %v2157
      %v2204 = vadd.f32 %v2028, %v2162
      %v2205 = vadd.f32 %v2029, %v2167
      %v2206 = vadd.f32 %v2030, %v2172
      %v2207 = vadd.f32 %v2031, %v2177
      %v2208 = vadd.f32 %v2032, %v2182
      %v2209 = vadd.f32 %v2033, %v2187
      %v2210 = vadd.f32 %v2034, %v2192
      %s2211 = scalar_lea.vmem %s3, 28
      %v2212 = vld [vmem:[%s2211] sm:$0xf]
      %v2213 = vsel %vm921, %v865, 0
      %v2215 = vsel %vm921, %v866, 0
      %v2218 = vsel %vm954, %v2212, 0
      %2220 = vmatprep.subr.mxu0 0.0
      %2221 = vmatpush1.msra.mxu0 %v2218
      %2222 = vmatprep.subr.mxu0 0.0
      %2223 = vmatpush1.msra.mxu0 0.0
      %2224 = vmatprep.subr.mxu0 0.0
      %2225 = vmatpush1.msra.mxu0 0.0
      %2226 = vmatprep.subr.mxu0 0.0
      %2227 = vmatpush1.msra.mxu0 0.0
      %2228 = vmatprep.subr.mxu0 0.0
      %2229 = vmatpush1.msra.mxu0 0.0
      %2230 = vmatprep.subr.mxu0 0.0
      %2231 = vmatpush1.msra.mxu0 0.0
      %2232 = vmatprep.subr.mxu0 0.0
      %2233 = vmatpush1.msra.mxu0 0.0
      %2234 = vmatprep.subr.mxu0 0.0
      %2235 = vmatpush1.msra.mxu0 0.0
      %2236 = vmatprep.subr.mxu0 0.0
      %2237 = vmatpush1.msra.mxu0 0.0
      %2238 = vmatprep.subr.mxu0 0.0
      %2239 = vmatpush1.msra.mxu0 0.0
      %2240 = vmatprep.subr.mxu0 0.0
      %2241 = vmatpush1.msra.mxu0 0.0
      %2242 = vmatprep.subr.mxu0 0.0
      %2243 = vmatpush1.msra.mxu0 0.0
      %2244 = vmatprep.subr.mxu0 0.0
      %2245 = vmatpush1.msra.mxu0 0.0
      %2246 = vmatprep.subr.mxu0 0.0
      %2247 = vmatpush1.msra.mxu0 0.0
      %2248 = vmatprep.subr.mxu0 0.0
      %2249 = vmatpush1.msra.mxu0 0.0
      %2250 = vmatprep.subr.mxu0 0.0
      %2251 = vmatpush1.msra.mxu0 0.0
      %2252 = vmatprep.subr.mxu0 0.0
      %2253 = vmatpush1.msra.mxu0 0.0
      %2254 = vmatprep.subr.mxu0 0.0
      %2255 = vmatpush1.msra.mxu0 0.0
      %2256 = vmatprep.subr.mxu0 0.0
      %2257 = vmatpush1.msra.mxu0 0.0
      %2258 = vmatprep.subr.mxu0 0.0
      %2259 = vmatpush1.msra.mxu0 0.0
      %2260 = vmatprep.subr.mxu0 0.0
      %2261 = vmatpush1.msra.mxu0 0.0
      %2262 = vmatprep.subr.mxu0 0.0
      %2263 = vmatpush1.msra.mxu0 0.0
      %2264 = vmatprep.subr.mxu0 0.0
      %2265 = vmatpush1.msra.mxu0 0.0
      %2266 = vmatprep.subr.mxu0 0.0
      %2267 = vmatpush1.msra.mxu0 0.0
      %2268 = vmatprep.subr.mxu0 0.0
      %2269 = vmatpush1.msra.mxu0 0.0
      %2270 = vmatprep.subr.mxu0 0.0
      %2271 = vmatpush1.msra.mxu0 0.0
      %2272 = vmatprep.subr.mxu0 0.0
      %2273 = vmatpush1.msra.mxu0 0.0
      %2274 = vmatprep.subr.mxu0 0.0
      %2275 = vmatpush1.msra.mxu0 0.0
      %2276 = vmatprep.subr.mxu0 0.0
      %2277 = vmatpush1.msra.mxu0 0.0
      %2278 = vmatprep.subr.mxu0 0.0
      %2279 = vmatpush1.msra.mxu0 0.0
      %2280 = vmatprep.subr.mxu0 0.0
      %2281 = vmatpush1.msra.mxu0 0.0
      %2282 = vmatprep.subr.mxu0 0.0
      %2283 = vmatpush1.msra.mxu0 0.0
      %2284 = vmatprep.mubr.f32.mxu0 0.0
      %2285 = vmatmul.mubr.f32.gmra.mrb[0].mxu0 %v930
      %v2286 = vpop.f32.mrb[0].mxu0
      %v2287 = vadd.f32 0.0, %v2286
      %v2288 = vpop.f32.mrb[0].mxu0
      %2289 = vmatprep.mubr.f32.mxu0 0.0
      %2290 = vmatmul.mubr.f32.gmra.mrb[0].mxu0 %v932
      %v2291 = vpop.f32.mrb[0].mxu0
      %v2292 = vadd.f32 0.0, %v2291
      %v2293 = vpop.f32.mrb[0].mxu0
      %2294 = vmatprep.mubr.f32.mxu0 0.0
      %2295 = vmatmul.mubr.f32.gmra.mrb[0].mxu0 %v934
      %v2296 = vpop.f32.mrb[0].mxu0
      %v2297 = vadd.f32 0.0, %v2296
      %v2298 = vpop.f32.mrb[0].mxu0
      %2299 = vmatprep.mubr.f32.mxu0 0.0
      %2300 = vmatmul.mubr.f32.gmra.mrb[0].mxu0 %v936
      %v2301 = vpop.f32.mrb[0].mxu0
      %v2302 = vadd.f32 0.0, %v2301
      %v2303 = vpop.f32.mrb[0].mxu0
      %2304 = vmatprep.mubr.f32.mxu0 0.0
      %2305 = vmatmul.mubr.f32.gmra.mrb[0].mxu0 %v938
      %v2306 = vpop.f32.mrb[0].mxu0
      %v2307 = vadd.f32 0.0, %v2306
      %v2308 = vpop.f32.mrb[0].mxu0
      %2309 = vmatprep.mubr.f32.mxu0 0.0
      %2310 = vmatmul.mubr.f32.gmra.mrb[0].mxu0 %v940
      %v2311 = vpop.f32.mrb[0].mxu0
      %v2312 = vadd.f32 0.0, %v2311
      %v2313 = vpop.f32.mrb[0].mxu0
      %2314 = vmatprep.mubr.f32.mxu0 0.0
      %2315 = vmatmul.mubr.f32.gmra.mrb[0].mxu0 %v942
      %v2316 = vpop.f32.mrb[0].mxu0
      %v2317 = vadd.f32 0.0, %v2316
      %v2318 = vpop.f32.mrb[0].mxu0
      %2319 = vmatprep.mubr.f32.mxu0 0.0
      %2320 = vmatmul.mubr.f32.gmra.mrb[0].mxu0 %v944
      %v2321 = vpop.f32.mrb[0].mxu0
      %v2322 = vadd.f32 0.0, %v2321
      %v2323 = vpop.f32.mrb[0].mxu0
      %2324 = vmatprep.mubr.f32.mxu0 0.0
      %2325 = vmatmul.mubr.f32.gmra.mrb[0].mxu0 %v946
      %v2326 = vpop.f32.mrb[0].mxu0
      %v2327 = vadd.f32 0.0, %v2326
      %v2328 = vpop.f32.mrb[0].mxu0
      %2329 = vmatprep.mubr.f32.mxu0 0.0
      %2330 = vmatmul.mubr.f32.gmra.mrb[0].mxu0 %v948
      %v2331 = vpop.f32.mrb[0].mxu0
      %v2332 = vadd.f32 0.0, %v2331
      %v2333 = vpop.f32.mrb[0].mxu0
      %2334 = vmatprep.mubr.f32.mxu0 0.0
      %2335 = vmatmul.mubr.f32.gmra.mrb[0].mxu0 %v950
      %v2336 = vpop.f32.mrb[0].mxu0
      %v2337 = vadd.f32 0.0, %v2336
      %v2338 = vpop.f32.mrb[0].mxu0
      %2339 = vmatprep.mubr.f32.mxu0 0.0
      %2340 = vmatmul.mubr.f32.gmra.mrb[0].mxu0 %v952
      %v2341 = vpop.f32.mrb[0].mxu0
      %v2342 = vadd.f32 0.0, %v2341
      %v2343 = vpop.f32.mrb[0].mxu0
      %2344 = vmatprep.mubr.f32.mxu0 0.0
      %2345 = vmatmul.mubr.f32.gmra.mrb[0].mxu0 %v1693
      %v2346 = vpop.f32.mrb[0].mxu0
      %v2347 = vadd.f32 0.0, %v2346
      %v2348 = vpop.f32.mrb[0].mxu0
      %2349 = vmatprep.mubr.f32.mxu0 0.0
      %2350 = vmatmul.mubr.f32.gmra.mrb[0].mxu0 %v1695
      %v2351 = vpop.f32.mrb[0].mxu0
      %v2352 = vadd.f32 0.0, %v2351
      %v2353 = vpop.f32.mrb[0].mxu0
      %2354 = vmatprep.mubr.f32.mxu0 0.0
      %2355 = vmatmul.mubr.f32.gmra.mrb[0].mxu0 %v2213
      %v2356 = vpop.f32.mrb[0].mxu0
      %v2357 = vadd.f32 0.0, %v2356
      %v2358 = vpop.f32.mrb[0].mxu0
      %2359 = vmatprep.mubr.f32.mxu0 0.0
      %2360 = vmatmul.mubr.f32.gmra.mrb[0].mxu0 %v2215
      %v2361 = vpop.f32.mrb[0].mxu0
      %v2362 = vadd.f32 0.0, %v2361
      %v2363 = vpop.f32.mrb[0].mxu0
      %2364 = vdwg.mxu0
      %v2365 = vadd.f32 %v2195, %v2287
      %v2366 = vadd.f32 %v2196, %v2292
      %v2367 = vadd.f32 %v2197, %v2297
      %v2368 = vadd.f32 %v2198, %v2302
      %v2369 = vadd.f32 %v2199, %v2307
      %v2370 = vadd.f32 %v2200, %v2312
      %v2371 = vadd.f32 %v2201, %v2317
      %v2372 = vadd.f32 %v2202, %v2322
      %v2373 = vadd.f32 %v2203, %v2327
      %v2374 = vadd.f32 %v2204, %v2332
      %v2375 = vadd.f32 %v2205, %v2337
      %v2376 = vadd.f32 %v2206, %v2342
      %v2377 = vadd.f32 %v2207, %v2347
      %v2378 = vadd.f32 %v2208, %v2352
      %v2379 = vadd.f32 %v2209, %v2357
      %v2380 = vadd.f32 %v2210, %v2362
      %v2381 = vrot.slane %v865, 1
      %v2382 = vrot.slane %v866, 1
      %v2383 = vsel %vm1283, %v2381, %v2382
      %v2384 = vsel %vm1283, %v2382, %v1287
      %s2385 = scalar_lea.vmem %s3, 32
      %v2386 = vld [vmem:[%s2385] sm:$0xf]
      %v2387 = vsel %vm921, %v2383, 0
      %v2389 = vsel %vm921, %v2384, 0
      %v2392 = vsel %vm954, %v2386, 0
      %2394 = vmatprep.subr.mxu0 0.0
      %2395 = vmatpush1.msra.mxu0 %v2392
      %2396 = vmatprep.subr.mxu0 0.0
      %2397 = vmatpush1.msra.mxu0 0.0
      %2398 = vmatprep.subr.mxu0 0.0
      %2399 = vmatpush1.msra.mxu0 0.0
      %2400 = vmatprep.subr.mxu0 0.0
      %2401 = vmatpush1.msra.mxu0 0.0
      %2402 = vmatprep.subr.mxu0 0.0
      %2403 = vmatpush1.msra.mxu0 0.0
      %2404 = vmatprep.subr.mxu0 0.0
      %2405 = vmatpush1.msra.mxu0 0.0
      %2406 = vmatprep.subr.mxu0 0.0
      %2407 = vmatpush1.msra.mxu0 0.0
      %2408 = vmatprep.subr.mxu0 0.0
      %2409 = vmatpush1.msra.mxu0 0.0
      %2410 = vmatprep.subr.mxu0 0.0
      %2411 = vmatpush1.msra.mxu0 0.0
      %2412 = vmatprep.subr.mxu0 0.0
      %2413 = vmatpush1.msra.mxu0 0.0
      %2414 = vmatprep.subr.mxu0 0.0
      %2415 = vmatpush1.msra.mxu0 0.0
      %2416 = vmatprep.subr.mxu0 0.0
      %2417 = vmatpush1.msra.mxu0 0.0
      %2418 = vmatprep.subr.mxu0 0.0
      %2419 = vmatpush1.msra.mxu0 0.0
      %2420 = vmatprep.subr.mxu0 0.0
      %2421 = vmatpush1.msra.mxu0 0.0
      %2422 = vmatprep.subr.mxu0 0.0
      %2423 = vmatpush1.msra.mxu0 0.0
      %2424 = vmatprep.subr.mxu0 0.0
      %2425 = vmatpush1.msra.mxu0 0.0
      %2426 = vmatprep.subr.mxu0 0.0
      %2427 = vmatpush1.msra.mxu0 0.0
      %2428 = vmatprep.subr.mxu0 0.0
      %2429 = vmatpush1.msra.mxu0 0.0
      %2430 = vmatprep.subr.mxu0 0.0
      %2431 = vmatpush1.msra.mxu0 0.0
      %2432 = vmatprep.subr.mxu0 0.0
      %2433 = vmatpush1.msra.mxu0 0.0
      %2434 = vmatprep.subr.mxu0 0.0
      %2435 = vmatpush1.msra.mxu0 0.0
      %2436 = vmatprep.subr.mxu0 0.0
      %2437 = vmatpush1.msra.mxu0 0.0
      %2438 = vmatprep.subr.mxu0 0.0
      %2439 = vmatpush1.msra.mxu0 0.0
      %2440 = vmatprep.subr.mxu0 0.0
      %2441 = vmatpush1.msra.mxu0 0.0
      %2442 = vmatprep.subr.mxu0 0.0
      %2443 = vmatpush1.msra.mxu0 0.0
      %2444 = vmatprep.subr.mxu0 0.0
      %2445 = vmatpush1.msra.mxu0 0.0
      %2446 = vmatprep.subr.mxu0 0.0
      %2447 = vmatpush1.msra.mxu0 0.0
      %2448 = vmatprep.subr.mxu0 0.0
      %2449 = vmatpush1.msra.mxu0 0.0
      %2450 = vmatprep.subr.mxu0 0.0
      %2451 = vmatpush1.msra.mxu0 0.0
      %2452 = vmatprep.subr.mxu0 0.0
      %2453 = vmatpush1.msra.mxu0 0.0
      %2454 = vmatprep.subr.mxu0 0.0
      %2455 = vmatpush1.msra.mxu0 0.0
      %2456 = vmatprep.subr.mxu0 0.0
      %2457 = vmatpush1.msra.mxu0 0.0
      %2458 = vmatprep.mubr.f32.mxu0 0.0
      %2459 = vmatmul.mubr.f32.gmra.mrb[0].mxu0 %v1327
      %v2460 = vpop.f32.mrb[0].mxu0
      %v2461 = vadd.f32 0.0, %v2460
      %v2462 = vpop.f32.mrb[0].mxu0
      %2463 = vmatprep.mubr.f32.mxu0 0.0
      %2464 = vmatmul.mubr.f32.gmra.mrb[0].mxu0 %v1329
      %v2465 = vpop.f32.mrb[0].mxu0
      %v2466 = vadd.f32 0.0, %v2465
      %v2467 = vpop.f32.mrb[0].mxu0
      %2468 = vmatprep.mubr.f32.mxu0 0.0
      %2469 = vmatmul.mubr.f32.gmra.mrb[0].mxu0 %v1331
      %v2470 = vpop.f32.mrb[0].mxu0
      %v2471 = vadd.f32 0.0, %v2470
      %v2472 = vpop.f32.mrb[0].mxu0
      %2473 = vmatprep.mubr.f32.mxu0 0.0
      %2474 = vmatmul.mubr.f32.gmra.mrb[0].mxu0 %v1333
      %v2475 = vpop.f32.mrb[0].mxu0
      %v2476 = vadd.f32 0.0, %v2475
      %v2477 = vpop.f32.mrb[0].mxu0
      %2478 = vmatprep.mubr.f32.mxu0 0.0
      %2479 = vmatmul.mubr.f32.gmra.mrb[0].mxu0 %v1335
      %v2480 = vpop.f32.mrb[0].mxu0
      %v2481 = vadd.f32 0.0, %v2480
      %v2482 = vpop.f32.mrb[0].mxu0
      %2483 = vmatprep.mubr.f32.mxu0 0.0
      %2484 = vmatmul.mubr.f32.gmra.mrb[0].mxu0 %v1337
      %v2485 = vpop.f32.mrb[0].mxu0
      %v2486 = vadd.f32 0.0, %v2485
      %v2487 = vpop.f32.mrb[0].mxu0
      %2488 = vmatprep.mubr.f32.mxu0 0.0
      %2489 = vmatmul.mubr.f32.gmra.mrb[0].mxu0 %v1339
      %v2490 = vpop.f32.mrb[0].mxu0
      %v2491 = vadd.f32 0.0, %v2490
      %v2492 = vpop.f32.mrb[0].mxu0
      %2493 = vmatprep.mubr.f32.mxu0 0.0
      %2494 = vmatmul.mubr.f32.gmra.mrb[0].mxu0 %v1341
      %v2495 = vpop.f32.mrb[0].mxu0
      %v2496 = vadd.f32 0.0, %v2495
      %v2497 = vpop.f32.mrb[0].mxu0
      %2498 = vmatprep.mubr.f32.mxu0 0.0
      %2499 = vmatmul.mubr.f32.gmra.mrb[0].mxu0 %v1343
      %v2500 = vpop.f32.mrb[0].mxu0
      %v2501 = vadd.f32 0.0, %v2500
      %v2502 = vpop.f32.mrb[0].mxu0
      %2503 = vmatprep.mubr.f32.mxu0 0.0
      %2504 = vmatmul.mubr.f32.gmra.mrb[0].mxu0 %v1345
      %v2505 = vpop.f32.mrb[0].mxu0
      %v2506 = vadd.f32 0.0, %v2505
      %v2507 = vpop.f32.mrb[0].mxu0
      %2508 = vmatprep.mubr.f32.mxu0 0.0
      %2509 = vmatmul.mubr.f32.gmra.mrb[0].mxu0 %v1347
      %v2510 = vpop.f32.mrb[0].mxu0
      %v2511 = vadd.f32 0.0, %v2510
      %v2512 = vpop.f32.mrb[0].mxu0
      %2513 = vmatprep.mubr.f32.mxu0 0.0
      %2514 = vmatmul.mubr.f32.gmra.mrb[0].mxu0 %v1349
      %v2515 = vpop.f32.mrb[0].mxu0
      %v2516 = vadd.f32 0.0, %v2515
      %v2517 = vpop.f32.mrb[0].mxu0
      %2518 = vmatprep.mubr.f32.mxu0 0.0
      %2519 = vmatmul.mubr.f32.gmra.mrb[0].mxu0 %v1867
      %v2520 = vpop.f32.mrb[0].mxu0
      %v2521 = vadd.f32 0.0, %v2520
      %v2522 = vpop.f32.mrb[0].mxu0
      %2523 = vmatprep.mubr.f32.mxu0 0.0
      %2524 = vmatmul.mubr.f32.gmra.mrb[0].mxu0 %v1869
      %v2525 = vpop.f32.mrb[0].mxu0
      %v2526 = vadd.f32 0.0, %v2525
      %v2527 = vpop.f32.mrb[0].mxu0
      %2528 = vmatprep.mubr.f32.mxu0 0.0
      %2529 = vmatmul.mubr.f32.gmra.mrb[0].mxu0 %v2387
      %v2530 = vpop.f32.mrb[0].mxu0
      %v2531 = vadd.f32 0.0, %v2530
      %v2532 = vpop.f32.mrb[0].mxu0
      %2533 = vmatprep.mubr.f32.mxu0 0.0
      %2534 = vmatmul.mubr.f32.gmra.mrb[0].mxu0 %v2389
      %v2535 = vpop.f32.mrb[0].mxu0
      %v2536 = vadd.f32 0.0, %v2535
      %v2537 = vpop.f32.mrb[0].mxu0
      %2538 = vdwg.mxu0
      %v2539 = vadd.f32 %v2365, %v2461
      %v2540 = vadd.f32 %v2366, %v2466
      %v2541 = vadd.f32 %v2367, %v2471
      %v2542 = vadd.f32 %v2368, %v2476
      %v2543 = vadd.f32 %v2369, %v2481
      %v2544 = vadd.f32 %v2370, %v2486
      %v2545 = vadd.f32 %v2371, %v2491
      %v2546 = vadd.f32 %v2372, %v2496
      %v2547 = vadd.f32 %v2373, %v2501
      %v2548 = vadd.f32 %v2374, %v2506
      %v2549 = vadd.f32 %v2375, %v2511
      %v2550 = vadd.f32 %v2376, %v2516
      %v2551 = vadd.f32 %v2377, %v2521
      %v2552 = vadd.f32 %v2378, %v2526
      %v2553 = vadd.f32 %v2379, %v2531
      %v2554 = vadd.f32 %v2380, %v2536
      %v2555 = vld [vmem:[%s7] sm:$0x1]
      %v2557 = vlaneseq
      %v2558 = vshrl.u32 %v2557, 7
      %v2559 = vsub.s32 0, %v2558
      %v2560 = vrot.slane %v2555, %v2559
      %v2562 = vmul.f32 %v2539, %v2560
      %v2563 = vmul.f32 %v2540, %v2560
      %v2564 = vmul.f32 %v2541, %v2560
      %v2565 = vmul.f32 %v2542, %v2560
      %v2566 = vmul.f32 %v2543, %v2560
      %v2567 = vmul.f32 %v2544, %v2560
      %v2568 = vmul.f32 %v2545, %v2560
      %v2569 = vmul.f32 %v2546, %v2560
      %v2570 = vmul.f32 %v2547, %v2560
      %v2571 = vmul.f32 %v2548, %v2560
      %v2572 = vmul.f32 %v2549, %v2560
      %v2573 = vmul.f32 %v2550, %v2560
      %v2574 = vmul.f32 %v2551, %v2560
      %v2575 = vmul.f32 %v2552, %v2560
      %v2576 = vmul.f32 %v2553, %v2560
      %v2577 = vmul.f32 %v2554, %v2560
      %v2578 = vld [vmem:[%s8] sm:$0x1]
      %v2580 = vlaneseq
      %v2581 = vshrl.u32 %v2580, 7
      %v2582 = vsub.s32 0, %v2581
      %v2583 = vrot.slane %v2578, %v2582
      %v2585 = vadd.f32 %v2562, %v2583
      %v2586 = vadd.f32 %v2563, %v2583
      %v2587 = vadd.f32 %v2564, %v2583
      %v2588 = vadd.f32 %v2565, %v2583
      %v2589 = vadd.f32 %v2566, %v2583
      %v2590 = vadd.f32 %v2567, %v2583
      %v2591 = vadd.f32 %v2568, %v2583
      %v2592 = vadd.f32 %v2569, %v2583
      %v2593 = vadd.f32 %v2570, %v2583
      %v2594 = vadd.f32 %v2571, %v2583
      %v2595 = vadd.f32 %v2572, %v2583
      %v2596 = vadd.f32 %v2573, %v2583
      %v2597 = vadd.f32 %v2574, %v2583
      %v2598 = vadd.f32 %v2575, %v2583
      %v2599 = vadd.f32 %v2576, %v2583
      %v2600 = vadd.f32 %v2577, %v2583
      %v2601 = vmax.f32 %v2585, 0.0
      %v2602 = vmax.f32 %v2586, 0.0
      %v2603 = vmax.f32 %v2587, 0.0
      %v2604 = vmax.f32 %v2588, 0.0
      %v2605 = vmax.f32 %v2589, 0.0
      %v2606 = vmax.f32 %v2590, 0.0
      %v2607 = vmax.f32 %v2591, 0.0
      %v2608 = vmax.f32 %v2592, 0.0
      %v2609 = vmax.f32 %v2593, 0.0
      %v2610 = vmax.f32 %v2594, 0.0
      %v2611 = vmax.f32 %v2595, 0.0
      %v2612 = vmax.f32 %v2596, 0.0
      %v2613 = vmax.f32 %v2597, 0.0
      %v2614 = vmax.f32 %v2598, 0.0
      %v2615 = vmax.f32 %v2599, 0.0
      %v2616 = vmax.f32 %v2600, 0.0
      %v2617 = vld [vmem:[%s4] sm:$0xf]
      %v2619 = vsel %vm921, %v2601, 0
      %v2622 = vsel %vm921, %v2602, 0
      %v2625 = vsel %vm921, %v2603, 0
      %v2628 = vsel %vm921, %v2604, 0
      %v2631 = vsel %vm921, %v2605, 0
      %v2634 = vsel %vm921, %v2606, 0
      %v2637 = vsel %vm921, %v2607, 0
      %v2640 = vsel %vm921, %v2608, 0
      %v2643 = vsel %vm921, %v2609, 0
      %v2646 = vsel %vm921, %v2610, 0
      %v2649 = vsel %vm921, %v2611, 0
      %v2652 = vsel %vm921, %v2612, 0
      %v2655 = vsel %vm921, %v2613, 0
      %v2658 = vsel %vm921, %v2614, 0
      %v2661 = vsel %vm921, %v2615, 0
      %v2664 = vsel %vm921, %v2616, 0
      %v2667 = vsel %vm954, %v2617, 0
      %2669 = vmatprep.subr.mxu0 0.0
      %2670 = vmatpush1.msra.mxu0 %v2667
      %2671 = vmatprep.subr.mxu0 0.0
      %2672 = vmatpush1.msra.mxu0 0.0
      %2673 = vmatprep.subr.mxu0 0.0
      %2674 = vmatpush1.msra.mxu0 0.0
      %2675 = vmatprep.subr.mxu0 0.0
      %2676 = vmatpush1.msra.mxu0 0.0
      %2677 = vmatprep.subr.mxu0 0.0
      %2678 = vmatpush1.msra.mxu0 0.0
      %2679 = vmatprep.subr.mxu0 0.0
      %2680 = vmatpush1.msra.mxu0 0.0
      %2681 = vmatprep.subr.mxu0 0.0
      %2682 = vmatpush1.msra.mxu0 0.0
      %2683 = vmatprep.subr.mxu0 0.0
      %2684 = vmatpush1.msra.mxu0 0.0
      %2685 = vmatprep.subr.mxu0 0.0
      %2686 = vmatpush1.msra.mxu0 0.0
      %2687 = vmatprep.subr.mxu0 0.0
      %2688 = vmatpush1.msra.mxu0 0.0
      %2689 = vmatprep.subr.mxu0 0.0
      %2690 = vmatpush1.msra.mxu0 0.0
      %2691 = vmatprep.subr.mxu0 0.0
      %2692 = vmatpush1.msra.mxu0 0.0
      %2693 = vmatprep.subr.mxu0 0.0
      %2694 = vmatpush1.msra.mxu0 0.0
      %2695 = vmatprep.subr.mxu0 0.0
      %2696 = vmatpush1.msra.mxu0 0.0
      %2697 = vmatprep.subr.mxu0 0.0
      %2698 = vmatpush1.msra.mxu0 0.0
      %2699 = vmatprep.subr.mxu0 0.0
      %2700 = vmatpush1.msra.mxu0 0.0
      %2701 = vmatprep.subr.mxu0 0.0
      %2702 = vmatpush1.msra.mxu0 0.0
      %2703 = vmatprep.subr.mxu0 0.0
      %2704 = vmatpush1.msra.mxu0 0.0
      %2705 = vmatprep.subr.mxu0 0.0
      %2706 = vmatpush1.msra.mxu0 0.0
      %2707 = vmatprep.subr.mxu0 0.0
      %2708 = vmatpush1.msra.mxu0 0.0
      %2709 = vmatprep.subr.mxu0 0.0
      %2710 = vmatpush1.msra.mxu0 0.0
      %2711 = vmatprep.subr.mxu0 0.0
      %2712 = vmatpush1.msra.mxu0 0.0
      %2713 = vmatprep.subr.mxu0 0.0
      %2714 = vmatpush1.msra.mxu0 0.0
      %2715 = vmatprep.subr.mxu0 0.0
      %2716 = vmatpush1.msra.mxu0 0.0
      %2717 = vmatprep.subr.mxu0 0.0
      %2718 = vmatpush1.msra.mxu0 0.0
      %2719 = vmatprep.subr.mxu0 0.0
      %2720 = vmatpush1.msra.mxu0 0.0
      %2721 = vmatprep.subr.mxu0 0.0
      %2722 = vmatpush1.msra.mxu0 0.0
      %2723 = vmatprep.subr.mxu0 0.0
      %2724 = vmatpush1.msra.mxu0 0.0
      %2725 = vmatprep.subr.mxu0 0.0
      %2726 = vmatpush1.msra.mxu0 0.0
      %2727 = vmatprep.subr.mxu0 0.0
      %2728 = vmatpush1.msra.mxu0 0.0
      %2729 = vmatprep.subr.mxu0 0.0
      %2730 = vmatpush1.msra.mxu0 0.0
      %2731 = vmatprep.subr.mxu0 0.0
      %2732 = vmatpush1.msra.mxu0 0.0
      %2733 = vmatprep.mubr.f32.mxu0 0.0
      %2734 = vmatmul.mubr.f32.gmra.mrb[0].mxu0 %v2619
      %v2735 = vpop.f32.mrb[0].mxu0
      %v2736 = vadd.f32 0.0, %v2735
      %v2737 = vpop.f32.mrb[0].mxu0
      %2738 = vmatprep.mubr.f32.mxu0 0.0
      %2739 = vmatmul.mubr.f32.gmra.mrb[0].mxu0 %v2622
      %v2740 = vpop.f32.mrb[0].mxu0
      %v2741 = vadd.f32 0.0, %v2740
      %v2742 = vpop.f32.mrb[0].mxu0
      %2743 = vmatprep.mubr.f32.mxu0 0.0
      %2744 = vmatmul.mubr.f32.gmra.mrb[0].mxu0 %v2625
      %v2745 = vpop.f32.mrb[0].mxu0
      %v2746 = vadd.f32 0.0, %v2745
      %v2747 = vpop.f32.mrb[0].mxu0
      %2748 = vmatprep.mubr.f32.mxu0 0.0
      %2749 = vmatmul.mubr.f32.gmra.mrb[0].mxu0 %v2628
      %v2750 = vpop.f32.mrb[0].mxu0
      %v2751 = vadd.f32 0.0, %v2750
      %v2752 = vpop.f32.mrb[0].mxu0
      %2753 = vmatprep.mubr.f32.mxu0 0.0
      %2754 = vmatmul.mubr.f32.gmra.mrb[0].mxu0 %v2631
      %v2755 = vpop.f32.mrb[0].mxu0
      %v2756 = vadd.f32 0.0, %v2755
      %v2757 = vpop.f32.mrb[0].mxu0
      %2758 = vmatprep.mubr.f32.mxu0 0.0
      %2759 = vmatmul.mubr.f32.gmra.mrb[0].mxu0 %v2634
      %v2760 = vpop.f32.mrb[0].mxu0
      %v2761 = vadd.f32 0.0, %v2760
      %v2762 = vpop.f32.mrb[0].mxu0
      %2763 = vmatprep.mubr.f32.mxu0 0.0
      %2764 = vmatmul.mubr.f32.gmra.mrb[0].mxu0 %v2637
      %v2765 = vpop.f32.mrb[0].mxu0
      %v2766 = vadd.f32 0.0, %v2765
      %v2767 = vpop.f32.mrb[0].mxu0
      %2768 = vmatprep.mubr.f32.mxu0 0.0
      %2769 = vmatmul.mubr.f32.gmra.mrb[0].mxu0 %v2640
      %v2770 = vpop.f32.mrb[0].mxu0
      %v2771 = vadd.f32 0.0, %v2770
      %v2772 = vpop.f32.mrb[0].mxu0
      %2773 = vmatprep.mubr.f32.mxu0 0.0
      %2774 = vmatmul.mubr.f32.gmra.mrb[0].mxu0 %v2643
      %v2775 = vpop.f32.mrb[0].mxu0
      %v2776 = vadd.f32 0.0, %v2775
      %v2777 = vpop.f32.mrb[0].mxu0
      %2778 = vmatprep.mubr.f32.mxu0 0.0
      %2779 = vmatmul.mubr.f32.gmra.mrb[0].mxu0 %v2646
      %v2780 = vpop.f32.mrb[0].mxu0
      %v2781 = vadd.f32 0.0, %v2780
      %v2782 = vpop.f32.mrb[0].mxu0
      %2783 = vmatprep.mubr.f32.mxu0 0.0
      %2784 = vmatmul.mubr.f32.gmra.mrb[0].mxu0 %v2649
      %v2785 = vpop.f32.mrb[0].mxu0
      %v2786 = vadd.f32 0.0, %v2785
      %v2787 = vpop.f32.mrb[0].mxu0
      %2788 = vmatprep.mubr.f32.mxu0 0.0
      %2789 = vmatmul.mubr.f32.gmra.mrb[0].mxu0 %v2652
      %v2790 = vpop.f32.mrb[0].mxu0
      %v2791 = vadd.f32 0.0, %v2790
      %v2792 = vpop.f32.mrb[0].mxu0
      %2793 = vmatprep.mubr.f32.mxu0 0.0
      %2794 = vmatmul.mubr.f32.gmra.mrb[0].mxu0 %v2655
      %v2795 = vpop.f32.mrb[0].mxu0
      %v2796 = vadd.f32 0.0, %v2795
      %v2797 = vpop.f32.mrb[0].mxu0
      %2798 = vmatprep.mubr.f32.mxu0 0.0
      %2799 = vmatmul.mubr.f32.gmra.mrb[0].mxu0 %v2658
      %v2800 = vpop.f32.mrb[0].mxu0
      %v2801 = vadd.f32 0.0, %v2800
      %v2802 = vpop.f32.mrb[0].mxu0
      %2803 = vmatprep.mubr.f32.mxu0 0.0
      %2804 = vmatmul.mubr.f32.gmra.mrb[0].mxu0 %v2661
      %v2805 = vpop.f32.mrb[0].mxu0
      %v2806 = vadd.f32 0.0, %v2805
      %v2807 = vpop.f32.mrb[0].mxu0
      %2808 = vmatprep.mubr.f32.mxu0 0.0
      %2809 = vmatmul.mubr.f32.gmra.mrb[0].mxu0 %v2664
      %v2810 = vpop.f32.mrb[0].mxu0
      %v2811 = vadd.f32 0.0, %v2810
      %v2812 = vpop.f32.mrb[0].mxu0
      %2813 = vdwg.mxu0
      %v2814 = vld [vmem:[%s9] sm:$0x1]
      %v2816 = vlaneseq
      %v2817 = vshrl.u32 %v2816, 7
      %v2818 = vsub.s32 0, %v2817
      %v2819 = vrot.slane %v2814, %v2818
      %v2821 = vmul.f32 %v2736, %v2819
      %v2822 = vmul.f32 %v2741, %v2819
      %v2823 = vmul.f32 %v2746, %v2819
      %v2824 = vmul.f32 %v2751, %v2819
      %v2825 = vmul.f32 %v2756, %v2819
      %v2826 = vmul.f32 %v2761, %v2819
      %v2827 = vmul.f32 %v2766, %v2819
      %v2828 = vmul.f32 %v2771, %v2819
      %v2829 = vmul.f32 %v2776, %v2819
      %v2830 = vmul.f32 %v2781, %v2819
      %v2831 = vmul.f32 %v2786, %v2819
      %v2832 = vmul.f32 %v2791, %v2819
      %v2833 = vmul.f32 %v2796, %v2819
      %v2834 = vmul.f32 %v2801, %v2819
      %v2835 = vmul.f32 %v2806, %v2819
      %v2836 = vmul.f32 %v2811, %v2819
      %v2837 = vld [vmem:[%s10] sm:$0x1]
      %v2839 = vlaneseq
      %v2840 = vshrl.u32 %v2839, 7
      %v2841 = vsub.s32 0, %v2840
      %v2842 = vrot.slane %v2837, %v2841
      %v2844 = vadd.f32 %v2821, %v2842
      %v2845 = vadd.f32 %v2822, %v2842
      %v2846 = vadd.f32 %v2823, %v2842
      %v2847 = vadd.f32 %v2824, %v2842
      %v2848 = vadd.f32 %v2825, %v2842
      %v2849 = vadd.f32 %v2826, %v2842
      %v2850 = vadd.f32 %v2827, %v2842
      %v2851 = vadd.f32 %v2828, %v2842
      %v2852 = vadd.f32 %v2829, %v2842
      %v2853 = vadd.f32 %v2830, %v2842
      %v2854 = vadd.f32 %v2831, %v2842
      %v2855 = vadd.f32 %v2832, %v2842
      %v2856 = vadd.f32 %v2833, %v2842
      %v2857 = vadd.f32 %v2834, %v2842
      %v2858 = vadd.f32 %v2835, %v2842
      %v2859 = vadd.f32 %v2836, %v2842
      %v2860 = vadd.f32 %v2844, %v472
      %v2861 = vadd.f32 %v2845, %v473
      %v2862 = vadd.f32 %v2846, %v474
      %v2863 = vadd.f32 %v2847, %v475
      %v2864 = vadd.f32 %v2848, %v476
      %v2865 = vadd.f32 %v2849, %v477
      %v2866 = vadd.f32 %v2850, %v478
      %v2867 = vadd.f32 %v2851, %v479
      %v2868 = vadd.f32 %v2852, %v480
      %v2869 = vadd.f32 %v2853, %v481
      %v2870 = vadd.f32 %v2854, %v482
      %v2871 = vadd.f32 %v2855, %v483
      %v2872 = vadd.f32 %v2856, %v484
      %v2873 = vadd.f32 %v2857, %v485
      %v2874 = vadd.f32 %v2858, %v486
      %v2875 = vadd.f32 %v2859, %v487
      %v2876 = vmax.f32 %v2860, 0.0
      %v2877 = vmax.f32 %v2861, 0.0
      %v2878 = vmax.f32 %v2862, 0.0
      %v2879 = vmax.f32 %v2863, 0.0
      %v2880 = vmax.f32 %v2864, 0.0
      %v2881 = vmax.f32 %v2865, 0.0
      %v2882 = vmax.f32 %v2866, 0.0
      %v2883 = vmax.f32 %v2867, 0.0
      %v2884 = vmax.f32 %v2868, 0.0
      %v2885 = vmax.f32 %v2869, 0.0
      %v2886 = vmax.f32 %v2870, 0.0
      %v2887 = vmax.f32 %v2871, 0.0
      %v2888 = vmax.f32 %v2872, 0.0
      %v2889 = vmax.f32 %v2873, 0.0
      %v2890 = vmax.f32 %v2874, 0.0
      %v2891 = vmax.f32 %v2875, 0.0
      %2892 = vst.msk [vmem:[%s468] sm:$0xff] %vm490, %v2876
      %2893 = vst.msk [vmem:[%s468 + $0x8] sm:$0xff] %vm490, %v2877
      %2894 = vst.msk [vmem:[%s468 + $0x10] sm:$0xff] %vm490, %v2878
      %2895 = vst.msk [vmem:[%s468 + $0x18] sm:$0xff] %vm490, %v2879
      %2896 = vst.msk [vmem:[%s468 + $0x20] sm:$0xff] %vm490, %v2880
      %2897 = vst.msk [vmem:[%s468 + $0x28] sm:$0xff] %vm490, %v2881
      %2898 = vst.msk [vmem:[%s468 + $0x30] sm:$0xff] %vm490, %v2882
      %2899 = vst.msk [vmem:[%s468 + $0x38] sm:$0xff] %vm490, %v2883
      %2900 = vst.msk [vmem:[%s468 + $0x40] sm:$0xff] %vm490, %v2884
      %2901 = vst.msk [vmem:[%s468 + $0x48] sm:$0xff] %vm490, %v2885
      %2902 = vst.msk [vmem:[%s468 + $0x50] sm:$0xff] %vm490, %v2886
      %2903 = vst.msk [vmem:[%s468 + $0x58] sm:$0xff] %vm490, %v2887
      %2904 = vst.msk [vmem:[%s468 + $0x60] sm:$0xff] %vm490, %v2888
      %2905 = vst.msk [vmem:[%s468 + $0x68] sm:$0xff] %vm490, %v2889
      %2906 = vst.msk [vmem:[%s468 + $0x70] sm:$0xff] %vm490, %v2890
      %2907 = vst.msk [vmem:[%s468 + $0x78] sm:$0xff] %vm490, %v2891
      %s2908 = smul.u32 8, %s27
      %p2909 = scmp.lt.s32.totalorder %s26, 1
      %s2910 = scalar_select %p2909, %s26, 1
      %p2911 = scmp.lt.s32.totalorder %s2908, 15
      %s2912 = scalar_select %p2911, %s2908, 15
      %s2913 = smul.addr %s2912, 2
      %s2914 = smul.addr %s2910, 32
      %s2915 = sadd.s32 %s2913, %s2914
      %s2916 = smul.addr %s2915, 8
      %s2917 = scalar_lea.vmem %s11, %s2916
      // Predicated region
      $region65: #{bottleneck_forward.1} parent=63 // pred_check
        %p2918 = pneg %p299
      $region66: #{bottleneck_forward.1} parent=63 // pred_check_branch
        %2920 = sbr.rel (%p2918) target = $region68
      $region67: #{bottleneck_forward.1} parent=63 // pred_region
        %s2921 = smul.u32 8, %s27
      $region68: #{bottleneck_forward.1} parent=63 // pred_fallthru
        _
    $region64: #{bottleneck_forward.1} parent=5 // pred_fallthru
      _
    %p2922 = scmp.le.s32.totalorder 2, %s17
    // Predicated region
    $region69: #{bottleneck_forward.1} parent=5 // pred_check
      %p2923 = pneg %p2922
    $region70: #{bottleneck_forward.1} parent=5 // pred_check_branch
      %2925 = sbr.rel (%p2923) target = $region72
    $region71: #{bottleneck_forward.1} parent=5 // pred_region
      %s2926 = ssub.s32 %s17, 2
      // Predicated region
      $region73: #{bottleneck_forward.1} parent=71 // pred_check
        %p2927 = pneg %p305
      $region74: #{bottleneck_forward.1} parent=71 // pred_check_branch
        %2929 = sbr.rel (%p2927) target = $region76
      $region75: #{bottleneck_forward.1} parent=71 // pred_region
        %s2930 = smul.u32 8, %s29
        %p2931 = scmp.lt.s32.totalorder %s28, 1
        %s2932 = scalar_select %p2931, %s28, 1
        %p2933 = scmp.lt.s32.totalorder %s2930, 15
        %s2934 = scalar_select %p2933, %s2930, 15
        %s2935 = smul.addr %s2934, 2
        %s2936 = smul.addr %s2932, 32
        %s2937 = sadd.s32 %s2935, %s2936
        %s2938 = smul.addr %s2937, 8
        %s2939 = scalar_lea.vmem %s11, %s2938
      $region76: #{bottleneck_forward.1} parent=71 // pred_fallthru
        _
    $region72: #{bottleneck_forward.1} parent=5 // pred_fallthru
      _
  $region6: #{bottleneck_forward.1} parent=0 // loop_footer
    %s21 = sadd.s32 1, %s17
  $region7: #{bottleneck_forward.1} parent=0 // loop_footer_branch
    %16 = sbr.rel target = $region3
  $region8: #{bottleneck_forward.1} parent=0 // loop_exit
    _

</llo_original>
